<compile_context>
chip_gen: v7x
topology: tpu7x:2x2x1
jax: 0.10.0
libtpu: 0.0.40
codegen_flags: <defaults>
</compile_context>

<pallas_src>
import jax
import jax.numpy as jnp
from jax.experimental import pallas as pl
from jax.experimental.pallas import tpu as pltpu


# ----------------------------------------------------------------------------
# In-kernel building blocks (values + shared VMEM scratch; nothing leaves chip)
# ----------------------------------------------------------------------------
def _conv3x3_relu_im2col(x, w_ref, b_ref, pad_ref, patch_ref, compute_dtype):
    """3x3 conv (pad=1) + bias + ReLU on one image via a single im2col matmul.

    x:         (H, W, Cin)       f32 activation value
    w_ref:     (9*Cin, Cout)     weight ref, im2col-reshaped + bf16 at trace time
    b_ref:     (1, Cout)         f32 bias ref
    pad_ref:   (Hm+2, Wm+2, Cm)  shared f32 halo scratch (max-sized over convs)
    patch_ref: (HWm, 9*Cm)       shared f32 im2col scratch (max-sized over convs)
    returns:   (H, W, Cout)      f32
    """
    H, W, Cin = x.shape
    Cout = w_ref.shape[-1]
    K9 = 9 * Cin

    # Zero ONLY the 1-pixel halo ring of the (H+2, W+2, Cin) region in use; the
    # interior is fully overwritten right below (full-buffer memsets per conv
    # were burning the scarce vst slot; the ring is O(perimeter), not O(area)).
    pad_ref[0:1, 0:W + 2, 0:Cin] = jnp.zeros((1, W + 2, Cin), jnp.float32)
    pad_ref[H + 1:H + 2, 0:W + 2, 0:Cin] = jnp.zeros((1, W + 2, Cin), jnp.float32)
    pad_ref[1:H + 1, 0:1, 0:Cin] = jnp.zeros((H, 1, Cin), jnp.float32)
    pad_ref[1:H + 1, W + 1:W + 2, 0:Cin] = jnp.zeros((H, 1, Cin), jnp.float32)
    pad_ref[1:H + 1, 1:W + 1, 0:Cin] = x

    xp = pad_ref[0:H + 2, 0:W + 2, 0:Cin]          # halo'd image, read once

    # im2col: scatter the 9 taps into an (H*W, 9*Cin) patch matrix.  Tap order
    # (dh, dw, cin) matches the trace-time weight reshape (3,3,Cin,Cout) ->
    # (9*Cin, Cout).  The conv then becomes ONE MXU matmul with K = 9*Cin
    # instead of 9 tiny-K dots (much better MXU fill, 8 fewer FIFO drains).
    for dh in range(3):
        for dw in range(3):
            t = dh * 3 + dw
            tap = xp[dh:dh + H, dw:dw + W, :].reshape(H * W, Cin)
            patch_ref[0:H * W, t * Cin:(t + 1) * Cin] = tap

    patch = patch_ref[0:H * W, 0:K9].astype(compute_dtype)     # bf16 MXU operand
    acc = jnp.dot(patch, w_ref[...], preferred_element_type=jnp.float32)
    acc = acc + b_ref[0][None, :]                               # f32 epilogue
    return jnp.maximum(acc, 0.0).reshape(H, W, Cout)


def _maxpool2x2(x):
    """2x2 max pool, stride 2.  x: (H, W, C) -> (H//2, W//2, C)."""
    H, W, C = x.shape
    xr = x.reshape(H // 2, 2, W, C)                # split rows (leading dim only)
    row = jnp.maximum(xr[:, 0], xr[:, 1])          # (H//2, W, C)
    rr = row.reshape(H // 2, W // 2, 2, C)         # split cols
    return jnp.maximum(rr[:, :, 0, :], rr[:, :, 1, :])


# ----------------------------------------------------------------------------
# Fused kernel: the entire features stack, one image per grid step
# ----------------------------------------------------------------------------
def _make_fused_features_kernel(cfg, compute_dtype):
    n_conv = sum(1 for layer in cfg if layer[0] == "conv")

    def kernel(*refs):
        # refs = [x, (w, b) * n_conv, out, pad_scratch, patch_scratch]
        x_ref = refs[0]
        param_refs = refs[1:1 + 2 * n_conv]
        o_ref = refs[1 + 2 * n_conv]
        pad_ref = refs[2 + 2 * n_conv]
        patch_ref = refs[3 + 2 * n_conv]

        x = x_ref[0].astype(jnp.float32)           # (H0, W0, C0), f32 activations
        ci = 0
        for layer in cfg:
            if layer[0] == "conv":
                x = _conv3x3_relu_im2col(
                    x, param_refs[2 * ci], param_refs[2 * ci + 1],
                    pad_ref, patch_ref, compute_dtype)
                ci += 1
            else:
                x = _maxpool2x2(x)

        # Lane-dense output: write the (Hf, Wf, Cf) result as one
        # (1, 1, Hf*Wf*Cf) slab (last dim is a multiple of 128 for this cfg),
        # so the HBM writeback is dense instead of Cf(<128)-lane strips.
        Hf, Wf, Cf = x.shape
        x2 = x.reshape(Hf * Wf, Cf)                # leading-dim merge only
        for i in range(Hf * Wf):
            o_ref[0, 0:1, i * Cf:(i + 1) * Cf] = x2[i:i + 1, :].astype(o_ref.dtype)

    return kernel


# ----------------------------------------------------------------------------
# VGG_Net: pre_model = features of a (small, synthetic) VGG
# ----------------------------------------------------------------------------
# Synthetic VGG-style config (conv3x3+ReLU blocks, maxpool between stages),
# shapes scaled down for the small test input.
_VGG_CFG = [
    ("conv", 3, 8),
    ("pool",),
    ("conv", 8, 16),
    ("conv", 16, 16),
    ("pool",),
    ("conv", 16, 32),
    ("pool",),
]


def init_vgg_params(key, cfg=_VGG_CFG):
    """Deterministic Kaiming-style init for every conv layer in cfg."""
    params = []
    for layer in cfg:
        if layer[0] == "conv":
            _, cin, cout = layer
            key, kw, kb = jax.random.split(key, 3)
            scale = jnp.sqrt(2.0 / (9.0 * cin))
            w = jax.random.normal(kw, (3, 3, cin, cout), jnp.float32) * scale
            b = jax.random.normal(kb, (cout,), jnp.float32) * 0.01
            params.append((w, b))
        else:
            params.append(None)
    return params


def vgg_features_pallas(params, x_nhwc, cfg=_VGG_CFG, compute_dtype=jnp.bfloat16):
    """Entire features stack as one fused pallas_call.  NHWC in, NHWC out."""
    N, H, W, C = x_nhwc.shape
    H0, W0, C0 = H, W, C

    in_specs = [pl.BlockSpec((1, H0, W0, C0), lambda n: (n, 0, 0, 0))]
    flat_params = []
    pad_h = pad_w = pad_c = 0                      # shared halo-scratch extents
    hw_max = k9_max = 0                            # shared im2col-scratch extents
    for layer, p in zip(cfg, params):
        if layer[0] == "conv":
            w, b = p
            cin, cout = int(w.shape[2]), int(w.shape[3])
            assert cin == C, (cin, C)
            pad_h, pad_w, pad_c = max(pad_h, H + 2), max(pad_w, W + 2), max(pad_c, cin)
            hw_max, k9_max = max(hw_max, H * W), max(k9_max, 9 * cin)
            # im2col weight reshape + bf16 cast happen at trace time.
            flat_params += [w.reshape(9 * cin, cout).astype(compute_dtype),
                            b.reshape(1, cout).astype(jnp.float32)]
            # Weight/bias blocks are grid-invariant (constant index_map) so they
            # are fetched once.  TODO(synk): at real VGG sizes single-buffer them
            # (pipeline_mode=pl.Buffered(1)) or stream them from HBM (pl.ANY +
            # make_async_copy) -- mandatory on v7x's 64 MiB VMEM.
            in_specs += [pl.BlockSpec((9 * cin, cout), lambda n: (0, 0)),
                         pl.BlockSpec((1, cout), lambda n: (0, 0))]
            C = cout
        else:
            assert H % 2 == 0 and W % 2 == 0, (H, W)   # 2x2 pooling needs even dims
            H, W = H // 2, W // 2

    out_elems = H * W * C

    # ONE shared halo scratch + ONE shared im2col scratch, each max-sized over
    # the conv layers (region-0 scratch has whole-kernel lifetime, so per-conv
    # buffers would otherwise SUM).
    scratch_shapes = [pltpu.VMEM((pad_h, pad_w, pad_c), jnp.float32),
                      pltpu.VMEM((hw_max, k9_max), jnp.float32)]

    # Scoped-VMEM budget from the actual buffer sizes (+pipelining/compiler-temp
    # headroom), floored at the smallest per-chip default so it is never a
    # tighter constraint than the compiler's own.
    vmem_bytes = 2 * (H0 * W0 * C0 * 4 + out_elems * 4)           # pipelined I/O
    vmem_bytes += 2 * sum(int(p.size) * p.dtype.itemsize for p in flat_params)
    vmem_bytes += pad_h * pad_w * pad_c * 4 + hw_max * k9_max * 4
    vmem_limit = int(min(32 << 20, max(16 << 20, 4 * vmem_bytes)))

    y = pl.pallas_call(
        _make_fused_features_kernel(cfg, compute_dtype),
        out_shape=jax.ShapeDtypeStruct((N, 1, out_elems), x_nhwc.dtype),
        grid=(N,),
        in_specs=in_specs,
        out_specs=pl.BlockSpec((1, 1, out_elems), lambda n: (n, 0, 0)),
        scratch_shapes=scratch_shapes,
        compiler_params=pltpu.CompilerParams(
            dimension_semantics=("parallel",),
            vmem_limit_bytes=vmem_limit),
    )(x_nhwc, *flat_params)
    return y.reshape(N, H, W, C)


def vgg_net_forward(params, x_nchw, cfg=_VGG_CFG, compute_dtype=jnp.bfloat16):
    """Equivalent of VGG_Net.forward: x -> pre_model(x).  NCHW in, NCHW out."""
    x = jnp.transpose(x_nchw, (0, 2, 3, 1))        # NCHW -> NHWC (kernel layout)
    y = vgg_features_pallas(params, x, cfg, compute_dtype)
    return jnp.transpose(y, (0, 3, 1, 2))          # NHWC -> NCHW


# ----------------------------------------------------------------------------
# Pure-JAX reference (same bf16-input / f32-accumulate numerics as the kernel)
# ----------------------------------------------------------------------------
def vgg_net_reference(params, x_nchw, cfg=_VGG_CFG, compute_dtype=jnp.bfloat16):
    x = x_nchw.astype(jnp.float32)
    for layer, p in zip(cfg, params):
        if layer[0] == "conv":
            w, b = p
            y = jax.lax.conv_general_dilated(
                x.astype(compute_dtype), w.astype(compute_dtype),
                window_strides=(1, 1), padding="SAME",
                dimension_numbers=("NCHW", "HWIO", "NCHW"),
                preferred_element_type=jnp.float32)
            x = jnp.maximum(y + b[None, :, None, None], 0.0)
        else:
            x = jax.lax.reduce_window(
                x, -jnp.inf, jax.lax.max,
                window_dimensions=(1, 1, 2, 2),
                window_strides=(1, 1, 2, 2), padding="VALID")
    return x


# ----------------------------------------------------------------------------
if __name__ == "__main__":
    key = jax.random.PRNGKey(0)
    k_params, k_x = jax.random.split(key)

    params = init_vgg_params(k_params)
    x = jax.random.normal(k_x, (2, 3, 16, 16), jnp.float32)   # NCHW, like PyTorch

    out = jax.block_until_ready(vgg_net_forward(params, x))
    ref = jax.block_until_ready(vgg_net_reference(params, x))

    assert out.shape == (2, 32, 2, 2), out.shape
    err = float(jnp.max(jnp.abs(out - ref)))
    assert jnp.allclose(out, ref, atol=1e-2, rtol=1e-2), err

    print("KERNEL_OK")
</pallas_src>

<mosaic_0001>
module attributes {stable_mosaic.version = 11 : i64} {
  func.func @kernel(%arg0: i32, %arg1: memref<1x16x16x3xf32, #tpu.memory_space<vmem>>, %arg2: memref<27x8xbf16, #tpu.memory_space<vmem>>, %arg3: memref<1x8xf32, #tpu.memory_space<vmem>>, %arg4: memref<72x16xbf16, #tpu.memory_space<vmem>>, %arg5: memref<1x16xf32, #tpu.memory_space<vmem>>, %arg6: memref<144x16xbf16, #tpu.memory_space<vmem>>, %arg7: memref<1x16xf32, #tpu.memory_space<vmem>>, %arg8: memref<144x32xbf16, #tpu.memory_space<vmem>>, %arg9: memref<1x32xf32, #tpu.memory_space<vmem>>, %arg10: memref<1x1x128xf32, #tpu.memory_space<vmem>>, %arg11: memref<18x18x16xf32, #tpu.memory_space<vmem>>, %arg12: memref<256x144xf32, #tpu.memory_space<vmem>>) attributes {dimension_semantics = [#tpu.dimension_semantics<parallel>], iteration_bounds = array<i64: 2>, scalar_prefetch = 0 : i64, scratch_operands = 2 : i64, tpu.core_type = #tpu.core_type<tc>, window_params = [{transform_indices = @transform_0, window_bounds = array<i64: 1, 16, 16, 3>}, {pipeline_mode = #tpu.pipeline_mode<synchronous>, transform_indices = @transform_1, window_bounds = array<i64: 27, 8>}, {pipeline_mode = #tpu.pipeline_mode<synchronous>, transform_indices = @transform_2, window_bounds = array<i64: 1, 8>}, {pipeline_mode = #tpu.pipeline_mode<synchronous>, transform_indices = @transform_3, window_bounds = array<i64: 72, 16>}, {pipeline_mode = #tpu.pipeline_mode<synchronous>, transform_indices = @transform_4, window_bounds = array<i64: 1, 16>}, {pipeline_mode = #tpu.pipeline_mode<synchronous>, transform_indices = @transform_5, window_bounds = array<i64: 144, 16>}, {pipeline_mode = #tpu.pipeline_mode<synchronous>, transform_indices = @transform_6, window_bounds = array<i64: 1, 16>}, {pipeline_mode = #tpu.pipeline_mode<synchronous>, transform_indices = @transform_7, window_bounds = array<i64: 144, 32>}, {pipeline_mode = #tpu.pipeline_mode<synchronous>, transform_indices = @transform_8, window_bounds = array<i64: 1, 32>}, {transform_indices = @transform_9, window_bounds = array<i64: 1, 1, 128>}]} {
    %c0 = arith.constant 0 : index
    %c0_0 = arith.constant 0 : index
    %c0_1 = arith.constant 0 : index
    %c0_2 = arith.constant 0 : index
    %0 = vector.load %arg1[%c0, %c0_0, %c0_1, %c0_2] : memref<1x16x16x3xf32, #tpu.memory_space<vmem>>, vector<1x16x16x3xf32>
    %1 = vector.shape_cast %0 : vector<1x16x16x3xf32> to vector<16x16x3xf32>
    %cst = arith.constant 0.000000e+00 : f32
    %2 = vector.broadcast %cst : f32 to vector<1x18x3xf32>
    %c0_3 = arith.constant 0 : index
    %c0_4 = arith.constant 0 : index
    %c0_5 = arith.constant 0 : index
    %3 = vector.load %arg11[%c0_3, %c0_4, %c0_5] : memref<18x18x16xf32, #tpu.memory_space<vmem>>, vector<1x18x3xf32>
    tpu.vector_store %arg11[%c0_3, %c0_4, %c0_5], %2 {strides = array<i32>} : memref<18x18x16xf32, #tpu.memory_space<vmem>>, vector<1x18x3xf32>,
    %cst_6 = arith.constant 0.000000e+00 : f32
    %4 = vector.broadcast %cst_6 : f32 to vector<1x18x3xf32>
    %c17 = arith.constant 17 : index
    %c0_7 = arith.constant 0 : index
    %c0_8 = arith.constant 0 : index
    %5 = vector.load %arg11[%c17, %c0_7, %c0_8] : memref<18x18x16xf32, #tpu.memory_space<vmem>>, vector<1x18x3xf32>
    tpu.vector_store %arg11[%c17, %c0_7, %c0_8], %4 {strides = array<i32>} : memref<18x18x16xf32, #tpu.memory_space<vmem>>, vector<1x18x3xf32>,
    %cst_9 = arith.constant 0.000000e+00 : f32
    %6 = vector.broadcast %cst_9 : f32 to vector<16x1x3xf32>
    %c1 = arith.constant 1 : index
    %c0_10 = arith.constant 0 : index
    %c0_11 = arith.constant 0 : index
    %7 = vector.load %arg11[%c1, %c0_10, %c0_11] : memref<18x18x16xf32, #tpu.memory_space<vmem>>, vector<16x1x3xf32>
    tpu.vector_store %arg11[%c1, %c0_10, %c0_11], %6 {strides = array<i32>} : memref<18x18x16xf32, #tpu.memory_space<vmem>>, vector<16x1x3xf32>,
    %cst_12 = arith.constant 0.000000e+00 : f32
    %8 = vector.broadcast %cst_12 : f32 to vector<16x1x3xf32>
    %c1_13 = arith.constant 1 : index
    %c17_14 = arith.constant 17 : index
    %c0_15 = arith.constant 0 : index
    %9 = vector.load %arg11[%c1_13, %c17_14, %c0_15] : memref<18x18x16xf32, #tpu.memory_space<vmem>>, vector<16x1x3xf32>
    tpu.vector_store %arg11[%c1_13, %c17_14, %c0_15], %8 {strides = array<i32>} : memref<18x18x16xf32, #tpu.memory_space<vmem>>, vector<16x1x3xf32>,
    %c1_16 = arith.constant 1 : index
    %c1_17 = arith.constant 1 : index
    %c0_18 = arith.constant 0 : index
    %10 = vector.load %arg11[%c1_16, %c1_17, %c0_18] : memref<18x18x16xf32, #tpu.memory_space<vmem>>, vector<16x16x3xf32>
    tpu.vector_store %arg11[%c1_16, %c1_17, %c0_18], %1 {strides = array<i32>} : memref<18x18x16xf32, #tpu.memory_space<vmem>>, vector<16x16x3xf32>,
    %c0_19 = arith.constant 0 : index
    %c0_20 = arith.constant 0 : index
    %c0_21 = arith.constant 0 : index
    %11 = vector.load %arg11[%c0_19, %c0_20, %c0_21] : memref<18x18x16xf32, #tpu.memory_space<vmem>>, vector<18x18x3xf32>
    %12 = vector.extract_strided_slice %11 {offsets = [0, 0, 0], sizes = [16, 16, 3], strides = [1, 1, 1]} : vector<18x18x3xf32> to vector<16x16x3xf32>
    %13 = vector.shape_cast %12 : vector<16x16x3xf32> to vector<256x3xf32>
    %c0_22 = arith.constant 0 : index
    %c0_23 = arith.constant 0 : index
    %14 = vector.load %arg12[%c0_22, %c0_23] : memref<256x144xf32, #tpu.memory_space<vmem>>, vector<256x3xf32>
    tpu.vector_store %arg12[%c0_22, %c0_23], %13 {strides = array<i32>} : memref<256x144xf32, #tpu.memory_space<vmem>>, vector<256x3xf32>,
    %15 = vector.extract_strided_slice %11 {offsets = [0, 1, 0], sizes = [16, 16, 3], strides = [1, 1, 1]} : vector<18x18x3xf32> to vector<16x16x3xf32>
    %16 = vector.shape_cast %15 : vector<16x16x3xf32> to vector<256x3xf32>
    %c0_24 = arith.constant 0 : index
    %c3 = arith.constant 3 : index
    %17 = vector.load %arg12[%c0_24, %c3] : memref<256x144xf32, #tpu.memory_space<vmem>>, vector<256x3xf32>
    tpu.vector_store %arg12[%c0_24, %c3], %16 {strides = array<i32>} : memref<256x144xf32, #tpu.memory_space<vmem>>, vector<256x3xf32>,
    %18 = vector.extract_strided_slice %11 {offsets = [0, 2, 0], sizes = [16, 16, 3], strides = [1, 1, 1]} : vector<18x18x3xf32> to vector<16x16x3xf32>
    %19 = vector.shape_cast %18 : vector<16x16x3xf32> to vector<256x3xf32>
    %c0_25 = arith.constant 0 : index
    %c6 = arith.constant 6 : index
    %20 = vector.load %arg12[%c0_25, %c6] : memref<256x144xf32, #tpu.memory_space<vmem>>, vector<256x3xf32>
    tpu.vector_store %arg12[%c0_25, %c6], %19 {strides = array<i32>} : memref<256x144xf32, #tpu.memory_space<vmem>>, vector<256x3xf32>,
    %21 = vector.extract_strided_slice %11 {offsets = [1, 0, 0], sizes = [16, 16, 3], strides = [1, 1, 1]} : vector<18x18x3xf32> to vector<16x16x3xf32>
    %22 = vector.shape_cast %21 : vector<16x16x3xf32> to vector<256x3xf32>
    %c0_26 = arith.constant 0 : index
    %c9 = arith.constant 9 : index
    %23 = vector.load %arg12[%c0_26, %c9] : memref<256x144xf32, #tpu.memory_space<vmem>>, vector<256x3xf32>
    tpu.vector_store %arg12[%c0_26, %c9], %22 {strides = array<i32>} : memref<256x144xf32, #tpu.memory_space<vmem>>, vector<256x3xf32>,
    %24 = vector.extract_strided_slice %11 {offsets = [1, 1, 0], sizes = [16, 16, 3], strides = [1, 1, 1]} : vector<18x18x3xf32> to vector<16x16x3xf32>
    %25 = vector.shape_cast %24 : vector<16x16x3xf32> to vector<256x3xf32>
    %c0_27 = arith.constant 0 : index
    %c12 = arith.constant 12 : index
    %26 = vector.load %arg12[%c0_27, %c12] : memref<256x144xf32, #tpu.memory_space<vmem>>, vector<256x3xf32>
    tpu.vector_store %arg12[%c0_27, %c12], %25 {strides = array<i32>} : memref<256x144xf32, #tpu.memory_space<vmem>>, vector<256x3xf32>,
    %27 = vector.extract_strided_slice %11 {offsets = [1, 2, 0], sizes = [16, 16, 3], strides = [1, 1, 1]} : vector<18x18x3xf32> to vector<16x16x3xf32>
    %28 = vector.shape_cast %27 : vector<16x16x3xf32> to vector<256x3xf32>
    %c0_28 = arith.constant 0 : index
    %c15 = arith.constant 15 : index
    %29 = vector.load %arg12[%c0_28, %c15] : memref<256x144xf32, #tpu.memory_space<vmem>>, vector<256x3xf32>
    tpu.vector_store %arg12[%c0_28, %c15], %28 {strides = array<i32>} : memref<256x144xf32, #tpu.memory_space<vmem>>, vector<256x3xf32>,
    %30 = vector.extract_strided_slice %11 {offsets = [2, 0, 0], sizes = [16, 16, 3], strides = [1, 1, 1]} : vector<18x18x3xf32> to vector<16x16x3xf32>
    %31 = vector.shape_cast %30 : vector<16x16x3xf32> to vector<256x3xf32>
    %c0_29 = arith.constant 0 : index
    %c18 = arith.constant 18 : index
    %32 = vector.load %arg12[%c0_29, %c18] : memref<256x144xf32, #tpu.memory_space<vmem>>, vector<256x3xf32>
    tpu.vector_store %arg12[%c0_29, %c18], %31 {strides = array<i32>} : memref<256x144xf32, #tpu.memory_space<vmem>>, vector<256x3xf32>,
    %33 = vector.extract_strided_slice %11 {offsets = [2, 1, 0], sizes = [16, 16, 3], strides = [1, 1, 1]} : vector<18x18x3xf32> to vector<16x16x3xf32>
    %34 = vector.shape_cast %33 : vector<16x16x3xf32> to vector<256x3xf32>
    %c0_30 = arith.constant 0 : index
    %c21 = arith.constant 21 : index
    %35 = vector.load %arg12[%c0_30, %c21] : memref<256x144xf32, #tpu.memory_space<vmem>>, vector<256x3xf32>
    tpu.vector_store %arg12[%c0_30, %c21], %34 {strides = array<i32>} : memref<256x144xf32, #tpu.memory_space<vmem>>, vector<256x3xf32>,
    %36 = vector.extract_strided_slice %11 {offsets = [2, 2, 0], sizes = [16, 16, 3], strides = [1, 1, 1]} : vector<18x18x3xf32> to vector<16x16x3xf32>
    %37 = vector.shape_cast %36 : vector<16x16x3xf32> to vector<256x3xf32>
    %c0_31 = arith.constant 0 : index
    %c24 = arith.constant 24 : index
    %38 = vector.load %arg12[%c0_31, %c24] : memref<256x144xf32, #tpu.memory_space<vmem>>, vector<256x3xf32>
    tpu.vector_store %arg12[%c0_31, %c24], %37 {strides = array<i32>} : memref<256x144xf32, #tpu.memory_space<vmem>>, vector<256x3xf32>,
    %c0_32 = arith.constant 0 : index
    %c0_33 = arith.constant 0 : index
    %39 = vector.load %arg12[%c0_32, %c0_33] : memref<256x144xf32, #tpu.memory_space<vmem>>, vector<256x27xf32>
    %40 = arith.truncf %39 : vector<256x27xf32> to vector<256x27xbf16>
    %c0_34 = arith.constant 0 : index
    %c0_35 = arith.constant 0 : index
    %41 = vector.load %arg2[%c0_34, %c0_35] : memref<27x8xbf16, #tpu.memory_space<vmem>>, vector<27x8xbf16>
    %cst_36 = arith.constant dense<0.000000e+00> : vector<256x8xf32>
    %42 = tpu.matmul %40, %41, %cst_36 {dimension_numbers = #tpu.dot_dimension_numbers<[1], [0], [0], [1], [0, 0, 1, 1], [], []>} : vector<256x27xbf16>, vector<27x8xbf16>, vector<256x8xf32> -> vector<256x8xf32>
    %c0_37 = arith.constant 0 : index
    %c0_38 = arith.constant 0 : index
    %43 = vector.load %arg3[%c0_37, %c0_38] : memref<1x8xf32, #tpu.memory_space<vmem>>, vector<1x8xf32>
    %44 = vector.shape_cast %43 : vector<1x8xf32> to vector<8xf32>
    %45 = vector.shape_cast %44 : vector<8xf32> to vector<1x8xf32>
    %46 = vector.broadcast %45 : vector<1x8xf32> to vector<256x8xf32>
    %47 = arith.addf %42, %46 : vector<256x8xf32>
    %cst_39 = arith.constant 0.000000e+00 : f32
    %48 = vector.broadcast %cst_39 : f32 to vector<256x8xf32>
    %49 = arith.maximumf %47, %48 : vector<256x8xf32>
    %50 = vector.shape_cast %49 : vector<256x8xf32> to vector<16x16x8xf32>
    %51 = vector.shape_cast %50 : vector<16x16x8xf32> to vector<8x2x16x8xf32>
    %52 = vector.extract_strided_slice %51 {offsets = [0, 0, 0, 0], sizes = [8, 1, 16, 8], strides = [1, 1, 1, 1]} : vector<8x2x16x8xf32> to vector<8x1x16x8xf32>
    %53 = vector.shape_cast %52 : vector<8x1x16x8xf32> to vector<8x16x8xf32>
    %54 = vector.extract_strided_slice %51 {offsets = [0, 1, 0, 0], sizes = [8, 1, 16, 8], strides = [1, 1, 1, 1]} : vector<8x2x16x8xf32> to vector<8x1x16x8xf32>
    %55 = vector.shape_cast %54 : vector<8x1x16x8xf32> to vector<8x16x8xf32>
    %56 = arith.maximumf %53, %55 : vector<8x16x8xf32>
    %57 = vector.shape_cast %56 : vector<8x16x8xf32> to vector<8x8x2x8xf32>
    %58 = vector.extract_strided_slice %57 {offsets = [0, 0, 0, 0], sizes = [8, 8, 1, 8], strides = [1, 1, 1, 1]} : vector<8x8x2x8xf32> to vector<8x8x1x8xf32>
    %59 = vector.shape_cast %58 : vector<8x8x1x8xf32> to vector<8x8x8xf32>
    %60 = vector.extract_strided_slice %57 {offsets = [0, 0, 1, 0], sizes = [8, 8, 1, 8], strides = [1, 1, 1, 1]} : vector<8x8x2x8xf32> to vector<8x8x1x8xf32>
    %61 = vector.shape_cast %60 : vector<8x8x1x8xf32> to vector<8x8x8xf32>
    %62 = arith.maximumf %59, %61 : vector<8x8x8xf32>
    %cst_40 = arith.constant 0.000000e+00 : f32
    %63 = vector.broadcast %cst_40 : f32 to vector<1x10x8xf32>
    %c0_41 = arith.constant 0 : index
    %c0_42 = arith.constant 0 : index
    %c0_43 = arith.constant 0 : index
    %64 = vector.load %arg11[%c0_41, %c0_42, %c0_43] : memref<18x18x16xf32, #tpu.memory_space<vmem>>, vector<1x10x8xf32>
    tpu.vector_store %arg11[%c0_41, %c0_42, %c0_43], %63 {strides = array<i32>} : memref<18x18x16xf32, #tpu.memory_space<vmem>>, vector<1x10x8xf32>,
    %cst_44 = arith.constant 0.000000e+00 : f32
    %65 = vector.broadcast %cst_44 : f32 to vector<1x10x8xf32>
    %c9_45 = arith.constant 9 : index
    %c0_46 = arith.constant 0 : index
    %c0_47 = arith.constant 0 : index
    %66 = vector.load %arg11[%c9_45, %c0_46, %c0_47] : memref<18x18x16xf32, #tpu.memory_space<vmem>>, vector<1x10x8xf32>
    tpu.vector_store %arg11[%c9_45, %c0_46, %c0_47], %65 {strides = array<i32>} : memref<18x18x16xf32, #tpu.memory_space<vmem>>, vector<1x10x8xf32>,
    %cst_48 = arith.constant 0.000000e+00 : f32
    %67 = vector.broadcast %cst_48 : f32 to vector<8x1x8xf32>
    %c1_49 = arith.constant 1 : index
    %c0_50 = arith.constant 0 : index
    %c0_51 = arith.constant 0 : index
    %68 = vector.load %arg11[%c1_49, %c0_50, %c0_51] : memref<18x18x16xf32, #tpu.memory_space<vmem>>, vector<8x1x8xf32>
    tpu.vector_store %arg11[%c1_49, %c0_50, %c0_51], %67 {strides = array<i32>} : memref<18x18x16xf32, #tpu.memory_space<vmem>>, vector<8x1x8xf32>,
    %cst_52 = arith.constant 0.000000e+00 : f32
    %69 = vector.broadcast %cst_52 : f32 to vector<8x1x8xf32>
    %c1_53 = arith.constant 1 : index
    %c9_54 = arith.constant 9 : index
    %c0_55 = arith.constant 0 : index
    %70 = vector.load %arg11[%c1_53, %c9_54, %c0_55] : memref<18x18x16xf32, #tpu.memory_space<vmem>>, vector<8x1x8xf32>
    tpu.vector_store %arg11[%c1_53, %c9_54, %c0_55], %69 {strides = array<i32>} : memref<18x18x16xf32, #tpu.memory_space<vmem>>, vector<8x1x8xf32>,
    %c1_56 = arith.constant 1 : index
    %c1_57 = arith.constant 1 : index
    %c0_58 = arith.constant 0 : index
    %71 = vector.load %arg11[%c1_56, %c1_57, %c0_58] : memref<18x18x16xf32, #tpu.memory_space<vmem>>, vector<8x8x8xf32>
    tpu.vector_store %arg11[%c1_56, %c1_57, %c0_58], %62 {strides = array<i32>} : memref<18x18x16xf32, #tpu.memory_space<vmem>>, vector<8x8x8xf32>,
    %c0_59 = arith.constant 0 : index
    %c0_60 = arith.constant 0 : index
    %c0_61 = arith.constant 0 : index
    %72 = vector.load %arg11[%c0_59, %c0_60, %c0_61] : memref<18x18x16xf32, #tpu.memory_space<vmem>>, vector<10x10x8xf32>
    %73 = vector.extract_strided_slice %72 {offsets = [0, 0, 0], sizes = [8, 8, 8], strides = [1, 1, 1]} : vector<10x10x8xf32> to vector<8x8x8xf32>
    %74 = vector.shape_cast %73 : vector<8x8x8xf32> to vector<64x8xf32>
    %c0_62 = arith.constant 0 : index
    %c0_63 = arith.constant 0 : index
    %75 = vector.load %arg12[%c0_62, %c0_63] : memref<256x144xf32, #tpu.memory_space<vmem>>, vector<64x8xf32>
    tpu.vector_store %arg12[%c0_62, %c0_63], %74 {strides = array<i32>} : memref<256x144xf32, #tpu.memory_space<vmem>>, vector<64x8xf32>,
    %76 = vector.extract_strided_slice %72 {offsets = [0, 1, 0], sizes = [8, 8, 8], strides = [1, 1, 1]} : vector<10x10x8xf32> to vector<8x8x8xf32>
    %77 = vector.shape_cast %76 : vector<8x8x8xf32> to vector<64x8xf32>
    %c0_64 = arith.constant 0 : index
    %c8 = arith.constant 8 : index
    %78 = vector.load %arg12[%c0_64, %c8] : memref<256x144xf32, #tpu.memory_space<vmem>>, vector<64x8xf32>
    tpu.vector_store %arg12[%c0_64, %c8], %77 {strides = array<i32>} : memref<256x144xf32, #tpu.memory_space<vmem>>, vector<64x8xf32>,
    %79 = vector.extract_strided_slice %72 {offsets = [0, 2, 0], sizes = [8, 8, 8], strides = [1, 1, 1]} : vector<10x10x8xf32> to vector<8x8x8xf32>
    %80 = vector.shape_cast %79 : vector<8x8x8xf32> to vector<64x8xf32>
    %c0_65 = arith.constant 0 : index
    %c16 = arith.constant 16 : index
    %81 = vector.load %arg12[%c0_65, %c16] : memref<256x144xf32, #tpu.memory_space<vmem>>, vector<64x8xf32>
    tpu.vector_store %arg12[%c0_65, %c16], %80 {strides = array<i32>} : memref<256x144xf32, #tpu.memory_space<vmem>>, vector<64x8xf32>,
    %82 = vector.extract_strided_slice %72 {offsets = [1, 0, 0], sizes = [8, 8, 8], strides = [1, 1, 1]} : vector<10x10x8xf32> to vector<8x8x8xf32>
    %83 = vector.shape_cast %82 : vector<8x8x8xf32> to vector<64x8xf32>
    %c0_66 = arith.constant 0 : index
    %c24_67 = arith.constant 24 : index
    %84 = vector.load %arg12[%c0_66, %c24_67] : memref<256x144xf32, #tpu.memory_space<vmem>>, vector<64x8xf32>
    tpu.vector_store %arg12[%c0_66, %c24_67], %83 {strides = array<i32>} : memref<256x144xf32, #tpu.memory_space<vmem>>, vector<64x8xf32>,
    %85 = vector.extract_strided_slice %72 {offsets = [1, 1, 0], sizes = [8, 8, 8], strides = [1, 1, 1]} : vector<10x10x8xf32> to vector<8x8x8xf32>
    %86 = vector.shape_cast %85 : vector<8x8x8xf32> to vector<64x8xf32>
    %c0_68 = arith.constant 0 : index
    %c32 = arith.constant 32 : index
    %87 = vector.load %arg12[%c0_68, %c32] : memref<256x144xf32, #tpu.memory_space<vmem>>, vector<64x8xf32>
    tpu.vector_store %arg12[%c0_68, %c32], %86 {strides = array<i32>} : memref<256x144xf32, #tpu.memory_space<vmem>>, vector<64x8xf32>,
    %88 = vector.extract_strided_slice %72 {offsets = [1, 2, 0], sizes = [8, 8, 8], strides = [1, 1, 1]} : vector<10x10x8xf32> to vector<8x8x8xf32>
    %89 = vector.shape_cast %88 : vector<8x8x8xf32> to vector<64x8xf32>
    %c0_69 = arith.constant 0 : index
    %c40 = arith.constant 40 : index
    %90 = vector.load %arg12[%c0_69, %c40] : memref<256x144xf32, #tpu.memory_space<vmem>>, vector<64x8xf32>
    tpu.vector_store %arg12[%c0_69, %c40], %89 {strides = array<i32>} : memref<256x144xf32, #tpu.memory_space<vmem>>, vector<64x8xf32>,
    %91 = vector.extract_strided_slice %72 {offsets = [2, 0, 0], sizes = [8, 8, 8], strides = [1, 1, 1]} : vector<10x10x8xf32> to vector<8x8x8xf32>
    %92 = vector.shape_cast %91 : vector<8x8x8xf32> to vector<64x8xf32>
    %c0_70 = arith.constant 0 : index
    %c48 = arith.constant 48 : index
    %93 = vector.load %arg12[%c0_70, %c48] : memref<256x144xf32, #tpu.memory_space<vmem>>, vector<64x8xf32>
    tpu.vector_store %arg12[%c0_70, %c48], %92 {strides = array<i32>} : memref<256x144xf32, #tpu.memory_space<vmem>>, vector<64x8xf32>,
    %94 = vector.extract_strided_slice %72 {offsets = [2, 1, 0], sizes = [8, 8, 8], strides = [1, 1, 1]} : vector<10x10x8xf32> to vector<8x8x8xf32>
    %95 = vector.shape_cast %94 : vector<8x8x8xf32> to vector<64x8xf32>
    %c0_71 = arith.constant 0 : index
    %c56 = arith.constant 56 : index
    %96 = vector.load %arg12[%c0_71, %c56] : memref<256x144xf32, #tpu.memory_space<vmem>>, vector<64x8xf32>
    tpu.vector_store %arg12[%c0_71, %c56], %95 {strides = array<i32>} : memref<256x144xf32, #tpu.memory_space<vmem>>, vector<64x8xf32>,
    %97 = vector.extract_strided_slice %72 {offsets = [2, 2, 0], sizes = [8, 8, 8], strides = [1, 1, 1]} : vector<10x10x8xf32> to vector<8x8x8xf32>
    %98 = vector.shape_cast %97 : vector<8x8x8xf32> to vector<64x8xf32>
    %c0_72 = arith.constant 0 : index
    %c64 = arith.constant 64 : index
    %99 = vector.load %arg12[%c0_72, %c64] : memref<256x144xf32, #tpu.memory_space<vmem>>, vector<64x8xf32>
    tpu.vector_store %arg12[%c0_72, %c64], %98 {strides = array<i32>} : memref<256x144xf32, #tpu.memory_space<vmem>>, vector<64x8xf32>,
    %c0_73 = arith.constant 0 : index
    %c0_74 = arith.constant 0 : index
    %100 = vector.load %arg12[%c0_73, %c0_74] : memref<256x144xf32, #tpu.memory_space<vmem>>, vector<64x72xf32>
    %101 = arith.truncf %100 : vector<64x72xf32> to vector<64x72xbf16>
    %c0_75 = arith.constant 0 : index
    %c0_76 = arith.constant 0 : index
    %102 = vector.load %arg4[%c0_75, %c0_76] : memref<72x16xbf16, #tpu.memory_space<vmem>>, vector<72x16xbf16>
    %cst_77 = arith.constant dense<0.000000e+00> : vector<64x16xf32>
    %103 = tpu.matmul %101, %102, %cst_77 {dimension_numbers = #tpu.dot_dimension_numbers<[1], [0], [0], [1], [0, 0, 1, 1], [], []>} : vector<64x72xbf16>, vector<72x16xbf16>, vector<64x16xf32> -> vector<64x16xf32>
    %c0_78 = arith.constant 0 : index
    %c0_79 = arith.constant 0 : index
    %104 = vector.load %arg5[%c0_78, %c0_79] : memref<1x16xf32, #tpu.memory_space<vmem>>, vector<1x16xf32>
    %105 = vector.shape_cast %104 : vector<1x16xf32> to vector<16xf32>
    %106 = vector.shape_cast %105 : vector<16xf32> to vector<1x16xf32>
    %107 = vector.broadcast %106 : vector<1x16xf32> to vector<64x16xf32>
    %108 = arith.addf %103, %107 : vector<64x16xf32>
    %cst_80 = arith.constant 0.000000e+00 : f32
    %109 = vector.broadcast %cst_80 : f32 to vector<64x16xf32>
    %110 = arith.maximumf %108, %109 : vector<64x16xf32>
    %111 = vector.shape_cast %110 : vector<64x16xf32> to vector<8x8x16xf32>
    %cst_81 = arith.constant 0.000000e+00 : f32
    %112 = vector.broadcast %cst_81 : f32 to vector<1x10x16xf32>
    %c0_82 = arith.constant 0 : index
    %c0_83 = arith.constant 0 : index
    %c0_84 = arith.constant 0 : index
    %113 = vector.load %arg11[%c0_82, %c0_83, %c0_84] : memref<18x18x16xf32, #tpu.memory_space<vmem>>, vector<1x10x16xf32>
    tpu.vector_store %arg11[%c0_82, %c0_83, %c0_84], %112 {strides = array<i32>} : memref<18x18x16xf32, #tpu.memory_space<vmem>>, vector<1x10x16xf32>,
    %cst_85 = arith.constant 0.000000e+00 : f32
    %114 = vector.broadcast %cst_85 : f32 to vector<1x10x16xf32>
    %c9_86 = arith.constant 9 : index
    %c0_87 = arith.constant 0 : index
    %c0_88 = arith.constant 0 : index
    %115 = vector.load %arg11[%c9_86, %c0_87, %c0_88] : memref<18x18x16xf32, #tpu.memory_space<vmem>>, vector<1x10x16xf32>
    tpu.vector_store %arg11[%c9_86, %c0_87, %c0_88], %114 {strides = array<i32>} : memref<18x18x16xf32, #tpu.memory_space<vmem>>, vector<1x10x16xf32>,
    %cst_89 = arith.constant 0.000000e+00 : f32
    %116 = vector.broadcast %cst_89 : f32 to vector<8x1x16xf32>
    %c1_90 = arith.constant 1 : index
    %c0_91 = arith.constant 0 : index
    %c0_92 = arith.constant 0 : index
    %117 = vector.load %arg11[%c1_90, %c0_91, %c0_92] : memref<18x18x16xf32, #tpu.memory_space<vmem>>, vector<8x1x16xf32>
    tpu.vector_store %arg11[%c1_90, %c0_91, %c0_92], %116 {strides = array<i32>} : memref<18x18x16xf32, #tpu.memory_space<vmem>>, vector<8x1x16xf32>,
    %cst_93 = arith.constant 0.000000e+00 : f32
    %118 = vector.broadcast %cst_93 : f32 to vector<8x1x16xf32>
    %c1_94 = arith.constant 1 : index
    %c9_95 = arith.constant 9 : index
    %c0_96 = arith.constant 0 : index
    %119 = vector.load %arg11[%c1_94, %c9_95, %c0_96] : memref<18x18x16xf32, #tpu.memory_space<vmem>>, vector<8x1x16xf32>
    tpu.vector_store %arg11[%c1_94, %c9_95, %c0_96], %118 {strides = array<i32>} : memref<18x18x16xf32, #tpu.memory_space<vmem>>, vector<8x1x16xf32>,
    %c1_97 = arith.constant 1 : index
    %c1_98 = arith.constant 1 : index
    %c0_99 = arith.constant 0 : index
    %120 = vector.load %arg11[%c1_97, %c1_98, %c0_99] : memref<18x18x16xf32, #tpu.memory_space<vmem>>, vector<8x8x16xf32>
    tpu.vector_store %arg11[%c1_97, %c1_98, %c0_99], %111 {strides = array<i32>} : memref<18x18x16xf32, #tpu.memory_space<vmem>>, vector<8x8x16xf32>,
    %c0_100 = arith.constant 0 : index
    %c0_101 = arith.constant 0 : index
    %c0_102 = arith.constant 0 : index
    %121 = vector.load %arg11[%c0_100, %c0_101, %c0_102] : memref<18x18x16xf32, #tpu.memory_space<vmem>>, vector<10x10x16xf32>
    %122 = vector.extract_strided_slice %121 {offsets = [0, 0, 0], sizes = [8, 8, 16], strides = [1, 1, 1]} : vector<10x10x16xf32> to vector<8x8x16xf32>
    %123 = vector.shape_cast %122 : vector<8x8x16xf32> to vector<64x16xf32>
    %c0_103 = arith.constant 0 : index
    %c0_104 = arith.constant 0 : index
    %124 = vector.load %arg12[%c0_103, %c0_104] : memref<256x144xf32, #tpu.memory_space<vmem>>, vector<64x16xf32>
    tpu.vector_store %arg12[%c0_103, %c0_104], %123 {strides = array<i32>} : memref<256x144xf32, #tpu.memory_space<vmem>>, vector<64x16xf32>,
    %125 = vector.extract_strided_slice %121 {offsets = [0, 1, 0], sizes = [8, 8, 16], strides = [1, 1, 1]} : vector<10x10x16xf32> to vector<8x8x16xf32>
    %126 = vector.shape_cast %125 : vector<8x8x16xf32> to vector<64x16xf32>
    %c0_105 = arith.constant 0 : index
    %c16_106 = arith.constant 16 : index
    %127 = vector.load %arg12[%c0_105, %c16_106] : memref<256x144xf32, #tpu.memory_space<vmem>>, vector<64x16xf32>
    tpu.vector_store %arg12[%c0_105, %c16_106], %126 {strides = array<i32>} : memref<256x144xf32, #tpu.memory_space<vmem>>, vector<64x16xf32>,
    %128 = vector.extract_strided_slice %121 {offsets = [0, 2, 0], sizes = [8, 8, 16], strides = [1, 1, 1]} : vector<10x10x16xf32> to vector<8x8x16xf32>
    %129 = vector.shape_cast %128 : vector<8x8x16xf32> to vector<64x16xf32>
    %c0_107 = arith.constant 0 : index
    %c32_108 = arith.constant 32 : index
    %130 = vector.load %arg12[%c0_107, %c32_108] : memref<256x144xf32, #tpu.memory_space<vmem>>, vector<64x16xf32>
    tpu.vector_store %arg12[%c0_107, %c32_108], %129 {strides = array<i32>} : memref<256x144xf32, #tpu.memory_space<vmem>>, vector<64x16xf32>,
    %131 = vector.extract_strided_slice %121 {offsets = [1, 0, 0], sizes = [8, 8, 16], strides = [1, 1, 1]} : vector<10x10x16xf32> to vector<8x8x16xf32>
    %132 = vector.shape_cast %131 : vector<8x8x16xf32> to vector<64x16xf32>
    %c0_109 = arith.constant 0 : index
    %c48_110 = arith.constant 48 : index
    %133 = vector.load %arg12[%c0_109, %c48_110] : memref<256x144xf32, #tpu.memory_space<vmem>>, vector<64x16xf32>
    tpu.vector_store %arg12[%c0_109, %c48_110], %132 {strides = array<i32>} : memref<256x144xf32, #tpu.memory_space<vmem>>, vector<64x16xf32>,
    %134 = vector.extract_strided_slice %121 {offsets = [1, 1, 0], sizes = [8, 8, 16], strides = [1, 1, 1]} : vector<10x10x16xf32> to vector<8x8x16xf32>
    %135 = vector.shape_cast %134 : vector<8x8x16xf32> to vector<64x16xf32>
    %c0_111 = arith.constant 0 : index
    %c64_112 = arith.constant 64 : index
    %136 = vector.load %arg12[%c0_111, %c64_112] : memref<256x144xf32, #tpu.memory_space<vmem>>, vector<64x16xf32>
    tpu.vector_store %arg12[%c0_111, %c64_112], %135 {strides = array<i32>} : memref<256x144xf32, #tpu.memory_space<vmem>>, vector<64x16xf32>,
    %137 = vector.extract_strided_slice %121 {offsets = [1, 2, 0], sizes = [8, 8, 16], strides = [1, 1, 1]} : vector<10x10x16xf32> to vector<8x8x16xf32>
    %138 = vector.shape_cast %137 : vector<8x8x16xf32> to vector<64x16xf32>
    %c0_113 = arith.constant 0 : index
    %c80 = arith.constant 80 : index
    %139 = vector.load %arg12[%c0_113, %c80] : memref<256x144xf32, #tpu.memory_space<vmem>>, vector<64x16xf32>
    tpu.vector_store %arg12[%c0_113, %c80], %138 {strides = array<i32>} : memref<256x144xf32, #tpu.memory_space<vmem>>, vector<64x16xf32>,
    %140 = vector.extract_strided_slice %121 {offsets = [2, 0, 0], sizes = [8, 8, 16], strides = [1, 1, 1]} : vector<10x10x16xf32> to vector<8x8x16xf32>
    %141 = vector.shape_cast %140 : vector<8x8x16xf32> to vector<64x16xf32>
    %c0_114 = arith.constant 0 : index
    %c96 = arith.constant 96 : index
    %142 = vector.load %arg12[%c0_114, %c96] : memref<256x144xf32, #tpu.memory_space<vmem>>, vector<64x16xf32>
    tpu.vector_store %arg12[%c0_114, %c96], %141 {strides = array<i32>} : memref<256x144xf32, #tpu.memory_space<vmem>>, vector<64x16xf32>,
    %143 = vector.extract_strided_slice %121 {offsets = [2, 1, 0], sizes = [8, 8, 16], strides = [1, 1, 1]} : vector<10x10x16xf32> to vector<8x8x16xf32>
    %144 = vector.shape_cast %143 : vector<8x8x16xf32> to vector<64x16xf32>
    %c0_115 = arith.constant 0 : index
    %c112 = arith.constant 112 : index
    %145 = vector.load %arg12[%c0_115, %c112] : memref<256x144xf32, #tpu.memory_space<vmem>>, vector<64x16xf32>
    tpu.vector_store %arg12[%c0_115, %c112], %144 {strides = array<i32>} : memref<256x144xf32, #tpu.memory_space<vmem>>, vector<64x16xf32>,
    %146 = vector.extract_strided_slice %121 {offsets = [2, 2, 0], sizes = [8, 8, 16], strides = [1, 1, 1]} : vector<10x10x16xf32> to vector<8x8x16xf32>
    %147 = vector.shape_cast %146 : vector<8x8x16xf32> to vector<64x16xf32>
    %c0_116 = arith.constant 0 : index
    %c128 = arith.constant 128 : index
    %148 = vector.load %arg12[%c0_116, %c128] : memref<256x144xf32, #tpu.memory_space<vmem>>, vector<64x16xf32>
    tpu.vector_store %arg12[%c0_116, %c128], %147 {strides = array<i32>} : memref<256x144xf32, #tpu.memory_space<vmem>>, vector<64x16xf32>,
    %c0_117 = arith.constant 0 : index
    %c0_118 = arith.constant 0 : index
    %149 = vector.load %arg12[%c0_117, %c0_118] : memref<256x144xf32, #tpu.memory_space<vmem>>, vector<64x144xf32>
    %150 = arith.truncf %149 : vector<64x144xf32> to vector<64x144xbf16>
    %c0_119 = arith.constant 0 : index
    %c0_120 = arith.constant 0 : index
    %151 = vector.load %arg6[%c0_119, %c0_120] : memref<144x16xbf16, #tpu.memory_space<vmem>>, vector<144x16xbf16>
    %cst_121 = arith.constant dense<0.000000e+00> : vector<64x16xf32>
    %152 = tpu.matmul %150, %151, %cst_121 {dimension_numbers = #tpu.dot_dimension_numbers<[1], [0], [0], [1], [0, 0, 1, 1], [], []>} : vector<64x144xbf16>, vector<144x16xbf16>, vector<64x16xf32> -> vector<64x16xf32>
    %c0_122 = arith.constant 0 : index
    %c0_123 = arith.constant 0 : index
    %153 = vector.load %arg7[%c0_122, %c0_123] : memref<1x16xf32, #tpu.memory_space<vmem>>, vector<1x16xf32>
    %154 = vector.shape_cast %153 : vector<1x16xf32> to vector<16xf32>
    %155 = vector.shape_cast %154 : vector<16xf32> to vector<1x16xf32>
    %156 = vector.broadcast %155 : vector<1x16xf32> to vector<64x16xf32>
    %157 = arith.addf %152, %156 : vector<64x16xf32>
    %cst_124 = arith.constant 0.000000e+00 : f32
    %158 = vector.broadcast %cst_124 : f32 to vector<64x16xf32>
    %159 = arith.maximumf %157, %158 : vector<64x16xf32>
    %160 = vector.shape_cast %159 : vector<64x16xf32> to vector<8x8x16xf32>
    %161 = vector.shape_cast %160 : vector<8x8x16xf32> to vector<4x2x8x16xf32>
    %162 = vector.extract_strided_slice %161 {offsets = [0, 0, 0, 0], sizes = [4, 1, 8, 16], strides = [1, 1, 1, 1]} : vector<4x2x8x16xf32> to vector<4x1x8x16xf32>
    %163 = vector.shape_cast %162 : vector<4x1x8x16xf32> to vector<4x8x16xf32>
    %164 = vector.extract_strided_slice %161 {offsets = [0, 1, 0, 0], sizes = [4, 1, 8, 16], strides = [1, 1, 1, 1]} : vector<4x2x8x16xf32> to vector<4x1x8x16xf32>
    %165 = vector.shape_cast %164 : vector<4x1x8x16xf32> to vector<4x8x16xf32>
    %166 = arith.maximumf %163, %165 : vector<4x8x16xf32>
    %167 = vector.shape_cast %166 : vector<4x8x16xf32> to vector<4x4x2x16xf32>
    %168 = vector.extract_strided_slice %167 {offsets = [0, 0, 0, 0], sizes = [4, 4, 1, 16], strides = [1, 1, 1, 1]} : vector<4x4x2x16xf32> to vector<4x4x1x16xf32>
    %169 = vector.shape_cast %168 : vector<4x4x1x16xf32> to vector<4x4x16xf32>
    %170 = vector.extract_strided_slice %167 {offsets = [0, 0, 1, 0], sizes = [4, 4, 1, 16], strides = [1, 1, 1, 1]} : vector<4x4x2x16xf32> to vector<4x4x1x16xf32>
    %171 = vector.shape_cast %170 : vector<4x4x1x16xf32> to vector<4x4x16xf32>
    %172 = arith.maximumf %169, %171 : vector<4x4x16xf32>
    %cst_125 = arith.constant 0.000000e+00 : f32
    %173 = vector.broadcast %cst_125 : f32 to vector<1x6x16xf32>
    %c0_126 = arith.constant 0 : index
    %c0_127 = arith.constant 0 : index
    %c0_128 = arith.constant 0 : index
    %174 = vector.load %arg11[%c0_126, %c0_127, %c0_128] : memref<18x18x16xf32, #tpu.memory_space<vmem>>, vector<1x6x16xf32>
    tpu.vector_store %arg11[%c0_126, %c0_127, %c0_128], %173 {strides = array<i32>} : memref<18x18x16xf32, #tpu.memory_space<vmem>>, vector<1x6x16xf32>,
    %cst_129 = arith.constant 0.000000e+00 : f32
    %175 = vector.broadcast %cst_129 : f32 to vector<1x6x16xf32>
    %c5 = arith.constant 5 : index
    %c0_130 = arith.constant 0 : index
    %c0_131 = arith.constant 0 : index
    %176 = vector.load %arg11[%c5, %c0_130, %c0_131] : memref<18x18x16xf32, #tpu.memory_space<vmem>>, vector<1x6x16xf32>
    tpu.vector_store %arg11[%c5, %c0_130, %c0_131], %175 {strides = array<i32>} : memref<18x18x16xf32, #tpu.memory_space<vmem>>, vector<1x6x16xf32>,
    %cst_132 = arith.constant 0.000000e+00 : f32
    %177 = vector.broadcast %cst_132 : f32 to vector<4x1x16xf32>
    %c1_133 = arith.constant 1 : index
    %c0_134 = arith.constant 0 : index
    %c0_135 = arith.constant 0 : index
    %178 = vector.load %arg11[%c1_133, %c0_134, %c0_135] : memref<18x18x16xf32, #tpu.memory_space<vmem>>, vector<4x1x16xf32>
    tpu.vector_store %arg11[%c1_133, %c0_134, %c0_135], %177 {strides = array<i32>} : memref<18x18x16xf32, #tpu.memory_space<vmem>>, vector<4x1x16xf32>,
    %cst_136 = arith.constant 0.000000e+00 : f32
    %179 = vector.broadcast %cst_136 : f32 to vector<4x1x16xf32>
    %c1_137 = arith.constant 1 : index
    %c5_138 = arith.constant 5 : index
    %c0_139 = arith.constant 0 : index
    %180 = vector.load %arg11[%c1_137, %c5_138, %c0_139] : memref<18x18x16xf32, #tpu.memory_space<vmem>>, vector<4x1x16xf32>
    tpu.vector_store %arg11[%c1_137, %c5_138, %c0_139], %179 {strides = array<i32>} : memref<18x18x16xf32, #tpu.memory_space<vmem>>, vector<4x1x16xf32>,
    %c1_140 = arith.constant 1 : index
    %c1_141 = arith.constant 1 : index
    %c0_142 = arith.constant 0 : index
    %181 = vector.load %arg11[%c1_140, %c1_141, %c0_142] : memref<18x18x16xf32, #tpu.memory_space<vmem>>, vector<4x4x16xf32>
    tpu.vector_store %arg11[%c1_140, %c1_141, %c0_142], %172 {strides = array<i32>} : memref<18x18x16xf32, #tpu.memory_space<vmem>>, vector<4x4x16xf32>,
    %c0_143 = arith.constant 0 : index
    %c0_144 = arith.constant 0 : index
    %c0_145 = arith.constant 0 : index
    %182 = vector.load %arg11[%c0_143, %c0_144, %c0_145] : memref<18x18x16xf32, #tpu.memory_space<vmem>>, vector<6x6x16xf32>
    %183 = vector.extract_strided_slice %182 {offsets = [0, 0, 0], sizes = [4, 4, 16], strides = [1, 1, 1]} : vector<6x6x16xf32> to vector<4x4x16xf32>
    %184 = vector.shape_cast %183 : vector<4x4x16xf32> to vector<16x16xf32>
    %c0_146 = arith.constant 0 : index
    %c0_147 = arith.constant 0 : index
    %185 = vector.load %arg12[%c0_146, %c0_147] : memref<256x144xf32, #tpu.memory_space<vmem>>, vector<16x16xf32>
    tpu.vector_store %arg12[%c0_146, %c0_147], %184 {strides = array<i32>} : memref<256x144xf32, #tpu.memory_space<vmem>>, vector<16x16xf32>,
    %186 = vector.extract_strided_slice %182 {offsets = [0, 1, 0], sizes = [4, 4, 16], strides = [1, 1, 1]} : vector<6x6x16xf32> to vector<4x4x16xf32>
    %187 = vector.shape_cast %186 : vector<4x4x16xf32> to vector<16x16xf32>
    %c0_148 = arith.constant 0 : index
    %c16_149 = arith.constant 16 : index
    %188 = vector.load %arg12[%c0_148, %c16_149] : memref<256x144xf32, #tpu.memory_space<vmem>>, vector<16x16xf32>
    tpu.vector_store %arg12[%c0_148, %c16_149], %187 {strides = array<i32>} : memref<256x144xf32, #tpu.memory_space<vmem>>, vector<16x16xf32>,
    %189 = vector.extract_strided_slice %182 {offsets = [0, 2, 0], sizes = [4, 4, 16], strides = [1, 1, 1]} : vector<6x6x16xf32> to vector<4x4x16xf32>
    %190 = vector.shape_cast %189 : vector<4x4x16xf32> to vector<16x16xf32>
    %c0_150 = arith.constant 0 : index
    %c32_151 = arith.constant 32 : index
    %191 = vector.load %arg12[%c0_150, %c32_151] : memref<256x144xf32, #tpu.memory_space<vmem>>, vector<16x16xf32>
    tpu.vector_store %arg12[%c0_150, %c32_151], %190 {strides = array<i32>} : memref<256x144xf32, #tpu.memory_space<vmem>>, vector<16x16xf32>,
    %192 = vector.extract_strided_slice %182 {offsets = [1, 0, 0], sizes = [4, 4, 16], strides = [1, 1, 1]} : vector<6x6x16xf32> to vector<4x4x16xf32>
    %193 = vector.shape_cast %192 : vector<4x4x16xf32> to vector<16x16xf32>
    %c0_152 = arith.constant 0 : index
    %c48_153 = arith.constant 48 : index
    %194 = vector.load %arg12[%c0_152, %c48_153] : memref<256x144xf32, #tpu.memory_space<vmem>>, vector<16x16xf32>
    tpu.vector_store %arg12[%c0_152, %c48_153], %193 {strides = array<i32>} : memref<256x144xf32, #tpu.memory_space<vmem>>, vector<16x16xf32>,
    %195 = vector.extract_strided_slice %182 {offsets = [1, 1, 0], sizes = [4, 4, 16], strides = [1, 1, 1]} : vector<6x6x16xf32> to vector<4x4x16xf32>
    %196 = vector.shape_cast %195 : vector<4x4x16xf32> to vector<16x16xf32>
    %c0_154 = arith.constant 0 : index
    %c64_155 = arith.constant 64 : index
    %197 = vector.load %arg12[%c0_154, %c64_155] : memref<256x144xf32, #tpu.memory_space<vmem>>, vector<16x16xf32>
    tpu.vector_store %arg12[%c0_154, %c64_155], %196 {strides = array<i32>} : memref<256x144xf32, #tpu.memory_space<vmem>>, vector<16x16xf32>,
    %198 = vector.extract_strided_slice %182 {offsets = [1, 2, 0], sizes = [4, 4, 16], strides = [1, 1, 1]} : vector<6x6x16xf32> to vector<4x4x16xf32>
    %199 = vector.shape_cast %198 : vector<4x4x16xf32> to vector<16x16xf32>
    %c0_156 = arith.constant 0 : index
    %c80_157 = arith.constant 80 : index
    %200 = vector.load %arg12[%c0_156, %c80_157] : memref<256x144xf32, #tpu.memory_space<vmem>>, vector<16x16xf32>
    tpu.vector_store %arg12[%c0_156, %c80_157], %199 {strides = array<i32>} : memref<256x144xf32, #tpu.memory_space<vmem>>, vector<16x16xf32>,
    %201 = vector.extract_strided_slice %182 {offsets = [2, 0, 0], sizes = [4, 4, 16], strides = [1, 1, 1]} : vector<6x6x16xf32> to vector<4x4x16xf32>
    %202 = vector.shape_cast %201 : vector<4x4x16xf32> to vector<16x16xf32>
    %c0_158 = arith.constant 0 : index
    %c96_159 = arith.constant 96 : index
    %203 = vector.load %arg12[%c0_158, %c96_159] : memref<256x144xf32, #tpu.memory_space<vmem>>, vector<16x16xf32>
    tpu.vector_store %arg12[%c0_158, %c96_159], %202 {strides = array<i32>} : memref<256x144xf32, #tpu.memory_space<vmem>>, vector<16x16xf32>,
    %204 = vector.extract_strided_slice %182 {offsets = [2, 1, 0], sizes = [4, 4, 16], strides = [1, 1, 1]} : vector<6x6x16xf32> to vector<4x4x16xf32>
    %205 = vector.shape_cast %204 : vector<4x4x16xf32> to vector<16x16xf32>
    %c0_160 = arith.constant 0 : index
    %c112_161 = arith.constant 112 : index
    %206 = vector.load %arg12[%c0_160, %c112_161] : memref<256x144xf32, #tpu.memory_space<vmem>>, vector<16x16xf32>
    tpu.vector_store %arg12[%c0_160, %c112_161], %205 {strides = array<i32>} : memref<256x144xf32, #tpu.memory_space<vmem>>, vector<16x16xf32>,
    %207 = vector.extract_strided_slice %182 {offsets = [2, 2, 0], sizes = [4, 4, 16], strides = [1, 1, 1]} : vector<6x6x16xf32> to vector<4x4x16xf32>
    %208 = vector.shape_cast %207 : vector<4x4x16xf32> to vector<16x16xf32>
    %c0_162 = arith.constant 0 : index
    %c128_163 = arith.constant 128 : index
    %209 = vector.load %arg12[%c0_162, %c128_163] : memref<256x144xf32, #tpu.memory_space<vmem>>, vector<16x16xf32>
    tpu.vector_store %arg12[%c0_162, %c128_163], %208 {strides = array<i32>} : memref<256x144xf32, #tpu.memory_space<vmem>>, vector<16x16xf32>,
    %c0_164 = arith.constant 0 : index
    %c0_165 = arith.constant 0 : index
    %210 = vector.load %arg12[%c0_164, %c0_165] : memref<256x144xf32, #tpu.memory_space<vmem>>, vector<16x144xf32>
    %211 = arith.truncf %210 : vector<16x144xf32> to vector<16x144xbf16>
    %c0_166 = arith.constant 0 : index
    %c0_167 = arith.constant 0 : index
    %212 = vector.load %arg8[%c0_166, %c0_167] : memref<144x32xbf16, #tpu.memory_space<vmem>>, vector<144x32xbf16>
    %cst_168 = arith.constant dense<0.000000e+00> : vector<16x32xf32>
    %213 = tpu.matmul %211, %212, %cst_168 {dimension_numbers = #tpu.dot_dimension_numbers<[1], [0], [0], [1], [0, 0, 1, 1], [], []>} : vector<16x144xbf16>, vector<144x32xbf16>, vector<16x32xf32> -> vector<16x32xf32>
    %c0_169 = arith.constant 0 : index
    %c0_170 = arith.constant 0 : index
    %214 = vector.load %arg9[%c0_169, %c0_170] : memref<1x32xf32, #tpu.memory_space<vmem>>, vector<1x32xf32>
    %215 = vector.shape_cast %214 : vector<1x32xf32> to vector<32xf32>
    %216 = vector.shape_cast %215 : vector<32xf32> to vector<1x32xf32>
    %217 = vector.broadcast %216 : vector<1x32xf32> to vector<16x32xf32>
    %218 = arith.addf %213, %217 : vector<16x32xf32>
    %cst_171 = arith.constant 0.000000e+00 : f32
    %219 = vector.broadcast %cst_171 : f32 to vector<16x32xf32>
    %220 = arith.maximumf %218, %219 : vector<16x32xf32>
    %221 = vector.shape_cast %220 : vector<16x32xf32> to vector<4x4x32xf32>
    %222 = vector.shape_cast %221 : vector<4x4x32xf32> to vector<2x2x4x32xf32>
    %223 = vector.extract_strided_slice %222 {offsets = [0, 0, 0, 0], sizes = [2, 1, 4, 32], strides = [1, 1, 1, 1]} : vector<2x2x4x32xf32> to vector<2x1x4x32xf32>
    %224 = vector.shape_cast %223 : vector<2x1x4x32xf32> to vector<2x4x32xf32>
    %225 = vector.extract_strided_slice %222 {offsets = [0, 1, 0, 0], sizes = [2, 1, 4, 32], strides = [1, 1, 1, 1]} : vector<2x2x4x32xf32> to vector<2x1x4x32xf32>
    %226 = vector.shape_cast %225 : vector<2x1x4x32xf32> to vector<2x4x32xf32>
    %227 = arith.maximumf %224, %226 : vector<2x4x32xf32>
    %228 = vector.shape_cast %227 : vector<2x4x32xf32> to vector<2x2x2x32xf32>
    %229 = vector.extract_strided_slice %228 {offsets = [0, 0, 0, 0], sizes = [2, 2, 1, 32], strides = [1, 1, 1, 1]} : vector<2x2x2x32xf32> to vector<2x2x1x32xf32>
    %230 = vector.shape_cast %229 : vector<2x2x1x32xf32> to vector<2x2x32xf32>
    %231 = vector.extract_strided_slice %228 {offsets = [0, 0, 1, 0], sizes = [2, 2, 1, 32], strides = [1, 1, 1, 1]} : vector<2x2x2x32xf32> to vector<2x2x1x32xf32>
    %232 = vector.shape_cast %231 : vector<2x2x1x32xf32> to vector<2x2x32xf32>
    %233 = arith.maximumf %230, %232 : vector<2x2x32xf32>
    %234 = vector.shape_cast %233 : vector<2x2x32xf32> to vector<4x32xf32>
    %235 = vector.extract_strided_slice %234 {offsets = [0, 0], sizes = [1, 32], strides = [1, 1]} : vector<4x32xf32> to vector<1x32xf32>
    %c0_172 = arith.constant 0 : index
    %c0_173 = arith.constant 0 : index
    %c0_174 = arith.constant 0 : index
    %236 = vector.load %arg10[%c0_172, %c0_173, %c0_174] : memref<1x1x128xf32, #tpu.memory_space<vmem>>, vector<1x1x32xf32>
    %237 = vector.shape_cast %236 : vector<1x1x32xf32> to vector<1x32xf32>
    %238 = vector.shape_cast %235 : vector<1x32xf32> to vector<1x1x32xf32>
    tpu.vector_store %arg10[%c0_172, %c0_173, %c0_174], %238 {strides = array<i32>} : memref<1x1x128xf32, #tpu.memory_space<vmem>>, vector<1x1x32xf32>,
    %239 = vector.extract_strided_slice %234 {offsets = [1, 0], sizes = [1, 32], strides = [1, 1]} : vector<4x32xf32> to vector<1x32xf32>
    %c0_175 = arith.constant 0 : index
    %c0_176 = arith.constant 0 : index
    %c32_177 = arith.constant 32 : index
    %240 = vector.load %arg10[%c0_175, %c0_176, %c32_177] : memref<1x1x128xf32, #tpu.memory_space<vmem>>, vector<1x1x32xf32>
    %241 = vector.shape_cast %240 : vector<1x1x32xf32> to vector<1x32xf32>
    %242 = vector.shape_cast %239 : vector<1x32xf32> to vector<1x1x32xf32>
    tpu.vector_store %arg10[%c0_175, %c0_176, %c32_177], %242 {strides = array<i32>} : memref<1x1x128xf32, #tpu.memory_space<vmem>>, vector<1x1x32xf32>,
    %243 = vector.extract_strided_slice %234 {offsets = [2, 0], sizes = [1, 32], strides = [1, 1]} : vector<4x32xf32> to vector<1x32xf32>
    %c0_178 = arith.constant 0 : index
    %c0_179 = arith.constant 0 : index
    %c64_180 = arith.constant 64 : index
    %244 = vector.load %arg10[%c0_178, %c0_179, %c64_180] : memref<1x1x128xf32, #tpu.memory_space<vmem>>, vector<1x1x32xf32>
    %245 = vector.shape_cast %244 : vector<1x1x32xf32> to vector<1x32xf32>
    %246 = vector.shape_cast %243 : vector<1x32xf32> to vector<1x1x32xf32>
    tpu.vector_store %arg10[%c0_178, %c0_179, %c64_180], %246 {strides = array<i32>} : memref<1x1x128xf32, #tpu.memory_space<vmem>>, vector<1x1x32xf32>,
    %247 = vector.extract_strided_slice %234 {offsets = [3, 0], sizes = [1, 32], strides = [1, 1]} : vector<4x32xf32> to vector<1x32xf32>
    %c0_181 = arith.constant 0 : index
    %c0_182 = arith.constant 0 : index
    %c96_183 = arith.constant 96 : index
    %248 = vector.load %arg10[%c0_181, %c0_182, %c96_183] : memref<1x1x128xf32, #tpu.memory_space<vmem>>, vector<1x1x32xf32>
    %249 = vector.shape_cast %248 : vector<1x1x32xf32> to vector<1x32xf32>
    %250 = vector.shape_cast %247 : vector<1x32xf32> to vector<1x1x32xf32>
    tpu.vector_store %arg10[%c0_181, %c0_182, %c96_183], %250 {strides = array<i32>} : memref<1x1x128xf32, #tpu.memory_space<vmem>>, vector<1x1x32xf32>,
    return
  }
  func.func @transform_0(%arg0: i32) -> (i32, i32, i32, i32) {
    %c0_i32 = arith.constant 0 : i32
    %c0_i32_0 = arith.constant 0 : i32
    %c0_i32_1 = arith.constant 0 : i32
    %c0_i32_2 = arith.constant 0 : i32
    return %arg0, %c0_i32, %c0_i32_0, %c0_i32_1 : i32, i32, i32, i32
  }
  func.func @transform_1(%arg0: i32) -> (i32, i32) {
    %c0_i32 = arith.constant 0 : i32
    %c0_i32_0 = arith.constant 0 : i32
    %c0_i32_1 = arith.constant 0 : i32
    return %c0_i32, %c0_i32_0 : i32, i32
  }
  func.func @transform_2(%arg0: i32) -> (i32, i32) {
    %c0_i32 = arith.constant 0 : i32
    %c0_i32_0 = arith.constant 0 : i32
    %c0_i32_1 = arith.constant 0 : i32
    return %c0_i32, %c0_i32_0 : i32, i32
  }
  func.func @transform_3(%arg0: i32) -> (i32, i32) {
    %c0_i32 = arith.constant 0 : i32
    %c0_i32_0 = arith.constant 0 : i32
    %c0_i32_1 = arith.constant 0 : i32
    return %c0_i32, %c0_i32_0 : i32, i32
  }
  func.func @transform_4(%arg0: i32) -> (i32, i32) {
    %c0_i32 = arith.constant 0 : i32
    %c0_i32_0 = arith.constant 0 : i32
    %c0_i32_1 = arith.constant 0 : i32
    return %c0_i32, %c0_i32_0 : i32, i32
  }
  func.func @transform_5(%arg0: i32) -> (i32, i32) {
    %c0_i32 = arith.constant 0 : i32
    %c0_i32_0 = arith.constant 0 : i32
    %c0_i32_1 = arith.constant 0 : i32
    return %c0_i32, %c0_i32_0 : i32, i32
  }
  func.func @transform_6(%arg0: i32) -> (i32, i32) {
    %c0_i32 = arith.constant 0 : i32
    %c0_i32_0 = arith.constant 0 : i32
    %c0_i32_1 = arith.constant 0 : i32
    return %c0_i32, %c0_i32_0 : i32, i32
  }
  func.func @transform_7(%arg0: i32) -> (i32, i32) {
    %c0_i32 = arith.constant 0 : i32
    %c0_i32_0 = arith.constant 0 : i32
    %c0_i32_1 = arith.constant 0 : i32
    return %c0_i32, %c0_i32_0 : i32, i32
  }
  func.func @transform_8(%arg0: i32) -> (i32, i32) {
    %c0_i32 = arith.constant 0 : i32
    %c0_i32_0 = arith.constant 0 : i32
    %c0_i32_1 = arith.constant 0 : i32
    return %c0_i32, %c0_i32_0 : i32, i32
  }
  func.func @transform_9(%arg0: i32) -> (i32, i32, i32) {
    %c0_i32 = arith.constant 0 : i32
    %c0_i32_0 = arith.constant 0 : i32
    %c0_i32_1 = arith.constant 0 : i32
    return %arg0, %c0_i32, %c0_i32_0 : i32, i32, i32
  }
}

</mosaic_0001>

<llo_original>
// kernel: tpu_custom_call.1
$region0: #{tpu_custom_call.1}
  #allocation0 [shape = 'u32[]', space=smem, size = 0x4, offset = 0x4, fixed_abs, tag = 'smem constant byte address 0x4 - core index']
  #allocation1 [shape = 'u32[144,128]{1,0:T(1,128)}', space=vmem, size = 0x12000, scoped, tag = 'internal scratch']
  #allocation2 [shape = 'f32[18,18,16]{2,1,0:T(8,128)}', space=vmem, size = 0x36000, scoped, tag = 'scratch operand']
  #allocation3 [shape = 'f32[256,144]{1,0:T(8,128)}', space=vmem, size = 0x40000, scoped, tag = 'scratch operand']
  %s0 = inlined_call_operand.vmem [shape: f32[2,16,16,3], index: 0, kind: input, shape index: {}]
  %s1 = inlined_call_operand.vmem [shape: bf16[27,8], index: 1, kind: input, shape index: {}]
  %s2 = inlined_call_operand.vmem [shape: f32[1,8], index: 2, kind: input, shape index: {}]
  %s3 = inlined_call_operand.vmem [shape: bf16[72,16], index: 3, kind: input, shape index: {}]
  %s4 = inlined_call_operand.vmem [shape: f32[1,16], index: 4, kind: input, shape index: {}]
  %s5 = inlined_call_operand.vmem [shape: bf16[144,16], index: 5, kind: input, shape index: {}]
  %s6 = inlined_call_operand.vmem [shape: f32[1,16], index: 6, kind: input, shape index: {}]
  %s7 = inlined_call_operand.vmem [shape: bf16[144,32], index: 7, kind: input, shape index: {}]
  %s8 = inlined_call_operand.vmem [shape: f32[1,32], index: 8, kind: input, shape index: {}]
  %s9 = inlined_call_operand.hbm [shape: f32[2,1,128], index: 9, kind: output, shape index: {}]
  %s10 = sld [smem:[#allocation0]]
  $region69: #{tpu_custom_call.1} parent=0
    _
  %s12 = ssub.s32 1, %s10
  %s13 = scalar_select 0, %s12, %s10
  $region1: #{tpu_custom_call.1} parent=0
    #allocation4 [shape = 'u8[1024]{0}', space=vmem, size = 0x400, scoped, tag = 'output window, operand 0']
    #allocation5 [shape = 's32[2]{0}', space=sflag, size = 0x8, scoped, tag = 'scoped memory for tpu_custom_call.1']
    %14 = vsyncpa [#allocation5], 0
    %s15 = scalar_lea.sflag [#allocation5], 1
    %16 = vsyncpa %s15, 0
    loop: start=0, step=1, limit=4
    $region2: #{tpu_custom_call.1} parent=1 // loop_pre_header
      _
    $region3: #{tpu_custom_call.1} parent=1 // loop_header
      %s18 = sphi 0, %s22
      %p19 = scmp.ge.s32.totalorder %s18, 4
      %s28 = sphi 0, %s30
      %s31 = sphi 0, %s28
      %s32 = sphi 0, %s31
      %s48 = sphi 0, %s32
      %s52 = sphi 0, %s52
      %s54 = sphi 0, %s52
      %s55 = sphi 0, %s54
      %s69 = sphi 0, %s55
      %s73 = sphi 0, %s73
      %s75 = sphi 0, %s73
      %s76 = sphi 0, %s75
      %s90 = sphi 0, %s76
      %s94 = sphi 0, %s94
      %s96 = sphi 0, %s94
      %s97 = sphi 0, %s96
      %s111 = sphi 0, %s97
      %s115 = sphi 0, %s115
      %s117 = sphi 0, %s115
      %s118 = sphi 0, %s117
      %s132 = sphi 0, %s118
      %s136 = sphi 0, %s136
      %s138 = sphi 0, %s136
      %s139 = sphi 0, %s138
      %s153 = sphi 0, %s139
      %s157 = sphi 0, %s157
      %s159 = sphi 0, %s157
      %s160 = sphi 0, %s159
      %s174 = sphi 0, %s160
      %s178 = sphi 0, %s178
      %s180 = sphi 0, %s178
      %s181 = sphi 0, %s180
      %s195 = sphi 0, %s181
      %s199 = sphi 0, %s199
      %s201 = sphi 0, %s199
      %s202 = sphi 0, %s201
      %s216 = sphi 0, %s202
      %s222 = sphi 0, %s224
      %s225 = sphi 0, %s222
      %s226 = sphi 0, %s225
      %s242 = sphi 0, %s226
    $region4: #{tpu_custom_call.1} parent=1 // loop_header_branch
      %21 = sbr.rel (%p19) target = $region8
    $region5: #{tpu_custom_call.1} parent=1 // loop_body
      %s23 = ssub.s32 %s18, 1
      %s24 = ssub.s32 %s18, 2
      %s25 = sadd.s32 %s18, 1
      %s26 = ssub.s32 %s18, %s25
      %p27 = scmp.eq.s32.totalorder %s26, 0
      %s29 = sadd.s32 %s28, 1
      %s30 = scalar_select %p27, %s28, %s29
      %p33 = pneg %p27
      %p34 = scmp.eq.s32.totalorder %s18, 1
      %p35 = por %p33, %p34
      %p36 = scmp.ne.s32.totalorder %s28, %s31
      %p37 = scmp.eq.s32.totalorder %s18, 0
      %p38 = por %p36, %p37
      %p39 = scmp.ne.s32.totalorder %s28, %s31
      %p40 = scmp.eq.s32.totalorder %s23, 1
      %p41 = por %p39, %p40
      %p42 = scmp.ne.s32.totalorder %s31, %s32
      %p43 = scmp.eq.s32.totalorder %s23, 0
      %p44 = por %p42, %p43
      %p45 = scmp.ne.s32.totalorder %s31, %s32
      %p46 = scmp.eq.s32.totalorder %s24, 1
      %p47 = por %p45, %p46
      %p49 = scmp.ne.s32.totalorder %s32, %s48
      %p50 = scmp.eq.s32.totalorder %s24, 0
      %p51 = por %p49, %p50
      %s53 = sadd.s32 %s52, 1
      %p56 = scmp.eq.s32.totalorder %s18, 1
      %p57 = scmp.ne.s32.totalorder %s52, %s54
      %p58 = scmp.eq.s32.totalorder %s18, 0
      %p59 = por %p57, %p58
      %p60 = scmp.ne.s32.totalorder %s52, %s54
      %p61 = scmp.eq.s32.totalorder %s23, 1
      %p62 = por %p60, %p61
      %p63 = scmp.ne.s32.totalorder %s54, %s55
      %p64 = scmp.eq.s32.totalorder %s23, 0
      %p65 = por %p63, %p64
      %p66 = scmp.ne.s32.totalorder %s54, %s55
      %p67 = scmp.eq.s32.totalorder %s24, 1
      %p68 = por %p66, %p67
      %p70 = scmp.ne.s32.totalorder %s55, %s69
      %p71 = scmp.eq.s32.totalorder %s24, 0
      %p72 = por %p70, %p71
      %s74 = sadd.s32 %s73, 1
      %p77 = scmp.eq.s32.totalorder %s18, 1
      %p78 = scmp.ne.s32.totalorder %s73, %s75
      %p79 = scmp.eq.s32.totalorder %s18, 0
      %p80 = por %p78, %p79
      %p81 = scmp.ne.s32.totalorder %s73, %s75
      %p82 = scmp.eq.s32.totalorder %s23, 1
      %p83 = por %p81, %p82
      %p84 = scmp.ne.s32.totalorder %s75, %s76
      %p85 = scmp.eq.s32.totalorder %s23, 0
      %p86 = por %p84, %p85
      %p87 = scmp.ne.s32.totalorder %s75, %s76
      %p88 = scmp.eq.s32.totalorder %s24, 1
      %p89 = por %p87, %p88
      %p91 = scmp.ne.s32.totalorder %s76, %s90
      %p92 = scmp.eq.s32.totalorder %s24, 0
      %p93 = por %p91, %p92
      %s95 = sadd.s32 %s94, 1
      %p98 = scmp.eq.s32.totalorder %s18, 1
      %p99 = scmp.ne.s32.totalorder %s94, %s96
      %p100 = scmp.eq.s32.totalorder %s18, 0
      %p101 = por %p99, %p100
      %p102 = scmp.ne.s32.totalorder %s94, %s96
      %p103 = scmp.eq.s32.totalorder %s23, 1
      %p104 = por %p102, %p103
      %p105 = scmp.ne.s32.totalorder %s96, %s97
      %p106 = scmp.eq.s32.totalorder %s23, 0
      %p107 = por %p105, %p106
      %p108 = scmp.ne.s32.totalorder %s96, %s97
      %p109 = scmp.eq.s32.totalorder %s24, 1
      %p110 = por %p108, %p109
      %p112 = scmp.ne.s32.totalorder %s97, %s111
      %p113 = scmp.eq.s32.totalorder %s24, 0
      %p114 = por %p112, %p113
      %s116 = sadd.s32 %s115, 1
      %p119 = scmp.eq.s32.totalorder %s18, 1
      %p120 = scmp.ne.s32.totalorder %s115, %s117
      %p121 = scmp.eq.s32.totalorder %s18, 0
      %p122 = por %p120, %p121
      %p123 = scmp.ne.s32.totalorder %s115, %s117
      %p124 = scmp.eq.s32.totalorder %s23, 1
      %p125 = por %p123, %p124
      %p126 = scmp.ne.s32.totalorder %s117, %s118
      %p127 = scmp.eq.s32.totalorder %s23, 0
      %p128 = por %p126, %p127
      %p129 = scmp.ne.s32.totalorder %s117, %s118
      %p130 = scmp.eq.s32.totalorder %s24, 1
      %p131 = por %p129, %p130
      %p133 = scmp.ne.s32.totalorder %s118, %s132
      %p134 = scmp.eq.s32.totalorder %s24, 0
      %p135 = por %p133, %p134
      %s137 = sadd.s32 %s136, 1
      %p140 = scmp.eq.s32.totalorder %s18, 1
      %p141 = scmp.ne.s32.totalorder %s136, %s138
      %p142 = scmp.eq.s32.totalorder %s18, 0
      %p143 = por %p141, %p142
      %p144 = scmp.ne.s32.totalorder %s136, %s138
      %p145 = scmp.eq.s32.totalorder %s23, 1
      %p146 = por %p144, %p145
      %p147 = scmp.ne.s32.totalorder %s138, %s139
      %p148 = scmp.eq.s32.totalorder %s23, 0
      %p149 = por %p147, %p148
      %p150 = scmp.ne.s32.totalorder %s138, %s139
      %p151 = scmp.eq.s32.totalorder %s24, 1
      %p152 = por %p150, %p151
      %p154 = scmp.ne.s32.totalorder %s139, %s153
      %p155 = scmp.eq.s32.totalorder %s24, 0
      %p156 = por %p154, %p155
      %s158 = sadd.s32 %s157, 1
      %p161 = scmp.eq.s32.totalorder %s18, 1
      %p162 = scmp.ne.s32.totalorder %s157, %s159
      %p163 = scmp.eq.s32.totalorder %s18, 0
      %p164 = por %p162, %p163
      %p165 = scmp.ne.s32.totalorder %s157, %s159
      %p166 = scmp.eq.s32.totalorder %s23, 1
      %p167 = por %p165, %p166
      %p168 = scmp.ne.s32.totalorder %s159, %s160
      %p169 = scmp.eq.s32.totalorder %s23, 0
      %p170 = por %p168, %p169
      %p171 = scmp.ne.s32.totalorder %s159, %s160
      %p172 = scmp.eq.s32.totalorder %s24, 1
      %p173 = por %p171, %p172
      %p175 = scmp.ne.s32.totalorder %s160, %s174
      %p176 = scmp.eq.s32.totalorder %s24, 0
      %p177 = por %p175, %p176
      %s179 = sadd.s32 %s178, 1
      %p182 = scmp.eq.s32.totalorder %s18, 1
      %p183 = scmp.ne.s32.totalorder %s178, %s180
      %p184 = scmp.eq.s32.totalorder %s18, 0
      %p185 = por %p183, %p184
      %p186 = scmp.ne.s32.totalorder %s178, %s180
      %p187 = scmp.eq.s32.totalorder %s23, 1
      %p188 = por %p186, %p187
      %p189 = scmp.ne.s32.totalorder %s180, %s181
      %p190 = scmp.eq.s32.totalorder %s23, 0
      %p191 = por %p189, %p190
      %p192 = scmp.ne.s32.totalorder %s180, %s181
      %p193 = scmp.eq.s32.totalorder %s24, 1
      %p194 = por %p192, %p193
      %p196 = scmp.ne.s32.totalorder %s181, %s195
      %p197 = scmp.eq.s32.totalorder %s24, 0
      %p198 = por %p196, %p197
      %s200 = sadd.s32 %s199, 1
      %p203 = scmp.eq.s32.totalorder %s18, 1
      %p204 = scmp.ne.s32.totalorder %s199, %s201
      %p205 = scmp.eq.s32.totalorder %s18, 0
      %p206 = por %p204, %p205
      %p207 = scmp.ne.s32.totalorder %s199, %s201
      %p208 = scmp.eq.s32.totalorder %s23, 1
      %p209 = por %p207, %p208
      %p210 = scmp.ne.s32.totalorder %s201, %s202
      %p211 = scmp.eq.s32.totalorder %s23, 0
      %p212 = por %p210, %p211
      %p213 = scmp.ne.s32.totalorder %s201, %s202
      %p214 = scmp.eq.s32.totalorder %s24, 1
      %p215 = por %p213, %p214
      %p217 = scmp.ne.s32.totalorder %s202, %s216
      %p218 = scmp.eq.s32.totalorder %s24, 0
      %p219 = por %p217, %p218
      %s220 = ssub.s32 %s18, %s25
      %p221 = scmp.eq.s32.totalorder %s220, 0
      %s223 = sadd.s32 %s222, 1
      %s224 = scalar_select %p221, %s222, %s223
      %p227 = pneg %p221
      %p228 = scmp.eq.s32.totalorder %s18, 1
      %p229 = por %p227, %p228
      %p230 = scmp.ne.s32.totalorder %s222, %s225
      %p231 = scmp.eq.s32.totalorder %s18, 0
      %p232 = por %p230, %p231
      %p233 = scmp.ne.s32.totalorder %s222, %s225
      %p234 = scmp.eq.s32.totalorder %s23, 1
      %p235 = por %p233, %p234
      %p236 = scmp.ne.s32.totalorder %s225, %s226
      %p237 = scmp.eq.s32.totalorder %s23, 0
      %p238 = por %p236, %p237
      %p239 = scmp.ne.s32.totalorder %s225, %s226
      %p240 = scmp.eq.s32.totalorder %s24, 1
      %p241 = por %p239, %p240
      %p243 = scmp.ne.s32.totalorder %s226, %s242
      %p244 = scmp.eq.s32.totalorder %s24, 0
      %p245 = por %p243, %p244
      %p246 = scmp.le.s32.totalorder 1, %s18
      %p247 = scmp.lt.s32.totalorder %s18, 3
      %p248 = pnand %p246, %p247
      %p249 = pneg %p248
      // Predicated region
      $region9: #{tpu_custom_call.1} parent=5 // pred_check
        _
      $region10: #{tpu_custom_call.1} parent=5 // pred_check_branch
        %251 = sbr.rel (%p248) target = $region12
      $region11: #{tpu_custom_call.1} parent=5 // pred_region
        %s252 = ssub.s32 %s18, 1
        // Predicated region
        $region13: #{tpu_custom_call.1} parent=11 // pred_check
          %p253 = pneg %p65
        $region14: #{tpu_custom_call.1} parent=11 // pred_check_branch
          %255 = sbr.rel (%p253) target = $region16
        $region15: #{tpu_custom_call.1} parent=11 // pred_region
          _
        $region16: #{tpu_custom_call.1} parent=11 // pred_fallthru
          _
        // Predicated region
        $region17: #{tpu_custom_call.1} parent=11 // pred_check
          %p256 = pneg %p86
        $region18: #{tpu_custom_call.1} parent=11 // pred_check_branch
          %258 = sbr.rel (%p256) target = $region20
        $region19: #{tpu_custom_call.1} parent=11 // pred_region
          _
        $region20: #{tpu_custom_call.1} parent=11 // pred_fallthru
          _
        // Predicated region
        $region21: #{tpu_custom_call.1} parent=11 // pred_check
          %p259 = pneg %p107
        $region22: #{tpu_custom_call.1} parent=11 // pred_check_branch
          %261 = sbr.rel (%p259) target = $region24
        $region23: #{tpu_custom_call.1} parent=11 // pred_region
          _
        $region24: #{tpu_custom_call.1} parent=11 // pred_fallthru
          _
        // Predicated region
        $region25: #{tpu_custom_call.1} parent=11 // pred_check
          %p262 = pneg %p128
        $region26: #{tpu_custom_call.1} parent=11 // pred_check_branch
          %264 = sbr.rel (%p262) target = $region28
        $region27: #{tpu_custom_call.1} parent=11 // pred_region
          _
        $region28: #{tpu_custom_call.1} parent=11 // pred_fallthru
          _
        // Predicated region
        $region29: #{tpu_custom_call.1} parent=11 // pred_check
          %p265 = pneg %p149
        $region30: #{tpu_custom_call.1} parent=11 // pred_check_branch
          %267 = sbr.rel (%p265) target = $region32
        $region31: #{tpu_custom_call.1} parent=11 // pred_region
          _
        $region32: #{tpu_custom_call.1} parent=11 // pred_fallthru
          _
        // Predicated region
        $region33: #{tpu_custom_call.1} parent=11 // pred_check
          %p268 = pneg %p170
        $region34: #{tpu_custom_call.1} parent=11 // pred_check_branch
          %270 = sbr.rel (%p268) target = $region36
        $region35: #{tpu_custom_call.1} parent=11 // pred_region
          _
        $region36: #{tpu_custom_call.1} parent=11 // pred_fallthru
          _
        // Predicated region
        $region37: #{tpu_custom_call.1} parent=11 // pred_check
          %p271 = pneg %p191
        $region38: #{tpu_custom_call.1} parent=11 // pred_check_branch
          %273 = sbr.rel (%p271) target = $region40
        $region39: #{tpu_custom_call.1} parent=11 // pred_region
          _
        $region40: #{tpu_custom_call.1} parent=11 // pred_fallthru
          _
        // Predicated region
        $region41: #{tpu_custom_call.1} parent=11 // pred_check
          %p274 = pneg %p212
        $region42: #{tpu_custom_call.1} parent=11 // pred_check_branch
          %276 = sbr.rel (%p274) target = $region44
        $region43: #{tpu_custom_call.1} parent=11 // pred_region
          _
        $region44: #{tpu_custom_call.1} parent=11 // pred_fallthru
          _
      $region12: #{tpu_custom_call.1} parent=5 // pred_fallthru
        _
      %p277 = scmp.lt.s32.totalorder %s18, 2
      // Predicated region
      $region45: #{tpu_custom_call.1} parent=5 // pred_check
        %p278 = pneg %p277
      $region46: #{tpu_custom_call.1} parent=5 // pred_check_branch
        %280 = sbr.rel (%p278) target = $region48
      $region47: #{tpu_custom_call.1} parent=5 // pred_region
        // Predicated region
        $region49: #{tpu_custom_call.1} parent=47 // pred_check
          %p281 = pneg %p38
        $region50: #{tpu_custom_call.1} parent=47 // pred_check_branch
          %283 = sbr.rel (%p281) target = $region52
        $region51: #{tpu_custom_call.1} parent=47 // pred_region
          %p284 = scmp.lt.s32.totalorder %s18, 1
          %s285 = scalar_select %p284, %s18, 1
          %s286 = smul.addr %s285, 32
          %s287 = smul.addr %s286, 8
          %s288 = scalar_lea.vmem %s0, %s287
        $region52: #{tpu_custom_call.1} parent=47 // pred_fallthru
          _
      $region48: #{tpu_custom_call.1} parent=5 // pred_fallthru
        _
      %p289 = scmp.le.s32.totalorder 1, %s18
      %p290 = scmp.lt.s32.totalorder %s18, 3
      %p291 = pnand %p289, %p290
      %p292 = pneg %p291
      // Predicated region
      $region53: #{tpu_custom_call.1} parent=5 // pred_check
        _
      $region54: #{tpu_custom_call.1} parent=5 // pred_check_branch
        %294 = sbr.rel (%p291) target = $region56
      $region55: #{tpu_custom_call.1} parent=5 // pred_region
        %s295 = ssub.s32 %s18, 1
        %p296 = scmp.lt.s32.totalorder %s23, 1
        %s297 = scalar_select %p296, %s23, 1
        %s298 = smul.addr %s297, 32
        %s299 = smul.addr %s298, 8
        %s300 = scalar_lea.vmem %s0, %s299
        %p301 = pneg %p44
        %p302 = pneg %p41
        %p303 = pneg %p65
        %p304 = pneg %p62
        %p305 = pneg %p86
        %p306 = pneg %p83
        %p307 = pneg %p107
        %p308 = pneg %p104
        %p309 = pneg %p128
        %p310 = pneg %p125
        %p311 = pneg %p149
        %p312 = pneg %p146
        %p313 = pneg %p170
        %p314 = pneg %p167
        %p315 = pneg %p191
        %p316 = pneg %p188
        %p317 = pneg %p212
        %p318 = pneg %p209
        %p319 = pneg %p238
        %p320 = pneg %p235
        %s321 = sand.u32 %s225, 1
        %s322 = scalar_lea.sflag [#allocation5], %s321
        %s323 = sand.u32 %s225, 1
        %s324 = scalar_lea.vmem [#allocation4], %s323
        %p325 = scmp.lt.s32.totalorder %s23, 1
        %s326 = scalar_select %p325, %s23, 1
        %s327 = smul.addr %s326, 32
        %s328 = smul.addr %s327, 8
        %s329 = scalar_lea.vmem %s0, %s328
        %v331 = vld [vmem:[%s329] sm:$0xff]
        %v332 = vld [vmem:[%s329 + $0x8] sm:$0xff]
        %v333 = vld [vmem:[%s329 + $0x10] sm:$0xff]
        %v334 = vld [vmem:[%s329 + $0x18] sm:$0xff]
        %v335 = vld [vmem:[%s329 + $0x20] sm:$0xff]
        %v336 = vld [vmem:[%s329 + $0x28] sm:$0xff]
        %v337 = vld [vmem:[%s329 + $0x30] sm:$0xff]
        %v338 = vld [vmem:[%s329 + $0x38] sm:$0xff]
        %v339 = vld [vmem:[%s329 + $0x40] sm:$0xff]
        %v340 = vld [vmem:[%s329 + $0x48] sm:$0xff]
        %v341 = vld [vmem:[%s329 + $0x50] sm:$0xff]
        %v342 = vld [vmem:[%s329 + $0x58] sm:$0xff]
        %v343 = vld [vmem:[%s329 + $0x60] sm:$0xff]
        %v344 = vld [vmem:[%s329 + $0x68] sm:$0xff]
        %v345 = vld [vmem:[%s329 + $0x70] sm:$0xff]
        %v346 = vld [vmem:[%s329 + $0x78] sm:$0xff]
        %v347 = vld [vmem:[%s329 + $0x80] sm:$0xff]
        %v348 = vld [vmem:[%s329 + $0x88] sm:$0xff]
        %v349 = vld [vmem:[%s329 + $0x90] sm:$0xff]
        %v350 = vld [vmem:[%s329 + $0x98] sm:$0xff]
        %v351 = vld [vmem:[%s329 + $0xa0] sm:$0xff]
        %v352 = vld [vmem:[%s329 + $0xa8] sm:$0xff]
        %v353 = vld [vmem:[%s329 + $0xb0] sm:$0xff]
        %v354 = vld [vmem:[%s329 + $0xb8] sm:$0xff]
        %v355 = vld [vmem:[%s329 + $0xc0] sm:$0xff]
        %v356 = vld [vmem:[%s329 + $0xc8] sm:$0xff]
        %v357 = vld [vmem:[%s329 + $0xd0] sm:$0xff]
        %v358 = vld [vmem:[%s329 + $0xd8] sm:$0xff]
        %v359 = vld [vmem:[%s329 + $0xe0] sm:$0xff]
        %v360 = vld [vmem:[%s329 + $0xe8] sm:$0xff]
        %v361 = vld [vmem:[%s329 + $0xf0] sm:$0xff]
        %v362 = vld [vmem:[%s329 + $0xf8] sm:$0xff]
        %vm363 = vcmask 23552
        %364 = vst.msk [vmem:[#allocation2] sm:$0xff] %vm363, 0.0
        %365 = vst.msk [vmem:[#allocation2 + $0x8] sm:$0xff] %vm363, 0.0
        %vm366 = vcmask 17408
        %367 = vst.msk [vmem:[#allocation2 + $0x10] sm:$0x3] %vm366, 0.0
        %s368 = scalar_lea.vmem [#allocation2], 408
        %369 = vst.msk [vmem:[%s368] sm:$0xff] %vm363, 0.0
        %370 = vst.msk [vmem:[%s368 + $0x8] sm:$0xff] %vm363, 0.0
        %371 = vst.msk [vmem:[%s368 + $0x10] sm:$0x3] %vm366, 0.0
        %s372 = scalar_lea.vmem [#allocation2], 24
        %vm373 = vcmask 16384
        %374 = vst.msk [vmem:[%s372] sm:$0x1] %vm373, 0.0
        %375 = vst.msk [vmem:[%s372 + $0x18] sm:$0x1] %vm373, 0.0
        %376 = vst.msk [vmem:[%s372 + $0x30] sm:$0x1] %vm373, 0.0
        %377 = vst.msk [vmem:[%s372 + $0x48] sm:$0x1] %vm373, 0.0
        %378 = vst.msk [vmem:[%s372 + $0x60] sm:$0x1] %vm373, 0.0
        %379 = vst.msk [vmem:[%s372 + $0x78] sm:$0x1] %vm373, 0.0
        %380 = vst.msk [vmem:[%s372 + $0x90] sm:$0x1] %vm373, 0.0
        %381 = vst.msk [vmem:[%s372 + $0xa8] sm:$0x1] %vm373, 0.0
        %382 = vst.msk [vmem:[%s372 + $0xc0] sm:$0x1] %vm373, 0.0
        %383 = vst.msk [vmem:[%s372 + $0xd8] sm:$0x1] %vm373, 0.0
        %384 = vst.msk [vmem:[%s372 + $0xf0] sm:$0x1] %vm373, 0.0
        %385 = vst.msk [vmem:[%s372 + $0x108] sm:$0x1] %vm373, 0.0
        %386 = vst.msk [vmem:[%s372 + $0x120] sm:$0x1] %vm373, 0.0
        %387 = vst.msk [vmem:[%s372 + $0x138] sm:$0x1] %vm373, 0.0
        %388 = vst.msk [vmem:[%s372 + $0x150] sm:$0x1] %vm373, 0.0
        %389 = vst.msk [vmem:[%s372 + $0x168] sm:$0x1] %vm373, 0.0
        %390 = vst.msk [vmem:[%s372 + $0x11] sm:$0x1] %vm373, 0.0
        %391 = vst.msk [vmem:[%s372 + $0x29] sm:$0x1] %vm373, 0.0
        %392 = vst.msk [vmem:[%s372 + $0x41] sm:$0x1] %vm373, 0.0
        %393 = vst.msk [vmem:[%s372 + $0x59] sm:$0x1] %vm373, 0.0
        %394 = vst.msk [vmem:[%s372 + $0x71] sm:$0x1] %vm373, 0.0
        %395 = vst.msk [vmem:[%s372 + $0x89] sm:$0x1] %vm373, 0.0
        %396 = vst.msk [vmem:[%s372 + $0xa1] sm:$0x1] %vm373, 0.0
        %397 = vst.msk [vmem:[%s372 + $0xb9] sm:$0x1] %vm373, 0.0
        %398 = vst.msk [vmem:[%s372 + $0xd1] sm:$0x1] %vm373, 0.0
        %399 = vst.msk [vmem:[%s372 + $0xe9] sm:$0x1] %vm373, 0.0
        %400 = vst.msk [vmem:[%s372 + $0x101] sm:$0x1] %vm373, 0.0
        %401 = vst.msk [vmem:[%s372 + $0x119] sm:$0x1] %vm373, 0.0
        %402 = vst.msk [vmem:[%s372 + $0x131] sm:$0x1] %vm373, 0.0
        %403 = vst.msk [vmem:[%s372 + $0x149] sm:$0x1] %vm373, 0.0
        %404 = vst.msk [vmem:[%s372 + $0x161] sm:$0x1] %vm373, 0.0
        %405 = vst.msk [vmem:[%s372 + $0x179] sm:$0x1] %vm373, 0.0
        %406 = vst.msk [vmem:[%s372 + $0x1] sm:$0xff] %vm363, %v331
        %407 = vst.msk [vmem:[%s372 + $0x9] sm:$0xff] %vm363, %v332
        %408 = vst.msk [vmem:[%s372 + $0x19] sm:$0xff] %vm363, %v333
        %409 = vst.msk [vmem:[%s372 + $0x21] sm:$0xff] %vm363, %v334
        %410 = vst.msk [vmem:[%s372 + $0x31] sm:$0xff] %vm363, %v335
        %411 = vst.msk [vmem:[%s372 + $0x39] sm:$0xff] %vm363, %v336
        %412 = vst.msk [vmem:[%s372 + $0x49] sm:$0xff] %vm363, %v337
        %413 = vst.msk [vmem:[%s372 + $0x51] sm:$0xff] %vm363, %v338
        %414 = vst.msk [vmem:[%s372 + $0x61] sm:$0xff] %vm363, %v339
        %415 = vst.msk [vmem:[%s372 + $0x69] sm:$0xff] %vm363, %v340
        %416 = vst.msk [vmem:[%s372 + $0x79] sm:$0xff] %vm363, %v341
        %417 = vst.msk [vmem:[%s372 + $0x81] sm:$0xff] %vm363, %v342
        %418 = vst.msk [vmem:[%s372 + $0x91] sm:$0xff] %vm363, %v343
        %419 = vst.msk [vmem:[%s372 + $0x99] sm:$0xff] %vm363, %v344
        %420 = vst.msk [vmem:[%s372 + $0xa9] sm:$0xff] %vm363, %v345
        %421 = vst.msk [vmem:[%s372 + $0xb1] sm:$0xff] %vm363, %v346
        %422 = vst.msk [vmem:[%s372 + $0xc1] sm:$0xff] %vm363, %v347
        %423 = vst.msk [vmem:[%s372 + $0xc9] sm:$0xff] %vm363, %v348
        %424 = vst.msk [vmem:[%s372 + $0xd9] sm:$0xff] %vm363, %v349
        %425 = vst.msk [vmem:[%s372 + $0xe1] sm:$0xff] %vm363, %v350
        %426 = vst.msk [vmem:[%s372 + $0xf1] sm:$0xff] %vm363, %v351
        %427 = vst.msk [vmem:[%s372 + $0xf9] sm:$0xff] %vm363, %v352
        %428 = vst.msk [vmem:[%s372 + $0x109] sm:$0xff] %vm363, %v353
        %429 = vst.msk [vmem:[%s372 + $0x111] sm:$0xff] %vm363, %v354
        %430 = vst.msk [vmem:[%s372 + $0x121] sm:$0xff] %vm363, %v355
        %431 = vst.msk [vmem:[%s372 + $0x129] sm:$0xff] %vm363, %v356
        %432 = vst.msk [vmem:[%s372 + $0x139] sm:$0xff] %vm363, %v357
        %433 = vst.msk [vmem:[%s372 + $0x141] sm:$0xff] %vm363, %v358
        %434 = vst.msk [vmem:[%s372 + $0x151] sm:$0xff] %vm363, %v359
        %435 = vst.msk [vmem:[%s372 + $0x159] sm:$0xff] %vm363, %v360
        %436 = vst.msk [vmem:[%s372 + $0x169] sm:$0xff] %vm363, %v361
        %437 = vst.msk [vmem:[%s372 + $0x171] sm:$0xff] %vm363, %v362
        %v438 = vld [vmem:[#allocation2] sm:$0xff]
        %v439 = vld [vmem:[#allocation2 + $0x8] sm:$0xff]
        %v440 = vld [vmem:[#allocation2 + $0x10] sm:$0x3]
        %v441 = vld [vmem:[#allocation2 + $0x18] sm:$0xff]
        %v442 = vld [vmem:[#allocation2 + $0x20] sm:$0xff]
        %v443 = vld [vmem:[#allocation2 + $0x28] sm:$0x3]
        %v444 = vld [vmem:[#allocation2 + $0x30] sm:$0xff]
        %v445 = vld [vmem:[#allocation2 + $0x38] sm:$0xff]
        %v446 = vld [vmem:[#allocation2 + $0x40] sm:$0x3]
        %v447 = vld [vmem:[#allocation2 + $0x48] sm:$0xff]
        %v448 = vld [vmem:[#allocation2 + $0x50] sm:$0xff]
        %v449 = vld [vmem:[#allocation2 + $0x58] sm:$0x3]
        %v450 = vld [vmem:[#allocation2 + $0x60] sm:$0xff]
        %v451 = vld [vmem:[#allocation2 + $0x68] sm:$0xff]
        %v452 = vld [vmem:[#allocation2 + $0x70] sm:$0x3]
        %v453 = vld [vmem:[#allocation2 + $0x78] sm:$0xff]
        %v454 = vld [vmem:[#allocation2 + $0x80] sm:$0xff]
        %v455 = vld [vmem:[#allocation2 + $0x88] sm:$0x3]
        %v456 = vld [vmem:[#allocation2 + $0x90] sm:$0xff]
        %v457 = vld [vmem:[#allocation2 + $0x98] sm:$0xff]
        %v458 = vld [vmem:[#allocation2 + $0xa0] sm:$0x3]
        %v459 = vld [vmem:[#allocation2 + $0xa8] sm:$0xff]
        %v460 = vld [vmem:[#allocation2 + $0xb0] sm:$0xff]
        %v461 = vld [vmem:[#allocation2 + $0xb8] sm:$0x3]
        %v462 = vld [vmem:[#allocation2 + $0xc0] sm:$0xff]
        %v463 = vld [vmem:[#allocation2 + $0xc8] sm:$0xff]
        %v464 = vld [vmem:[#allocation2 + $0xd0] sm:$0x3]
        %v465 = vld [vmem:[#allocation2 + $0xd8] sm:$0xff]
        %v466 = vld [vmem:[#allocation2 + $0xe0] sm:$0xff]
        %v467 = vld [vmem:[#allocation2 + $0xe8] sm:$0x3]
        %v468 = vld [vmem:[#allocation2 + $0xf0] sm:$0xff]
        %v469 = vld [vmem:[#allocation2 + $0xf8] sm:$0xff]
        %v470 = vld [vmem:[#allocation2 + $0x100] sm:$0x3]
        %v471 = vld [vmem:[#allocation2 + $0x108] sm:$0xff]
        %v472 = vld [vmem:[#allocation2 + $0x110] sm:$0xff]
        %v473 = vld [vmem:[#allocation2 + $0x118] sm:$0x3]
        %v474 = vld [vmem:[#allocation2 + $0x120] sm:$0xff]
        %v475 = vld [vmem:[#allocation2 + $0x128] sm:$0xff]
        %v476 = vld [vmem:[#allocation2 + $0x130] sm:$0x3]
        %v477 = vld [vmem:[#allocation2 + $0x138] sm:$0xff]
        %v478 = vld [vmem:[#allocation2 + $0x140] sm:$0xff]
        %v479 = vld [vmem:[#allocation2 + $0x148] sm:$0x3]
        %v480 = vld [vmem:[#allocation2 + $0x150] sm:$0xff]
        %v481 = vld [vmem:[#allocation2 + $0x158] sm:$0xff]
        %v482 = vld [vmem:[#allocation2 + $0x160] sm:$0x3]
        %v483 = vld [vmem:[#allocation2 + $0x168] sm:$0xff]
        %v484 = vld [vmem:[#allocation2 + $0x170] sm:$0xff]
        %v485 = vld [vmem:[#allocation2 + $0x178] sm:$0x3]
        %v486 = vld [vmem:[#allocation2 + $0x180] sm:$0xff]
        %v487 = vld [vmem:[#allocation2 + $0x188] sm:$0xff]
        %v488 = vld [vmem:[#allocation2 + $0x190] sm:$0x3]
        %v489 = vld [vmem:[#allocation2 + $0x198] sm:$0xff]
        %v490 = vld [vmem:[#allocation2 + $0x1a0] sm:$0xff]
        %v491 = vld [vmem:[#allocation2 + $0x1a8] sm:$0x3]
        %492 = vst.msk [vmem:[#allocation3] sm:$0xff] %vm363, %v438
        %493 = vst.msk [vmem:[#allocation3 + $0x10] sm:$0xff] %vm363, %v439
        %494 = vst.msk [vmem:[#allocation3 + $0x20] sm:$0xff] %vm363, %v441
        %495 = vst.msk [vmem:[#allocation3 + $0x30] sm:$0xff] %vm363, %v442
        %496 = vst.msk [vmem:[#allocation3 + $0x40] sm:$0xff] %vm363, %v444
        %497 = vst.msk [vmem:[#allocation3 + $0x50] sm:$0xff] %vm363, %v445
        %498 = vst.msk [vmem:[#allocation3 + $0x60] sm:$0xff] %vm363, %v447
        %499 = vst.msk [vmem:[#allocation3 + $0x70] sm:$0xff] %vm363, %v448
        %500 = vst.msk [vmem:[#allocation3 + $0x80] sm:$0xff] %vm363, %v450
        %501 = vst.msk [vmem:[#allocation3 + $0x90] sm:$0xff] %vm363, %v451
        %502 = vst.msk [vmem:[#allocation3 + $0xa0] sm:$0xff] %vm363, %v453
        %503 = vst.msk [vmem:[#allocation3 + $0xb0] sm:$0xff] %vm363, %v454
        %504 = vst.msk [vmem:[#allocation3 + $0xc0] sm:$0xff] %vm363, %v456
        %505 = vst.msk [vmem:[#allocation3 + $0xd0] sm:$0xff] %vm363, %v457
        %506 = vst.msk [vmem:[#allocation3 + $0xe0] sm:$0xff] %vm363, %v459
        %507 = vst.msk [vmem:[#allocation3 + $0xf0] sm:$0xff] %vm363, %v460
        %508 = vst.msk [vmem:[#allocation3 + $0x100] sm:$0xff] %vm363, %v462
        %509 = vst.msk [vmem:[#allocation3 + $0x110] sm:$0xff] %vm363, %v463
        %510 = vst.msk [vmem:[#allocation3 + $0x120] sm:$0xff] %vm363, %v465
        %511 = vst.msk [vmem:[#allocation3 + $0x130] sm:$0xff] %vm363, %v466
        %512 = vst.msk [vmem:[#allocation3 + $0x140] sm:$0xff] %vm363, %v468
        %513 = vst.msk [vmem:[#allocation3 + $0x150] sm:$0xff] %vm363, %v469
        %514 = vst.msk [vmem:[#allocation3 + $0x160] sm:$0xff] %vm363, %v471
        %515 = vst.msk [vmem:[#allocation3 + $0x170] sm:$0xff] %vm363, %v472
        %516 = vst.msk [vmem:[#allocation3 + $0x180] sm:$0xff] %vm363, %v474
        %517 = vst.msk [vmem:[#allocation3 + $0x190] sm:$0xff] %vm363, %v475
        %518 = vst.msk [vmem:[#allocation3 + $0x1a0] sm:$0xff] %vm363, %v477
        %519 = vst.msk [vmem:[#allocation3 + $0x1b0] sm:$0xff] %vm363, %v478
        %520 = vst.msk [vmem:[#allocation3 + $0x1c0] sm:$0xff] %vm363, %v480
        %521 = vst.msk [vmem:[#allocation3 + $0x1d0] sm:$0xff] %vm363, %v481
        %522 = vst.msk [vmem:[#allocation3 + $0x1e0] sm:$0xff] %vm363, %v483
        %523 = vst.msk [vmem:[#allocation3 + $0x1f0] sm:$0xff] %vm363, %v484
        %vm572 = vcmask 1046528
        %v573 = vrot.slane %v438, 1
        %v574 = vrot.slane %v439, 1
        %v575 = vsel %vm572, %v573, %v574
        %v576 = vrot.slane %v440, 1
        %v577 = vsel %vm572, %v574, %v576
        %v578 = vrot.slane %v441, 1
        %v579 = vrot.slane %v442, 1
        %v580 = vsel %vm572, %v578, %v579
        %v581 = vrot.slane %v443, 1
        %v582 = vsel %vm572, %v579, %v581
        %v583 = vrot.slane %v444, 1
        %v584 = vrot.slane %v445, 1
        %v585 = vsel %vm572, %v583, %v584
        %v586 = vrot.slane %v446, 1
        %v587 = vsel %vm572, %v584, %v586
        %v588 = vrot.slane %v447, 1
        %v589 = vrot.slane %v448, 1
        %v590 = vsel %vm572, %v588, %v589
        %v591 = vrot.slane %v449, 1
        %v592 = vsel %vm572, %v589, %v591
        %v593 = vrot.slane %v450, 1
        %v594 = vrot.slane %v451, 1
        %v595 = vsel %vm572, %v593, %v594
        %v596 = vrot.slane %v452, 1
        %v597 = vsel %vm572, %v594, %v596
        %v598 = vrot.slane %v453, 1
        %v599 = vrot.slane %v454, 1
        %v600 = vsel %vm572, %v598, %v599
        %v601 = vrot.slane %v455, 1
        %v602 = vsel %vm572, %v599, %v601
        %v603 = vrot.slane %v456, 1
        %v604 = vrot.slane %v457, 1
        %v605 = vsel %vm572, %v603, %v604
        %v606 = vrot.slane %v458, 1
        %v607 = vsel %vm572, %v604, %v606
        %v608 = vrot.slane %v459, 1
        %v609 = vrot.slane %v460, 1
        %v610 = vsel %vm572, %v608, %v609
        %v611 = vrot.slane %v461, 1
        %v612 = vsel %vm572, %v609, %v611
        %v613 = vrot.slane %v462, 1
        %v614 = vrot.slane %v463, 1
        %v615 = vsel %vm572, %v613, %v614
        %v616 = vrot.slane %v464, 1
        %v617 = vsel %vm572, %v614, %v616
        %v618 = vrot.slane %v465, 1
        %v619 = vrot.slane %v466, 1
        %v620 = vsel %vm572, %v618, %v619
        %v621 = vrot.slane %v467, 1
        %v622 = vsel %vm572, %v619, %v621
        %v623 = vrot.slane %v468, 1
        %v624 = vrot.slane %v469, 1
        %v625 = vsel %vm572, %v623, %v624
        %v626 = vrot.slane %v470, 1
        %v627 = vsel %vm572, %v624, %v626
        %v628 = vrot.slane %v471, 1
        %v629 = vrot.slane %v472, 1
        %v630 = vsel %vm572, %v628, %v629
        %v631 = vrot.slane %v473, 1
        %v632 = vsel %vm572, %v629, %v631
        %v633 = vrot.slane %v474, 1
        %v634 = vrot.slane %v475, 1
        %v635 = vsel %vm572, %v633, %v634
        %v636 = vrot.slane %v476, 1
        %v637 = vsel %vm572, %v634, %v636
        %v638 = vrot.slane %v477, 1
        %v639 = vrot.slane %v478, 1
        %v640 = vsel %vm572, %v638, %v639
        %v641 = vrot.slane %v479, 1
        %v642 = vsel %vm572, %v639, %v641
        %v643 = vrot.slane %v480, 1
        %v644 = vrot.slane %v481, 1
        %v645 = vsel %vm572, %v643, %v644
        %v646 = vrot.slane %v482, 1
        %v647 = vsel %vm572, %v644, %v646
        %v648 = vrot.slane %v483, 1
        %v649 = vrot.slane %v484, 1
        %v650 = vsel %vm572, %v648, %v649
        %v651 = vrot.slane %v485, 1
        %v652 = vsel %vm572, %v649, %v651
        %653 = vrot.lane.b32.xlu0 %v575, 3
        %v654 = vpop.permute.xlu0 %653
        %655 = vrot.lane.b32.xlu0 %v577, 3
        %v656 = vpop.permute.xlu0 %655
        %657 = vrot.lane.b32.xlu0 %v580, 3
        %v658 = vpop.permute.xlu0 %657
        %659 = vrot.lane.b32.xlu0 %v582, 3
        %v660 = vpop.permute.xlu0 %659
        %661 = vrot.lane.b32.xlu0 %v585, 3
        %v662 = vpop.permute.xlu0 %661
        %663 = vrot.lane.b32.xlu0 %v587, 3
        %v664 = vpop.permute.xlu0 %663
        %665 = vrot.lane.b32.xlu0 %v590, 3
        %v666 = vpop.permute.xlu0 %665
        %667 = vrot.lane.b32.xlu0 %v592, 3
        %v668 = vpop.permute.xlu0 %667
        %669 = vrot.lane.b32.xlu0 %v595, 3
        %v670 = vpop.permute.xlu0 %669
        %671 = vrot.lane.b32.xlu0 %v597, 3
        %v672 = vpop.permute.xlu0 %671
        %673 = vrot.lane.b32.xlu0 %v600, 3
        %v674 = vpop.permute.xlu0 %673
        %675 = vrot.lane.b32.xlu0 %v602, 3
        %v676 = vpop.permute.xlu0 %675
        %677 = vrot.lane.b32.xlu0 %v605, 3
        %v678 = vpop.permute.xlu0 %677
        %679 = vrot.lane.b32.xlu0 %v607, 3
        %v680 = vpop.permute.xlu0 %679
        %681 = vrot.lane.b32.xlu0 %v610, 3
        %v682 = vpop.permute.xlu0 %681
        %683 = vrot.lane.b32.xlu0 %v612, 3
        %v684 = vpop.permute.xlu0 %683
        %685 = vrot.lane.b32.xlu0 %v615, 3
        %v686 = vpop.permute.xlu0 %685
        %687 = vrot.lane.b32.xlu0 %v617, 3
        %v688 = vpop.permute.xlu0 %687
        %689 = vrot.lane.b32.xlu0 %v620, 3
        %v690 = vpop.permute.xlu0 %689
        %691 = vrot.lane.b32.xlu0 %v622, 3
        %v692 = vpop.permute.xlu0 %691
        %693 = vrot.lane.b32.xlu0 %v625, 3
        %v694 = vpop.permute.xlu0 %693
        %695 = vrot.lane.b32.xlu0 %v627, 3
        %v696 = vpop.permute.xlu0 %695
        %697 = vrot.lane.b32.xlu0 %v630, 3
        %v698 = vpop.permute.xlu0 %697
        %699 = vrot.lane.b32.xlu0 %v632, 3
        %v700 = vpop.permute.xlu0 %699
        %701 = vrot.lane.b32.xlu0 %v635, 3
        %v702 = vpop.permute.xlu0 %701
        %703 = vrot.lane.b32.xlu0 %v637, 3
        %v704 = vpop.permute.xlu0 %703
        %705 = vrot.lane.b32.xlu0 %v640, 3
        %v706 = vpop.permute.xlu0 %705
        %707 = vrot.lane.b32.xlu0 %v642, 3
        %v708 = vpop.permute.xlu0 %707
        %709 = vrot.lane.b32.xlu0 %v645, 3
        %v710 = vpop.permute.xlu0 %709
        %711 = vrot.lane.b32.xlu0 %v647, 3
        %v712 = vpop.permute.xlu0 %711
        %713 = vrot.lane.b32.xlu0 %v650, 3
        %v714 = vpop.permute.xlu0 %713
        %715 = vrot.lane.b32.xlu0 %v652, 3
        %v716 = vpop.permute.xlu0 %715
        %vm749 = vcmask 48152
        %750 = vst.msk [vmem:[#allocation3] sm:$0xff] %vm749, %v654
        %751 = vst.msk [vmem:[#allocation3 + $0x10] sm:$0xff] %vm749, %v656
        %752 = vst.msk [vmem:[#allocation3 + $0x20] sm:$0xff] %vm749, %v658
        %753 = vst.msk [vmem:[#allocation3 + $0x30] sm:$0xff] %vm749, %v660
        %754 = vst.msk [vmem:[#allocation3 + $0x40] sm:$0xff] %vm749, %v662
        %755 = vst.msk [vmem:[#allocation3 + $0x50] sm:$0xff] %vm749, %v664
        %756 = vst.msk [vmem:[#allocation3 + $0x60] sm:$0xff] %vm749, %v666
        %757 = vst.msk [vmem:[#allocation3 + $0x70] sm:$0xff] %vm749, %v668
        %758 = vst.msk [vmem:[#allocation3 + $0x80] sm:$0xff] %vm749, %v670
        %759 = vst.msk [vmem:[#allocation3 + $0x90] sm:$0xff] %vm749, %v672
        %760 = vst.msk [vmem:[#allocation3 + $0xa0] sm:$0xff] %vm749, %v674
        %761 = vst.msk [vmem:[#allocation3 + $0xb0] sm:$0xff] %vm749, %v676
        %762 = vst.msk [vmem:[#allocation3 + $0xc0] sm:$0xff] %vm749, %v678
        %763 = vst.msk [vmem:[#allocation3 + $0xd0] sm:$0xff] %vm749, %v680
        %764 = vst.msk [vmem:[#allocation3 + $0xe0] sm:$0xff] %vm749, %v682
        %765 = vst.msk [vmem:[#allocation3 + $0xf0] sm:$0xff] %vm749, %v684
        %766 = vst.msk [vmem:[#allocation3 + $0x100] sm:$0xff] %vm749, %v686
        %767 = vst.msk [vmem:[#allocation3 + $0x110] sm:$0xff] %vm749, %v688
        %768 = vst.msk [vmem:[#allocation3 + $0x120] sm:$0xff] %vm749, %v690
        %769 = vst.msk [vmem:[#allocation3 + $0x130] sm:$0xff] %vm749, %v692
        %770 = vst.msk [vmem:[#allocation3 + $0x140] sm:$0xff] %vm749, %v694
        %771 = vst.msk [vmem:[#allocation3 + $0x150] sm:$0xff] %vm749, %v696
        %772 = vst.msk [vmem:[#allocation3 + $0x160] sm:$0xff] %vm749, %v698
        %773 = vst.msk [vmem:[#allocation3 + $0x170] sm:$0xff] %vm749, %v700
        %774 = vst.msk [vmem:[#allocation3 + $0x180] sm:$0xff] %vm749, %v702
        %775 = vst.msk [vmem:[#allocation3 + $0x190] sm:$0xff] %vm749, %v704
        %776 = vst.msk [vmem:[#allocation3 + $0x1a0] sm:$0xff] %vm749, %v706
        %777 = vst.msk [vmem:[#allocation3 + $0x1b0] sm:$0xff] %vm749, %v708
        %778 = vst.msk [vmem:[#allocation3 + $0x1c0] sm:$0xff] %vm749, %v710
        %779 = vst.msk [vmem:[#allocation3 + $0x1d0] sm:$0xff] %vm749, %v712
        %780 = vst.msk [vmem:[#allocation3 + $0x1e0] sm:$0xff] %vm749, %v714
        %781 = vst.msk [vmem:[#allocation3 + $0x1f0] sm:$0xff] %vm749, %v716
        %vm782 = vcmask 1045504
        %v783 = vrot.slane %v438, 2
        %v784 = vrot.slane %v439, 2
        %v785 = vsel %vm782, %v783, %v784
        %v786 = vrot.slane %v440, 2
        %v787 = vsel %vm782, %v784, %v786
        %v788 = vrot.slane %v441, 2
        %v789 = vrot.slane %v442, 2
        %v790 = vsel %vm782, %v788, %v789
        %v791 = vrot.slane %v443, 2
        %v792 = vsel %vm782, %v789, %v791
        %v793 = vrot.slane %v444, 2
        %v794 = vrot.slane %v445, 2
        %v795 = vsel %vm782, %v793, %v794
        %v796 = vrot.slane %v446, 2
        %v797 = vsel %vm782, %v794, %v796
        %v798 = vrot.slane %v447, 2
        %v799 = vrot.slane %v448, 2
        %v800 = vsel %vm782, %v798, %v799
        %v801 = vrot.slane %v449, 2
        %v802 = vsel %vm782, %v799, %v801
        %v803 = vrot.slane %v450, 2
        %v804 = vrot.slane %v451, 2
        %v805 = vsel %vm782, %v803, %v804
        %v806 = vrot.slane %v452, 2
        %v807 = vsel %vm782, %v804, %v806
        %v808 = vrot.slane %v453, 2
        %v809 = vrot.slane %v454, 2
        %v810 = vsel %vm782, %v808, %v809
        %v811 = vrot.slane %v455, 2
        %v812 = vsel %vm782, %v809, %v811
        %v813 = vrot.slane %v456, 2
        %v814 = vrot.slane %v457, 2
        %v815 = vsel %vm782, %v813, %v814
        %v816 = vrot.slane %v458, 2
        %v817 = vsel %vm782, %v814, %v816
        %v818 = vrot.slane %v459, 2
        %v819 = vrot.slane %v460, 2
        %v820 = vsel %vm782, %v818, %v819
        %v821 = vrot.slane %v461, 2
        %v822 = vsel %vm782, %v819, %v821
        %v823 = vrot.slane %v462, 2
        %v824 = vrot.slane %v463, 2
        %v825 = vsel %vm782, %v823, %v824
        %v826 = vrot.slane %v464, 2
        %v827 = vsel %vm782, %v824, %v826
        %v828 = vrot.slane %v465, 2
        %v829 = vrot.slane %v466, 2
        %v830 = vsel %vm782, %v828, %v829
        %v831 = vrot.slane %v467, 2
        %v832 = vsel %vm782, %v829, %v831
        %v833 = vrot.slane %v468, 2
        %v834 = vrot.slane %v469, 2
        %v835 = vsel %vm782, %v833, %v834
        %v836 = vrot.slane %v470, 2
        %v837 = vsel %vm782, %v834, %v836
        %v838 = vrot.slane %v471, 2
        %v839 = vrot.slane %v472, 2
        %v840 = vsel %vm782, %v838, %v839
        %v841 = vrot.slane %v473, 2
        %v842 = vsel %vm782, %v839, %v841
        %v843 = vrot.slane %v474, 2
        %v844 = vrot.slane %v475, 2
        %v845 = vsel %vm782, %v843, %v844
        %v846 = vrot.slane %v476, 2
        %v847 = vsel %vm782, %v844, %v846
        %v848 = vrot.slane %v477, 2
        %v849 = vrot.slane %v478, 2
        %v850 = vsel %vm782, %v848, %v849
        %v851 = vrot.slane %v479, 2
        %v852 = vsel %vm782, %v849, %v851
        %v853 = vrot.slane %v480, 2
        %v854 = vrot.slane %v481, 2
        %v855 = vsel %vm782, %v853, %v854
        %v856 = vrot.slane %v482, 2
        %v857 = vsel %vm782, %v854, %v856
        %v858 = vrot.slane %v483, 2
        %v859 = vrot.slane %v484, 2
        %v860 = vsel %vm782, %v858, %v859
        %v861 = vrot.slane %v485, 2
        %v862 = vsel %vm782, %v859, %v861
        %863 = vrot.lane.b32.xlu0 %v785, 6
        %v864 = vpop.permute.xlu0 %863
        %865 = vrot.lane.b32.xlu0 %v787, 6
        %v866 = vpop.permute.xlu0 %865
        %867 = vrot.lane.b32.xlu0 %v790, 6
        %v868 = vpop.permute.xlu0 %867
        %869 = vrot.lane.b32.xlu0 %v792, 6
        %v870 = vpop.permute.xlu0 %869
        %871 = vrot.lane.b32.xlu0 %v795, 6
        %v872 = vpop.permute.xlu0 %871
        %873 = vrot.lane.b32.xlu0 %v797, 6
        %v874 = vpop.permute.xlu0 %873
        %875 = vrot.lane.b32.xlu0 %v800, 6
        %v876 = vpop.permute.xlu0 %875
        %877 = vrot.lane.b32.xlu0 %v802, 6
        %v878 = vpop.permute.xlu0 %877
        %879 = vrot.lane.b32.xlu0 %v805, 6
        %v880 = vpop.permute.xlu0 %879
        %881 = vrot.lane.b32.xlu0 %v807, 6
        %v882 = vpop.permute.xlu0 %881
        %883 = vrot.lane.b32.xlu0 %v810, 6
        %v884 = vpop.permute.xlu0 %883
        %885 = vrot.lane.b32.xlu0 %v812, 6
        %v886 = vpop.permute.xlu0 %885
        %887 = vrot.lane.b32.xlu0 %v815, 6
        %v888 = vpop.permute.xlu0 %887
        %889 = vrot.lane.b32.xlu0 %v817, 6
        %v890 = vpop.permute.xlu0 %889
        %891 = vrot.lane.b32.xlu0 %v820, 6
        %v892 = vpop.permute.xlu0 %891
        %893 = vrot.lane.b32.xlu0 %v822, 6
        %v894 = vpop.permute.xlu0 %893
        %895 = vrot.lane.b32.xlu0 %v825, 6
        %v896 = vpop.permute.xlu0 %895
        %897 = vrot.lane.b32.xlu0 %v827, 6
        %v898 = vpop.permute.xlu0 %897
        %899 = vrot.lane.b32.xlu0 %v830, 6
        %v900 = vpop.permute.xlu0 %899
        %901 = vrot.lane.b32.xlu0 %v832, 6
        %v902 = vpop.permute.xlu0 %901
        %903 = vrot.lane.b32.xlu0 %v835, 6
        %v904 = vpop.permute.xlu0 %903
        %905 = vrot.lane.b32.xlu0 %v837, 6
        %v906 = vpop.permute.xlu0 %905
        %907 = vrot.lane.b32.xlu0 %v840, 6
        %v908 = vpop.permute.xlu0 %907
        %909 = vrot.lane.b32.xlu0 %v842, 6
        %v910 = vpop.permute.xlu0 %909
        %911 = vrot.lane.b32.xlu0 %v845, 6
        %v912 = vpop.permute.xlu0 %911
        %913 = vrot.lane.b32.xlu0 %v847, 6
        %v914 = vpop.permute.xlu0 %913
        %915 = vrot.lane.b32.xlu0 %v850, 6
        %v916 = vpop.permute.xlu0 %915
        %917 = vrot.lane.b32.xlu0 %v852, 6
        %v918 = vpop.permute.xlu0 %917
        %919 = vrot.lane.b32.xlu0 %v855, 6
        %v920 = vpop.permute.xlu0 %919
        %921 = vrot.lane.b32.xlu0 %v857, 6
        %v922 = vpop.permute.xlu0 %921
        %923 = vrot.lane.b32.xlu0 %v860, 6
        %v924 = vpop.permute.xlu0 %923
        %925 = vrot.lane.b32.xlu0 %v862, 6
        %v926 = vpop.permute.xlu0 %925
        %vm959 = vcmask 72752
        %960 = vst.msk [vmem:[#allocation3] sm:$0xff] %vm959, %v864
        %961 = vst.msk [vmem:[#allocation3 + $0x10] sm:$0xff] %vm959, %v866
        %962 = vst.msk [vmem:[#allocation3 + $0x20] sm:$0xff] %vm959, %v868
        %963 = vst.msk [vmem:[#allocation3 + $0x30] sm:$0xff] %vm959, %v870
        %964 = vst.msk [vmem:[#allocation3 + $0x40] sm:$0xff] %vm959, %v872
        %965 = vst.msk [vmem:[#allocation3 + $0x50] sm:$0xff] %vm959, %v874
        %966 = vst.msk [vmem:[#allocation3 + $0x60] sm:$0xff] %vm959, %v876
        %967 = vst.msk [vmem:[#allocation3 + $0x70] sm:$0xff] %vm959, %v878
        %968 = vst.msk [vmem:[#allocation3 + $0x80] sm:$0xff] %vm959, %v880
        %969 = vst.msk [vmem:[#allocation3 + $0x90] sm:$0xff] %vm959, %v882
        %970 = vst.msk [vmem:[#allocation3 + $0xa0] sm:$0xff] %vm959, %v884
        %971 = vst.msk [vmem:[#allocation3 + $0xb0] sm:$0xff] %vm959, %v886
        %972 = vst.msk [vmem:[#allocation3 + $0xc0] sm:$0xff] %vm959, %v888
        %973 = vst.msk [vmem:[#allocation3 + $0xd0] sm:$0xff] %vm959, %v890
        %974 = vst.msk [vmem:[#allocation3 + $0xe0] sm:$0xff] %vm959, %v892
        %975 = vst.msk [vmem:[#allocation3 + $0xf0] sm:$0xff] %vm959, %v894
        %976 = vst.msk [vmem:[#allocation3 + $0x100] sm:$0xff] %vm959, %v896
        %977 = vst.msk [vmem:[#allocation3 + $0x110] sm:$0xff] %vm959, %v898
        %978 = vst.msk [vmem:[#allocation3 + $0x120] sm:$0xff] %vm959, %v900
        %979 = vst.msk [vmem:[#allocation3 + $0x130] sm:$0xff] %vm959, %v902
        %980 = vst.msk [vmem:[#allocation3 + $0x140] sm:$0xff] %vm959, %v904
        %981 = vst.msk [vmem:[#allocation3 + $0x150] sm:$0xff] %vm959, %v906
        %982 = vst.msk [vmem:[#allocation3 + $0x160] sm:$0xff] %vm959, %v908
        %983 = vst.msk [vmem:[#allocation3 + $0x170] sm:$0xff] %vm959, %v910
        %984 = vst.msk [vmem:[#allocation3 + $0x180] sm:$0xff] %vm959, %v912
        %985 = vst.msk [vmem:[#allocation3 + $0x190] sm:$0xff] %vm959, %v914
        %986 = vst.msk [vmem:[#allocation3 + $0x1a0] sm:$0xff] %vm959, %v916
        %987 = vst.msk [vmem:[#allocation3 + $0x1b0] sm:$0xff] %vm959, %v918
        %988 = vst.msk [vmem:[#allocation3 + $0x1c0] sm:$0xff] %vm959, %v920
        %989 = vst.msk [vmem:[#allocation3 + $0x1d0] sm:$0xff] %vm959, %v922
        %990 = vst.msk [vmem:[#allocation3 + $0x1e0] sm:$0xff] %vm959, %v924
        %991 = vst.msk [vmem:[#allocation3 + $0x1f0] sm:$0xff] %vm959, %v926
        %994 = vrot.lane.b32.xlu0 %v441, 9
        %v995 = vpop.permute.xlu0 %994
        %996 = vrot.lane.b32.xlu0 %v442, 9
        %v997 = vpop.permute.xlu0 %996
        %998 = vrot.lane.b32.xlu0 %v444, 9
        %v999 = vpop.permute.xlu0 %998
        %1000 = vrot.lane.b32.xlu0 %v445, 9
        %v1001 = vpop.permute.xlu0 %1000
        %1002 = vrot.lane.b32.xlu0 %v447, 9
        %v1003 = vpop.permute.xlu0 %1002
        %1004 = vrot.lane.b32.xlu0 %v448, 9
        %v1005 = vpop.permute.xlu0 %1004
        %1006 = vrot.lane.b32.xlu0 %v450, 9
        %v1007 = vpop.permute.xlu0 %1006
        %1008 = vrot.lane.b32.xlu0 %v451, 9
        %v1009 = vpop.permute.xlu0 %1008
        %1010 = vrot.lane.b32.xlu0 %v453, 9
        %v1011 = vpop.permute.xlu0 %1010
        %1012 = vrot.lane.b32.xlu0 %v454, 9
        %v1013 = vpop.permute.xlu0 %1012
        %1014 = vrot.lane.b32.xlu0 %v456, 9
        %v1015 = vpop.permute.xlu0 %1014
        %1016 = vrot.lane.b32.xlu0 %v457, 9
        %v1017 = vpop.permute.xlu0 %1016
        %1018 = vrot.lane.b32.xlu0 %v459, 9
        %v1019 = vpop.permute.xlu0 %1018
        %1020 = vrot.lane.b32.xlu0 %v460, 9
        %v1021 = vpop.permute.xlu0 %1020
        %1022 = vrot.lane.b32.xlu0 %v462, 9
        %v1023 = vpop.permute.xlu0 %1022
        %1024 = vrot.lane.b32.xlu0 %v463, 9
        %v1025 = vpop.permute.xlu0 %1024
        %1026 = vrot.lane.b32.xlu0 %v465, 9
        %v1027 = vpop.permute.xlu0 %1026
        %1028 = vrot.lane.b32.xlu0 %v466, 9
        %v1029 = vpop.permute.xlu0 %1028
        %1030 = vrot.lane.b32.xlu0 %v468, 9
        %v1031 = vpop.permute.xlu0 %1030
        %1032 = vrot.lane.b32.xlu0 %v469, 9
        %v1033 = vpop.permute.xlu0 %1032
        %1034 = vrot.lane.b32.xlu0 %v471, 9
        %v1035 = vpop.permute.xlu0 %1034
        %1036 = vrot.lane.b32.xlu0 %v472, 9
        %v1037 = vpop.permute.xlu0 %1036
        %1038 = vrot.lane.b32.xlu0 %v474, 9
        %v1039 = vpop.permute.xlu0 %1038
        %1040 = vrot.lane.b32.xlu0 %v475, 9
        %v1041 = vpop.permute.xlu0 %1040
        %1042 = vrot.lane.b32.xlu0 %v477, 9
        %v1043 = vpop.permute.xlu0 %1042
        %1044 = vrot.lane.b32.xlu0 %v478, 9
        %v1045 = vpop.permute.xlu0 %1044
        %1046 = vrot.lane.b32.xlu0 %v480, 9
        %v1047 = vpop.permute.xlu0 %1046
        %1048 = vrot.lane.b32.xlu0 %v481, 9
        %v1049 = vpop.permute.xlu0 %1048
        %1050 = vrot.lane.b32.xlu0 %v483, 9
        %v1051 = vpop.permute.xlu0 %1050
        %1052 = vrot.lane.b32.xlu0 %v484, 9
        %v1053 = vpop.permute.xlu0 %1052
        %1054 = vrot.lane.b32.xlu0 %v486, 9
        %v1055 = vpop.permute.xlu0 %1054
        %1056 = vrot.lane.b32.xlu0 %v487, 9
        %v1057 = vpop.permute.xlu0 %1056
        %vm1090 = vcmask 97352
        %1091 = vst.msk [vmem:[#allocation3] sm:$0xff] %vm1090, %v995
        %1092 = vst.msk [vmem:[#allocation3 + $0x10] sm:$0xff] %vm1090, %v997
        %1093 = vst.msk [vmem:[#allocation3 + $0x20] sm:$0xff] %vm1090, %v999
        %1094 = vst.msk [vmem:[#allocation3 + $0x30] sm:$0xff] %vm1090, %v1001
        %1095 = vst.msk [vmem:[#allocation3 + $0x40] sm:$0xff] %vm1090, %v1003
        %1096 = vst.msk [vmem:[#allocation3 + $0x50] sm:$0xff] %vm1090, %v1005
        %1097 = vst.msk [vmem:[#allocation3 + $0x60] sm:$0xff] %vm1090, %v1007
        %1098 = vst.msk [vmem:[#allocation3 + $0x70] sm:$0xff] %vm1090, %v1009
        %1099 = vst.msk [vmem:[#allocation3 + $0x80] sm:$0xff] %vm1090, %v1011
        %1100 = vst.msk [vmem:[#allocation3 + $0x90] sm:$0xff] %vm1090, %v1013
        %1101 = vst.msk [vmem:[#allocation3 + $0xa0] sm:$0xff] %vm1090, %v1015
        %1102 = vst.msk [vmem:[#allocation3 + $0xb0] sm:$0xff] %vm1090, %v1017
        %1103 = vst.msk [vmem:[#allocation3 + $0xc0] sm:$0xff] %vm1090, %v1019
        %1104 = vst.msk [vmem:[#allocation3 + $0xd0] sm:$0xff] %vm1090, %v1021
        %1105 = vst.msk [vmem:[#allocation3 + $0xe0] sm:$0xff] %vm1090, %v1023
        %1106 = vst.msk [vmem:[#allocation3 + $0xf0] sm:$0xff] %vm1090, %v1025
        %1107 = vst.msk [vmem:[#allocation3 + $0x100] sm:$0xff] %vm1090, %v1027
        %1108 = vst.msk [vmem:[#allocation3 + $0x110] sm:$0xff] %vm1090, %v1029
        %1109 = vst.msk [vmem:[#allocation3 + $0x120] sm:$0xff] %vm1090, %v1031
        %1110 = vst.msk [vmem:[#allocation3 + $0x130] sm:$0xff] %vm1090, %v1033
        %1111 = vst.msk [vmem:[#allocation3 + $0x140] sm:$0xff] %vm1090, %v1035
        %1112 = vst.msk [vmem:[#allocation3 + $0x150] sm:$0xff] %vm1090, %v1037
        %1113 = vst.msk [vmem:[#allocation3 + $0x160] sm:$0xff] %vm1090, %v1039
        %1114 = vst.msk [vmem:[#allocation3 + $0x170] sm:$0xff] %vm1090, %v1041
        %1115 = vst.msk [vmem:[#allocation3 + $0x180] sm:$0xff] %vm1090, %v1043
        %1116 = vst.msk [vmem:[#allocation3 + $0x190] sm:$0xff] %vm1090, %v1045
        %1117 = vst.msk [vmem:[#allocation3 + $0x1a0] sm:$0xff] %vm1090, %v1047
        %1118 = vst.msk [vmem:[#allocation3 + $0x1b0] sm:$0xff] %vm1090, %v1049
        %1119 = vst.msk [vmem:[#allocation3 + $0x1c0] sm:$0xff] %vm1090, %v1051
        %1120 = vst.msk [vmem:[#allocation3 + $0x1d0] sm:$0xff] %vm1090, %v1053
        %1121 = vst.msk [vmem:[#allocation3 + $0x1e0] sm:$0xff] %vm1090, %v1055
        %1122 = vst.msk [vmem:[#allocation3 + $0x1f0] sm:$0xff] %vm1090, %v1057
        %v1124 = vrot.slane %v486, 1
        %v1125 = vrot.slane %v487, 1
        %v1126 = vsel %vm572, %v1124, %v1125
        %v1127 = vrot.slane %v488, 1
        %v1128 = vsel %vm572, %v1125, %v1127
        %1129 = vrot.lane.b32.xlu0 %v580, 12
        %v1130 = vpop.permute.xlu0 %1129
        %1131 = vrot.lane.b32.xlu0 %v582, 12
        %v1132 = vpop.permute.xlu0 %1131
        %1133 = vrot.lane.b32.xlu0 %v585, 12
        %v1134 = vpop.permute.xlu0 %1133
        %1135 = vrot.lane.b32.xlu0 %v587, 12
        %v1136 = vpop.permute.xlu0 %1135
        %1137 = vrot.lane.b32.xlu0 %v590, 12
        %v1138 = vpop.permute.xlu0 %1137
        %1139 = vrot.lane.b32.xlu0 %v592, 12
        %v1140 = vpop.permute.xlu0 %1139
        %1141 = vrot.lane.b32.xlu0 %v595, 12
        %v1142 = vpop.permute.xlu0 %1141
        %1143 = vrot.lane.b32.xlu0 %v597, 12
        %v1144 = vpop.permute.xlu0 %1143
        %1145 = vrot.lane.b32.xlu0 %v600, 12
        %v1146 = vpop.permute.xlu0 %1145
        %1147 = vrot.lane.b32.xlu0 %v602, 12
        %v1148 = vpop.permute.xlu0 %1147
        %1149 = vrot.lane.b32.xlu0 %v605, 12
        %v1150 = vpop.permute.xlu0 %1149
        %1151 = vrot.lane.b32.xlu0 %v607, 12
        %v1152 = vpop.permute.xlu0 %1151
        %1153 = vrot.lane.b32.xlu0 %v610, 12
        %v1154 = vpop.permute.xlu0 %1153
        %1155 = vrot.lane.b32.xlu0 %v612, 12
        %v1156 = vpop.permute.xlu0 %1155
        %1157 = vrot.lane.b32.xlu0 %v615, 12
        %v1158 = vpop.permute.xlu0 %1157
        %1159 = vrot.lane.b32.xlu0 %v617, 12
        %v1160 = vpop.permute.xlu0 %1159
        %1161 = vrot.lane.b32.xlu0 %v620, 12
        %v1162 = vpop.permute.xlu0 %1161
        %1163 = vrot.lane.b32.xlu0 %v622, 12
        %v1164 = vpop.permute.xlu0 %1163
        %1165 = vrot.lane.b32.xlu0 %v625, 12
        %v1166 = vpop.permute.xlu0 %1165
        %1167 = vrot.lane.b32.xlu0 %v627, 12
        %v1168 = vpop.permute.xlu0 %1167
        %1169 = vrot.lane.b32.xlu0 %v630, 12
        %v1170 = vpop.permute.xlu0 %1169
        %1171 = vrot.lane.b32.xlu0 %v632, 12
        %v1172 = vpop.permute.xlu0 %1171
        %1173 = vrot.lane.b32.xlu0 %v635, 12
        %v1174 = vpop.permute.xlu0 %1173
        %1175 = vrot.lane.b32.xlu0 %v637, 12
        %v1176 = vpop.permute.xlu0 %1175
        %1177 = vrot.lane.b32.xlu0 %v640, 12
        %v1178 = vpop.permute.xlu0 %1177
        %1179 = vrot.lane.b32.xlu0 %v642, 12
        %v1180 = vpop.permute.xlu0 %1179
        %1181 = vrot.lane.b32.xlu0 %v645, 12
        %v1182 = vpop.permute.xlu0 %1181
        %1183 = vrot.lane.b32.xlu0 %v647, 12
        %v1184 = vpop.permute.xlu0 %1183
        %1185 = vrot.lane.b32.xlu0 %v650, 12
        %v1186 = vpop.permute.xlu0 %1185
        %1187 = vrot.lane.b32.xlu0 %v652, 12
        %v1188 = vpop.permute.xlu0 %1187
        %1189 = vrot.lane.b32.xlu0 %v1126, 12
        %v1190 = vpop.permute.xlu0 %1189
        %1191 = vrot.lane.b32.xlu0 %v1128, 12
        %v1192 = vpop.permute.xlu0 %1191
        %vm1225 = vcmask 121952
        %1226 = vst.msk [vmem:[#allocation3] sm:$0xff] %vm1225, %v1130
        %1227 = vst.msk [vmem:[#allocation3 + $0x10] sm:$0xff] %vm1225, %v1132
        %1228 = vst.msk [vmem:[#allocation3 + $0x20] sm:$0xff] %vm1225, %v1134
        %1229 = vst.msk [vmem:[#allocation3 + $0x30] sm:$0xff] %vm1225, %v1136
        %1230 = vst.msk [vmem:[#allocation3 + $0x40] sm:$0xff] %vm1225, %v1138
        %1231 = vst.msk [vmem:[#allocation3 + $0x50] sm:$0xff] %vm1225, %v1140
        %1232 = vst.msk [vmem:[#allocation3 + $0x60] sm:$0xff] %vm1225, %v1142
        %1233 = vst.msk [vmem:[#allocation3 + $0x70] sm:$0xff] %vm1225, %v1144
        %1234 = vst.msk [vmem:[#allocation3 + $0x80] sm:$0xff] %vm1225, %v1146
        %1235 = vst.msk [vmem:[#allocation3 + $0x90] sm:$0xff] %vm1225, %v1148
        %1236 = vst.msk [vmem:[#allocation3 + $0xa0] sm:$0xff] %vm1225, %v1150
        %1237 = vst.msk [vmem:[#allocation3 + $0xb0] sm:$0xff] %vm1225, %v1152
        %1238 = vst.msk [vmem:[#allocation3 + $0xc0] sm:$0xff] %vm1225, %v1154
        %1239 = vst.msk [vmem:[#allocation3 + $0xd0] sm:$0xff] %vm1225, %v1156
        %1240 = vst.msk [vmem:[#allocation3 + $0xe0] sm:$0xff] %vm1225, %v1158
        %1241 = vst.msk [vmem:[#allocation3 + $0xf0] sm:$0xff] %vm1225, %v1160
        %1242 = vst.msk [vmem:[#allocation3 + $0x100] sm:$0xff] %vm1225, %v1162
        %1243 = vst.msk [vmem:[#allocation3 + $0x110] sm:$0xff] %vm1225, %v1164
        %1244 = vst.msk [vmem:[#allocation3 + $0x120] sm:$0xff] %vm1225, %v1166
        %1245 = vst.msk [vmem:[#allocation3 + $0x130] sm:$0xff] %vm1225, %v1168
        %1246 = vst.msk [vmem:[#allocation3 + $0x140] sm:$0xff] %vm1225, %v1170
        %1247 = vst.msk [vmem:[#allocation3 + $0x150] sm:$0xff] %vm1225, %v1172
        %1248 = vst.msk [vmem:[#allocation3 + $0x160] sm:$0xff] %vm1225, %v1174
        %1249 = vst.msk [vmem:[#allocation3 + $0x170] sm:$0xff] %vm1225, %v1176
        %1250 = vst.msk [vmem:[#allocation3 + $0x180] sm:$0xff] %vm1225, %v1178
        %1251 = vst.msk [vmem:[#allocation3 + $0x190] sm:$0xff] %vm1225, %v1180
        %1252 = vst.msk [vmem:[#allocation3 + $0x1a0] sm:$0xff] %vm1225, %v1182
        %1253 = vst.msk [vmem:[#allocation3 + $0x1b0] sm:$0xff] %vm1225, %v1184
        %1254 = vst.msk [vmem:[#allocation3 + $0x1c0] sm:$0xff] %vm1225, %v1186
        %1255 = vst.msk [vmem:[#allocation3 + $0x1d0] sm:$0xff] %vm1225, %v1188
        %1256 = vst.msk [vmem:[#allocation3 + $0x1e0] sm:$0xff] %vm1225, %v1190
        %1257 = vst.msk [vmem:[#allocation3 + $0x1f0] sm:$0xff] %vm1225, %v1192
        %v1258 = vrot.slane %v486, 2
        %v1259 = vrot.slane %v487, 2
        %v1260 = vsel %vm782, %v1258, %v1259
        %v1261 = vrot.slane %v488, 2
        %v1262 = vsel %vm782, %v1259, %v1261
        %1263 = vrot.lane.b32.xlu0 %v790, 15
        %v1264 = vpop.permute.xlu0 %1263
        %1265 = vrot.lane.b32.xlu0 %v792, 15
        %v1266 = vpop.permute.xlu0 %1265
        %1267 = vrot.lane.b32.xlu0 %v795, 15
        %v1268 = vpop.permute.xlu0 %1267
        %1269 = vrot.lane.b32.xlu0 %v797, 15
        %v1270 = vpop.permute.xlu0 %1269
        %1271 = vrot.lane.b32.xlu0 %v800, 15
        %v1272 = vpop.permute.xlu0 %1271
        %1273 = vrot.lane.b32.xlu0 %v802, 15
        %v1274 = vpop.permute.xlu0 %1273
        %1275 = vrot.lane.b32.xlu0 %v805, 15
        %v1276 = vpop.permute.xlu0 %1275
        %1277 = vrot.lane.b32.xlu0 %v807, 15
        %v1278 = vpop.permute.xlu0 %1277
        %1279 = vrot.lane.b32.xlu0 %v810, 15
        %v1280 = vpop.permute.xlu0 %1279
        %1281 = vrot.lane.b32.xlu0 %v812, 15
        %v1282 = vpop.permute.xlu0 %1281
        %1283 = vrot.lane.b32.xlu0 %v815, 15
        %v1284 = vpop.permute.xlu0 %1283
        %1285 = vrot.lane.b32.xlu0 %v817, 15
        %v1286 = vpop.permute.xlu0 %1285
        %1287 = vrot.lane.b32.xlu0 %v820, 15
        %v1288 = vpop.permute.xlu0 %1287
        %1289 = vrot.lane.b32.xlu0 %v822, 15
        %v1290 = vpop.permute.xlu0 %1289
        %1291 = vrot.lane.b32.xlu0 %v825, 15
        %v1292 = vpop.permute.xlu0 %1291
        %1293 = vrot.lane.b32.xlu0 %v827, 15
        %v1294 = vpop.permute.xlu0 %1293
        %1295 = vrot.lane.b32.xlu0 %v830, 15
        %v1296 = vpop.permute.xlu0 %1295
        %1297 = vrot.lane.b32.xlu0 %v832, 15
        %v1298 = vpop.permute.xlu0 %1297
        %1299 = vrot.lane.b32.xlu0 %v835, 15
        %v1300 = vpop.permute.xlu0 %1299
        %1301 = vrot.lane.b32.xlu0 %v837, 15
        %v1302 = vpop.permute.xlu0 %1301
        %1303 = vrot.lane.b32.xlu0 %v840, 15
        %v1304 = vpop.permute.xlu0 %1303
        %1305 = vrot.lane.b32.xlu0 %v842, 15
        %v1306 = vpop.permute.xlu0 %1305
        %1307 = vrot.lane.b32.xlu0 %v845, 15
        %v1308 = vpop.permute.xlu0 %1307
        %1309 = vrot.lane.b32.xlu0 %v847, 15
        %v1310 = vpop.permute.xlu0 %1309
        %1311 = vrot.lane.b32.xlu0 %v850, 15
        %v1312 = vpop.permute.xlu0 %1311
        %1313 = vrot.lane.b32.xlu0 %v852, 15
        %v1314 = vpop.permute.xlu0 %1313
        %1315 = vrot.lane.b32.xlu0 %v855, 15
        %v1316 = vpop.permute.xlu0 %1315
        %1317 = vrot.lane.b32.xlu0 %v857, 15
        %v1318 = vpop.permute.xlu0 %1317
        %1319 = vrot.lane.b32.xlu0 %v860, 15
        %v1320 = vpop.permute.xlu0 %1319
        %1321 = vrot.lane.b32.xlu0 %v862, 15
        %v1322 = vpop.permute.xlu0 %1321
        %1323 = vrot.lane.b32.xlu0 %v1260, 15
        %v1324 = vpop.permute.xlu0 %1323
        %1325 = vrot.lane.b32.xlu0 %v1262, 15
        %v1326 = vpop.permute.xlu0 %1325
        %vm1359 = vcmask 146552
        %1360 = vst.msk [vmem:[#allocation3] sm:$0xff] %vm1359, %v1264
        %1361 = vst.msk [vmem:[#allocation3 + $0x10] sm:$0xff] %vm1359, %v1266
        %1362 = vst.msk [vmem:[#allocation3 + $0x20] sm:$0xff] %vm1359, %v1268
        %1363 = vst.msk [vmem:[#allocation3 + $0x30] sm:$0xff] %vm1359, %v1270
        %1364 = vst.msk [vmem:[#allocation3 + $0x40] sm:$0xff] %vm1359, %v1272
        %1365 = vst.msk [vmem:[#allocation3 + $0x50] sm:$0xff] %vm1359, %v1274
        %1366 = vst.msk [vmem:[#allocation3 + $0x60] sm:$0xff] %vm1359, %v1276
        %1367 = vst.msk [vmem:[#allocation3 + $0x70] sm:$0xff] %vm1359, %v1278
        %1368 = vst.msk [vmem:[#allocation3 + $0x80] sm:$0xff] %vm1359, %v1280
        %1369 = vst.msk [vmem:[#allocation3 + $0x90] sm:$0xff] %vm1359, %v1282
        %1370 = vst.msk [vmem:[#allocation3 + $0xa0] sm:$0xff] %vm1359, %v1284
        %1371 = vst.msk [vmem:[#allocation3 + $0xb0] sm:$0xff] %vm1359, %v1286
        %1372 = vst.msk [vmem:[#allocation3 + $0xc0] sm:$0xff] %vm1359, %v1288
        %1373 = vst.msk [vmem:[#allocation3 + $0xd0] sm:$0xff] %vm1359, %v1290
        %1374 = vst.msk [vmem:[#allocation3 + $0xe0] sm:$0xff] %vm1359, %v1292
        %1375 = vst.msk [vmem:[#allocation3 + $0xf0] sm:$0xff] %vm1359, %v1294
        %1376 = vst.msk [vmem:[#allocation3 + $0x100] sm:$0xff] %vm1359, %v1296
        %1377 = vst.msk [vmem:[#allocation3 + $0x110] sm:$0xff] %vm1359, %v1298
        %1378 = vst.msk [vmem:[#allocation3 + $0x120] sm:$0xff] %vm1359, %v1300
        %1379 = vst.msk [vmem:[#allocation3 + $0x130] sm:$0xff] %vm1359, %v1302
        %1380 = vst.msk [vmem:[#allocation3 + $0x140] sm:$0xff] %vm1359, %v1304
        %1381 = vst.msk [vmem:[#allocation3 + $0x150] sm:$0xff] %vm1359, %v1306
        %1382 = vst.msk [vmem:[#allocation3 + $0x160] sm:$0xff] %vm1359, %v1308
        %1383 = vst.msk [vmem:[#allocation3 + $0x170] sm:$0xff] %vm1359, %v1310
        %1384 = vst.msk [vmem:[#allocation3 + $0x180] sm:$0xff] %vm1359, %v1312
        %1385 = vst.msk [vmem:[#allocation3 + $0x190] sm:$0xff] %vm1359, %v1314
        %1386 = vst.msk [vmem:[#allocation3 + $0x1a0] sm:$0xff] %vm1359, %v1316
        %1387 = vst.msk [vmem:[#allocation3 + $0x1b0] sm:$0xff] %vm1359, %v1318
        %1388 = vst.msk [vmem:[#allocation3 + $0x1c0] sm:$0xff] %vm1359, %v1320
        %1389 = vst.msk [vmem:[#allocation3 + $0x1d0] sm:$0xff] %vm1359, %v1322
        %1390 = vst.msk [vmem:[#allocation3 + $0x1e0] sm:$0xff] %vm1359, %v1324
        %1391 = vst.msk [vmem:[#allocation3 + $0x1f0] sm:$0xff] %vm1359, %v1326
        %1394 = vrot.lane.b32.xlu0 %v444, 18
        %v1395 = vpop.permute.xlu0 %1394
        %1396 = vrot.lane.b32.xlu0 %v445, 18
        %v1397 = vpop.permute.xlu0 %1396
        %1398 = vrot.lane.b32.xlu0 %v447, 18
        %v1399 = vpop.permute.xlu0 %1398
        %1400 = vrot.lane.b32.xlu0 %v448, 18
        %v1401 = vpop.permute.xlu0 %1400
        %1402 = vrot.lane.b32.xlu0 %v450, 18
        %v1403 = vpop.permute.xlu0 %1402
        %1404 = vrot.lane.b32.xlu0 %v451, 18
        %v1405 = vpop.permute.xlu0 %1404
        %1406 = vrot.lane.b32.xlu0 %v453, 18
        %v1407 = vpop.permute.xlu0 %1406
        %1408 = vrot.lane.b32.xlu0 %v454, 18
        %v1409 = vpop.permute.xlu0 %1408
        %1410 = vrot.lane.b32.xlu0 %v456, 18
        %v1411 = vpop.permute.xlu0 %1410
        %1412 = vrot.lane.b32.xlu0 %v457, 18
        %v1413 = vpop.permute.xlu0 %1412
        %1414 = vrot.lane.b32.xlu0 %v459, 18
        %v1415 = vpop.permute.xlu0 %1414
        %1416 = vrot.lane.b32.xlu0 %v460, 18
        %v1417 = vpop.permute.xlu0 %1416
        %1418 = vrot.lane.b32.xlu0 %v462, 18
        %v1419 = vpop.permute.xlu0 %1418
        %1420 = vrot.lane.b32.xlu0 %v463, 18
        %v1421 = vpop.permute.xlu0 %1420
        %1422 = vrot.lane.b32.xlu0 %v465, 18
        %v1423 = vpop.permute.xlu0 %1422
        %1424 = vrot.lane.b32.xlu0 %v466, 18
        %v1425 = vpop.permute.xlu0 %1424
        %1426 = vrot.lane.b32.xlu0 %v468, 18
        %v1427 = vpop.permute.xlu0 %1426
        %1428 = vrot.lane.b32.xlu0 %v469, 18
        %v1429 = vpop.permute.xlu0 %1428
        %1430 = vrot.lane.b32.xlu0 %v471, 18
        %v1431 = vpop.permute.xlu0 %1430
        %1432 = vrot.lane.b32.xlu0 %v472, 18
        %v1433 = vpop.permute.xlu0 %1432
        %1434 = vrot.lane.b32.xlu0 %v474, 18
        %v1435 = vpop.permute.xlu0 %1434
        %1436 = vrot.lane.b32.xlu0 %v475, 18
        %v1437 = vpop.permute.xlu0 %1436
        %1438 = vrot.lane.b32.xlu0 %v477, 18
        %v1439 = vpop.permute.xlu0 %1438
        %1440 = vrot.lane.b32.xlu0 %v478, 18
        %v1441 = vpop.permute.xlu0 %1440
        %1442 = vrot.lane.b32.xlu0 %v480, 18
        %v1443 = vpop.permute.xlu0 %1442
        %1444 = vrot.lane.b32.xlu0 %v481, 18
        %v1445 = vpop.permute.xlu0 %1444
        %1446 = vrot.lane.b32.xlu0 %v483, 18
        %v1447 = vpop.permute.xlu0 %1446
        %1448 = vrot.lane.b32.xlu0 %v484, 18
        %v1449 = vpop.permute.xlu0 %1448
        %1450 = vrot.lane.b32.xlu0 %v486, 18
        %v1451 = vpop.permute.xlu0 %1450
        %1452 = vrot.lane.b32.xlu0 %v487, 18
        %v1453 = vpop.permute.xlu0 %1452
        %1454 = vrot.lane.b32.xlu0 %v489, 18
        %v1455 = vpop.permute.xlu0 %1454
        %1456 = vrot.lane.b32.xlu0 %v490, 18
        %v1457 = vpop.permute.xlu0 %1456
        %vm1490 = vcmask 171152
        %1491 = vst.msk [vmem:[#allocation3] sm:$0xff] %vm1490, %v1395
        %1492 = vst.msk [vmem:[#allocation3 + $0x10] sm:$0xff] %vm1490, %v1397
        %1493 = vst.msk [vmem:[#allocation3 + $0x20] sm:$0xff] %vm1490, %v1399
        %1494 = vst.msk [vmem:[#allocation3 + $0x30] sm:$0xff] %vm1490, %v1401
        %1495 = vst.msk [vmem:[#allocation3 + $0x40] sm:$0xff] %vm1490, %v1403
        %1496 = vst.msk [vmem:[#allocation3 + $0x50] sm:$0xff] %vm1490, %v1405
        %1497 = vst.msk [vmem:[#allocation3 + $0x60] sm:$0xff] %vm1490, %v1407
        %1498 = vst.msk [vmem:[#allocation3 + $0x70] sm:$0xff] %vm1490, %v1409
        %1499 = vst.msk [vmem:[#allocation3 + $0x80] sm:$0xff] %vm1490, %v1411
        %1500 = vst.msk [vmem:[#allocation3 + $0x90] sm:$0xff] %vm1490, %v1413
        %1501 = vst.msk [vmem:[#allocation3 + $0xa0] sm:$0xff] %vm1490, %v1415
        %1502 = vst.msk [vmem:[#allocation3 + $0xb0] sm:$0xff] %vm1490, %v1417
        %1503 = vst.msk [vmem:[#allocation3 + $0xc0] sm:$0xff] %vm1490, %v1419
        %1504 = vst.msk [vmem:[#allocation3 + $0xd0] sm:$0xff] %vm1490, %v1421
        %1505 = vst.msk [vmem:[#allocation3 + $0xe0] sm:$0xff] %vm1490, %v1423
        %1506 = vst.msk [vmem:[#allocation3 + $0xf0] sm:$0xff] %vm1490, %v1425
        %1507 = vst.msk [vmem:[#allocation3 + $0x100] sm:$0xff] %vm1490, %v1427
        %1508 = vst.msk [vmem:[#allocation3 + $0x110] sm:$0xff] %vm1490, %v1429
        %1509 = vst.msk [vmem:[#allocation3 + $0x120] sm:$0xff] %vm1490, %v1431
        %1510 = vst.msk [vmem:[#allocation3 + $0x130] sm:$0xff] %vm1490, %v1433
        %1511 = vst.msk [vmem:[#allocation3 + $0x140] sm:$0xff] %vm1490, %v1435
        %1512 = vst.msk [vmem:[#allocation3 + $0x150] sm:$0xff] %vm1490, %v1437
        %1513 = vst.msk [vmem:[#allocation3 + $0x160] sm:$0xff] %vm1490, %v1439
        %1514 = vst.msk [vmem:[#allocation3 + $0x170] sm:$0xff] %vm1490, %v1441
        %1515 = vst.msk [vmem:[#allocation3 + $0x180] sm:$0xff] %vm1490, %v1443
        %1516 = vst.msk [vmem:[#allocation3 + $0x190] sm:$0xff] %vm1490, %v1445
        %1517 = vst.msk [vmem:[#allocation3 + $0x1a0] sm:$0xff] %vm1490, %v1447
        %1518 = vst.msk [vmem:[#allocation3 + $0x1b0] sm:$0xff] %vm1490, %v1449
        %1519 = vst.msk [vmem:[#allocation3 + $0x1c0] sm:$0xff] %vm1490, %v1451
        %1520 = vst.msk [vmem:[#allocation3 + $0x1d0] sm:$0xff] %vm1490, %v1453
        %1521 = vst.msk [vmem:[#allocation3 + $0x1e0] sm:$0xff] %vm1490, %v1455
        %1522 = vst.msk [vmem:[#allocation3 + $0x1f0] sm:$0xff] %vm1490, %v1457
        %v1524 = vrot.slane %v489, 1
        %v1525 = vrot.slane %v490, 1
        %v1526 = vsel %vm572, %v1524, %v1525
        %v1527 = vrot.slane %v491, 1
        %v1528 = vsel %vm572, %v1525, %v1527
        %1529 = vrot.lane.b32.xlu0 %v585, 21
        %v1530 = vpop.permute.xlu0 %1529
        %1531 = vrot.lane.b32.xlu0 %v587, 21
        %v1532 = vpop.permute.xlu0 %1531
        %1533 = vrot.lane.b32.xlu0 %v590, 21
        %v1534 = vpop.permute.xlu0 %1533
        %1535 = vrot.lane.b32.xlu0 %v592, 21
        %v1536 = vpop.permute.xlu0 %1535
        %1537 = vrot.lane.b32.xlu0 %v595, 21
        %v1538 = vpop.permute.xlu0 %1537
        %1539 = vrot.lane.b32.xlu0 %v597, 21
        %v1540 = vpop.permute.xlu0 %1539
        %1541 = vrot.lane.b32.xlu0 %v600, 21
        %v1542 = vpop.permute.xlu0 %1541
        %1543 = vrot.lane.b32.xlu0 %v602, 21
        %v1544 = vpop.permute.xlu0 %1543
        %1545 = vrot.lane.b32.xlu0 %v605, 21
        %v1546 = vpop.permute.xlu0 %1545
        %1547 = vrot.lane.b32.xlu0 %v607, 21
        %v1548 = vpop.permute.xlu0 %1547
        %1549 = vrot.lane.b32.xlu0 %v610, 21
        %v1550 = vpop.permute.xlu0 %1549
        %1551 = vrot.lane.b32.xlu0 %v612, 21
        %v1552 = vpop.permute.xlu0 %1551
        %1553 = vrot.lane.b32.xlu0 %v615, 21
        %v1554 = vpop.permute.xlu0 %1553
        %1555 = vrot.lane.b32.xlu0 %v617, 21
        %v1556 = vpop.permute.xlu0 %1555
        %1557 = vrot.lane.b32.xlu0 %v620, 21
        %v1558 = vpop.permute.xlu0 %1557
        %1559 = vrot.lane.b32.xlu0 %v622, 21
        %v1560 = vpop.permute.xlu0 %1559
        %1561 = vrot.lane.b32.xlu0 %v625, 21
        %v1562 = vpop.permute.xlu0 %1561
        %1563 = vrot.lane.b32.xlu0 %v627, 21
        %v1564 = vpop.permute.xlu0 %1563
        %1565 = vrot.lane.b32.xlu0 %v630, 21
        %v1566 = vpop.permute.xlu0 %1565
        %1567 = vrot.lane.b32.xlu0 %v632, 21
        %v1568 = vpop.permute.xlu0 %1567
        %1569 = vrot.lane.b32.xlu0 %v635, 21
        %v1570 = vpop.permute.xlu0 %1569
        %1571 = vrot.lane.b32.xlu0 %v637, 21
        %v1572 = vpop.permute.xlu0 %1571
        %1573 = vrot.lane.b32.xlu0 %v640, 21
        %v1574 = vpop.permute.xlu0 %1573
        %1575 = vrot.lane.b32.xlu0 %v642, 21
        %v1576 = vpop.permute.xlu0 %1575
        %1577 = vrot.lane.b32.xlu0 %v645, 21
        %v1578 = vpop.permute.xlu0 %1577
        %1579 = vrot.lane.b32.xlu0 %v647, 21
        %v1580 = vpop.permute.xlu0 %1579
        %1581 = vrot.lane.b32.xlu0 %v650, 21
        %v1582 = vpop.permute.xlu0 %1581
        %1583 = vrot.lane.b32.xlu0 %v652, 21
        %v1584 = vpop.permute.xlu0 %1583
        %1585 = vrot.lane.b32.xlu0 %v1126, 21
        %v1586 = vpop.permute.xlu0 %1585
        %1587 = vrot.lane.b32.xlu0 %v1128, 21
        %v1588 = vpop.permute.xlu0 %1587
        %1589 = vrot.lane.b32.xlu0 %v1526, 21
        %v1590 = vpop.permute.xlu0 %1589
        %1591 = vrot.lane.b32.xlu0 %v1528, 21
        %v1592 = vpop.permute.xlu0 %1591
        %vm1625 = vcmask 195752
        %1626 = vst.msk [vmem:[#allocation3] sm:$0xff] %vm1625, %v1530
        %1627 = vst.msk [vmem:[#allocation3 + $0x10] sm:$0xff] %vm1625, %v1532
        %1628 = vst.msk [vmem:[#allocation3 + $0x20] sm:$0xff] %vm1625, %v1534
        %1629 = vst.msk [vmem:[#allocation3 + $0x30] sm:$0xff] %vm1625, %v1536
        %1630 = vst.msk [vmem:[#allocation3 + $0x40] sm:$0xff] %vm1625, %v1538
        %1631 = vst.msk [vmem:[#allocation3 + $0x50] sm:$0xff] %vm1625, %v1540
        %1632 = vst.msk [vmem:[#allocation3 + $0x60] sm:$0xff] %vm1625, %v1542
        %1633 = vst.msk [vmem:[#allocation3 + $0x70] sm:$0xff] %vm1625, %v1544
        %1634 = vst.msk [vmem:[#allocation3 + $0x80] sm:$0xff] %vm1625, %v1546
        %1635 = vst.msk [vmem:[#allocation3 + $0x90] sm:$0xff] %vm1625, %v1548
        %1636 = vst.msk [vmem:[#allocation3 + $0xa0] sm:$0xff] %vm1625, %v1550
        %1637 = vst.msk [vmem:[#allocation3 + $0xb0] sm:$0xff] %vm1625, %v1552
        %1638 = vst.msk [vmem:[#allocation3 + $0xc0] sm:$0xff] %vm1625, %v1554
        %1639 = vst.msk [vmem:[#allocation3 + $0xd0] sm:$0xff] %vm1625, %v1556
        %1640 = vst.msk [vmem:[#allocation3 + $0xe0] sm:$0xff] %vm1625, %v1558
        %1641 = vst.msk [vmem:[#allocation3 + $0xf0] sm:$0xff] %vm1625, %v1560
        %1642 = vst.msk [vmem:[#allocation3 + $0x100] sm:$0xff] %vm1625, %v1562
        %1643 = vst.msk [vmem:[#allocation3 + $0x110] sm:$0xff] %vm1625, %v1564
        %1644 = vst.msk [vmem:[#allocation3 + $0x120] sm:$0xff] %vm1625, %v1566
        %1645 = vst.msk [vmem:[#allocation3 + $0x130] sm:$0xff] %vm1625, %v1568
        %1646 = vst.msk [vmem:[#allocation3 + $0x140] sm:$0xff] %vm1625, %v1570
        %1647 = vst.msk [vmem:[#allocation3 + $0x150] sm:$0xff] %vm1625, %v1572
        %1648 = vst.msk [vmem:[#allocation3 + $0x160] sm:$0xff] %vm1625, %v1574
        %1649 = vst.msk [vmem:[#allocation3 + $0x170] sm:$0xff] %vm1625, %v1576
        %1650 = vst.msk [vmem:[#allocation3 + $0x180] sm:$0xff] %vm1625, %v1578
        %1651 = vst.msk [vmem:[#allocation3 + $0x190] sm:$0xff] %vm1625, %v1580
        %1652 = vst.msk [vmem:[#allocation3 + $0x1a0] sm:$0xff] %vm1625, %v1582
        %1653 = vst.msk [vmem:[#allocation3 + $0x1b0] sm:$0xff] %vm1625, %v1584
        %1654 = vst.msk [vmem:[#allocation3 + $0x1c0] sm:$0xff] %vm1625, %v1586
        %1655 = vst.msk [vmem:[#allocation3 + $0x1d0] sm:$0xff] %vm1625, %v1588
        %1656 = vst.msk [vmem:[#allocation3 + $0x1e0] sm:$0xff] %vm1625, %v1590
        %1657 = vst.msk [vmem:[#allocation3 + $0x1f0] sm:$0xff] %vm1625, %v1592
        %v1658 = vrot.slane %v489, 2
        %v1659 = vrot.slane %v490, 2
        %v1660 = vsel %vm782, %v1658, %v1659
        %v1661 = vrot.slane %v491, 2
        %v1662 = vsel %vm782, %v1659, %v1661
        %1663 = vrot.lane.b32.xlu0 %v795, 24
        %v1664 = vpop.permute.xlu0 %1663
        %1665 = vrot.lane.b32.xlu0 %v797, 24
        %v1666 = vpop.permute.xlu0 %1665
        %1667 = vrot.lane.b32.xlu0 %v800, 24
        %v1668 = vpop.permute.xlu0 %1667
        %1669 = vrot.lane.b32.xlu0 %v802, 24
        %v1670 = vpop.permute.xlu0 %1669
        %1671 = vrot.lane.b32.xlu0 %v805, 24
        %v1672 = vpop.permute.xlu0 %1671
        %1673 = vrot.lane.b32.xlu0 %v807, 24
        %v1674 = vpop.permute.xlu0 %1673
        %1675 = vrot.lane.b32.xlu0 %v810, 24
        %v1676 = vpop.permute.xlu0 %1675
        %1677 = vrot.lane.b32.xlu0 %v812, 24
        %v1678 = vpop.permute.xlu0 %1677
        %1679 = vrot.lane.b32.xlu0 %v815, 24
        %v1680 = vpop.permute.xlu0 %1679
        %1681 = vrot.lane.b32.xlu0 %v817, 24
        %v1682 = vpop.permute.xlu0 %1681
        %1683 = vrot.lane.b32.xlu0 %v820, 24
        %v1684 = vpop.permute.xlu0 %1683
        %1685 = vrot.lane.b32.xlu0 %v822, 24
        %v1686 = vpop.permute.xlu0 %1685
        %1687 = vrot.lane.b32.xlu0 %v825, 24
        %v1688 = vpop.permute.xlu0 %1687
        %1689 = vrot.lane.b32.xlu0 %v827, 24
        %v1690 = vpop.permute.xlu0 %1689
        %1691 = vrot.lane.b32.xlu0 %v830, 24
        %v1692 = vpop.permute.xlu0 %1691
        %1693 = vrot.lane.b32.xlu0 %v832, 24
        %v1694 = vpop.permute.xlu0 %1693
        %1695 = vrot.lane.b32.xlu0 %v835, 24
        %v1696 = vpop.permute.xlu0 %1695
        %1697 = vrot.lane.b32.xlu0 %v837, 24
        %v1698 = vpop.permute.xlu0 %1697
        %1699 = vrot.lane.b32.xlu0 %v840, 24
        %v1700 = vpop.permute.xlu0 %1699
        %1701 = vrot.lane.b32.xlu0 %v842, 24
        %v1702 = vpop.permute.xlu0 %1701
        %1703 = vrot.lane.b32.xlu0 %v845, 24
        %v1704 = vpop.permute.xlu0 %1703
        %1705 = vrot.lane.b32.xlu0 %v847, 24
        %v1706 = vpop.permute.xlu0 %1705
        %1707 = vrot.lane.b32.xlu0 %v850, 24
        %v1708 = vpop.permute.xlu0 %1707
        %1709 = vrot.lane.b32.xlu0 %v852, 24
        %v1710 = vpop.permute.xlu0 %1709
        %1711 = vrot.lane.b32.xlu0 %v855, 24
        %v1712 = vpop.permute.xlu0 %1711
        %1713 = vrot.lane.b32.xlu0 %v857, 24
        %v1714 = vpop.permute.xlu0 %1713
        %1715 = vrot.lane.b32.xlu0 %v860, 24
        %v1716 = vpop.permute.xlu0 %1715
        %1717 = vrot.lane.b32.xlu0 %v862, 24
        %v1718 = vpop.permute.xlu0 %1717
        %1719 = vrot.lane.b32.xlu0 %v1260, 24
        %v1720 = vpop.permute.xlu0 %1719
        %1721 = vrot.lane.b32.xlu0 %v1262, 24
        %v1722 = vpop.permute.xlu0 %1721
        %1723 = vrot.lane.b32.xlu0 %v1660, 24
        %v1724 = vpop.permute.xlu0 %1723
        %1725 = vrot.lane.b32.xlu0 %v1662, 24
        %v1726 = vpop.permute.xlu0 %1725
        %vm1759 = vcmask 220352
        %1760 = vst.msk [vmem:[#allocation3] sm:$0xff] %vm1759, %v1664
        %1761 = vst.msk [vmem:[#allocation3 + $0x10] sm:$0xff] %vm1759, %v1666
        %1762 = vst.msk [vmem:[#allocation3 + $0x20] sm:$0xff] %vm1759, %v1668
        %1763 = vst.msk [vmem:[#allocation3 + $0x30] sm:$0xff] %vm1759, %v1670
        %1764 = vst.msk [vmem:[#allocation3 + $0x40] sm:$0xff] %vm1759, %v1672
        %1765 = vst.msk [vmem:[#allocation3 + $0x50] sm:$0xff] %vm1759, %v1674
        %1766 = vst.msk [vmem:[#allocation3 + $0x60] sm:$0xff] %vm1759, %v1676
        %1767 = vst.msk [vmem:[#allocation3 + $0x70] sm:$0xff] %vm1759, %v1678
        %1768 = vst.msk [vmem:[#allocation3 + $0x80] sm:$0xff] %vm1759, %v1680
        %1769 = vst.msk [vmem:[#allocation3 + $0x90] sm:$0xff] %vm1759, %v1682
        %1770 = vst.msk [vmem:[#allocation3 + $0xa0] sm:$0xff] %vm1759, %v1684
        %1771 = vst.msk [vmem:[#allocation3 + $0xb0] sm:$0xff] %vm1759, %v1686
        %1772 = vst.msk [vmem:[#allocation3 + $0xc0] sm:$0xff] %vm1759, %v1688
        %1773 = vst.msk [vmem:[#allocation3 + $0xd0] sm:$0xff] %vm1759, %v1690
        %1774 = vst.msk [vmem:[#allocation3 + $0xe0] sm:$0xff] %vm1759, %v1692
        %1775 = vst.msk [vmem:[#allocation3 + $0xf0] sm:$0xff] %vm1759, %v1694
        %1776 = vst.msk [vmem:[#allocation3 + $0x100] sm:$0xff] %vm1759, %v1696
        %1777 = vst.msk [vmem:[#allocation3 + $0x110] sm:$0xff] %vm1759, %v1698
        %1778 = vst.msk [vmem:[#allocation3 + $0x120] sm:$0xff] %vm1759, %v1700
        %1779 = vst.msk [vmem:[#allocation3 + $0x130] sm:$0xff] %vm1759, %v1702
        %1780 = vst.msk [vmem:[#allocation3 + $0x140] sm:$0xff] %vm1759, %v1704
        %1781 = vst.msk [vmem:[#allocation3 + $0x150] sm:$0xff] %vm1759, %v1706
        %1782 = vst.msk [vmem:[#allocation3 + $0x160] sm:$0xff] %vm1759, %v1708
        %1783 = vst.msk [vmem:[#allocation3 + $0x170] sm:$0xff] %vm1759, %v1710
        %1784 = vst.msk [vmem:[#allocation3 + $0x180] sm:$0xff] %vm1759, %v1712
        %1785 = vst.msk [vmem:[#allocation3 + $0x190] sm:$0xff] %vm1759, %v1714
        %1786 = vst.msk [vmem:[#allocation3 + $0x1a0] sm:$0xff] %vm1759, %v1716
        %1787 = vst.msk [vmem:[#allocation3 + $0x1b0] sm:$0xff] %vm1759, %v1718
        %1788 = vst.msk [vmem:[#allocation3 + $0x1c0] sm:$0xff] %vm1759, %v1720
        %1789 = vst.msk [vmem:[#allocation3 + $0x1d0] sm:$0xff] %vm1759, %v1722
        %1790 = vst.msk [vmem:[#allocation3 + $0x1e0] sm:$0xff] %vm1759, %v1724
        %1791 = vst.msk [vmem:[#allocation3 + $0x1f0] sm:$0xff] %vm1759, %v1726
        %v1792 = vld [vmem:[#allocation3] sm:$0xff]
        %v1793 = vld [vmem:[#allocation3 + $0x10] sm:$0xff]
        %v1794 = vld [vmem:[#allocation3 + $0x20] sm:$0xff]
        %v1795 = vld [vmem:[#allocation3 + $0x30] sm:$0xff]
        %v1796 = vld [vmem:[#allocation3 + $0x40] sm:$0xff]
        %v1797 = vld [vmem:[#allocation3 + $0x50] sm:$0xff]
        %v1798 = vld [vmem:[#allocation3 + $0x60] sm:$0xff]
        %v1799 = vld [vmem:[#allocation3 + $0x70] sm:$0xff]
        %v1800 = vld [vmem:[#allocation3 + $0x80] sm:$0xff]
        %v1801 = vld [vmem:[#allocation3 + $0x90] sm:$0xff]
        %v1802 = vld [vmem:[#allocation3 + $0xa0] sm:$0xff]
        %v1803 = vld [vmem:[#allocation3 + $0xb0] sm:$0xff]
        %v1804 = vld [vmem:[#allocation3 + $0xc0] sm:$0xff]
        %v1805 = vld [vmem:[#allocation3 + $0xd0] sm:$0xff]
        %v1806 = vld [vmem:[#allocation3 + $0xe0] sm:$0xff]
        %v1807 = vld [vmem:[#allocation3 + $0xf0] sm:$0xff]
        %v1808 = vld [vmem:[#allocation3 + $0x100] sm:$0xff]
        %v1809 = vld [vmem:[#allocation3 + $0x110] sm:$0xff]
        %v1810 = vld [vmem:[#allocation3 + $0x120] sm:$0xff]
        %v1811 = vld [vmem:[#allocation3 + $0x130] sm:$0xff]
        %v1812 = vld [vmem:[#allocation3 + $0x140] sm:$0xff]
        %v1813 = vld [vmem:[#allocation3 + $0x150] sm:$0xff]
        %v1814 = vld [vmem:[#allocation3 + $0x160] sm:$0xff]
        %v1815 = vld [vmem:[#allocation3 + $0x170] sm:$0xff]
        %v1816 = vld [vmem:[#allocation3 + $0x180] sm:$0xff]
        %v1817 = vld [vmem:[#allocation3 + $0x190] sm:$0xff]
        %v1818 = vld [vmem:[#allocation3 + $0x1a0] sm:$0xff]
        %v1819 = vld [vmem:[#allocation3 + $0x1b0] sm:$0xff]
        %v1820 = vld [vmem:[#allocation3 + $0x1c0] sm:$0xff]
        %v1821 = vld [vmem:[#allocation3 + $0x1d0] sm:$0xff]
        %v1822 = vld [vmem:[#allocation3 + $0x1e0] sm:$0xff]
        %v1823 = vld [vmem:[#allocation3 + $0x1f0] sm:$0xff]
        %v1824 = vpack.c.bf16 %v1793, %v1792
        %v1825 = vpack.c.bf16 %v1795, %v1794
        %v1826 = vpack.c.bf16 %v1797, %v1796
        %v1827 = vpack.c.bf16 %v1799, %v1798
        %v1828 = vpack.c.bf16 %v1801, %v1800
        %v1829 = vpack.c.bf16 %v1803, %v1802
        %v1830 = vpack.c.bf16 %v1805, %v1804
        %v1831 = vpack.c.bf16 %v1807, %v1806
        %v1832 = vpack.c.bf16 %v1809, %v1808
        %v1833 = vpack.c.bf16 %v1811, %v1810
        %v1834 = vpack.c.bf16 %v1813, %v1812
        %v1835 = vpack.c.bf16 %v1815, %v1814
        %v1836 = vpack.c.bf16 %v1817, %v1816
        %v1837 = vpack.c.bf16 %v1819, %v1818
        %v1838 = vpack.c.bf16 %v1821, %v1820
        %v1839 = vpack.c.bf16 %v1823, %v1822
        %v1840 = vld [vmem:[%s1] sm:$0xf]
        %v1841 = vld [vmem:[%s1 + $0x4] sm:$0xf]
        %v1842 = vld [vmem:[%s1 + $0x8] sm:$0xf]
        %v1843 = vld [vmem:[%s1 + $0xc] sm:$0x3]
        %v1844 = vld [vmem:[%s2] sm:$0x1]
        %v1846 = vlaneseq
        %v1847 = vshrl.u32 %v1846, 7
        %v1848 = vsub.s32 0, %v1847
        %v1849 = vrot.slane %v1844, %v1848
        %v1855 = vunpack.c.l.b16 %v1840
        %v1856 = vunpack.c.l.b16 %v1841
        %v1857 = vunpack.c.l.b16 %v1842
        %v1858 = vunpack.c.l.b16 %v1843
        %v1859 = vpack.c.b16 %v1856, %v1855
        %v1860 = vpack.c.b16 %v1858, %v1857
        %vm1862 = vcmask 220160
        %v1864 = vsel %vm1862, %v1824, 0
        %v1867 = vsel %vm1862, %v1825, 0
        %v1870 = vsel %vm1862, %v1826, 0
        %v1873 = vsel %vm1862, %v1827, 0
        %v1876 = vsel %vm1862, %v1828, 0
        %v1879 = vsel %vm1862, %v1829, 0
        %v1882 = vsel %vm1862, %v1830, 0
        %v1885 = vsel %vm1862, %v1831, 0
        %v1888 = vsel %vm1862, %v1832, 0
        %v1891 = vsel %vm1862, %v1833, 0
        %v1894 = vsel %vm1862, %v1834, 0
        %v1897 = vsel %vm1862, %v1835, 0
        %v1900 = vsel %vm1862, %v1836, 0
        %v1903 = vsel %vm1862, %v1837, 0
        %v1906 = vsel %vm1862, %v1838, 0
        %v1909 = vsel %vm1862, %v1839, 0
        %vm1911 = vcmask 1044480
        %v1912 = vsel %vm1911, 4294967295, 65535
        %v1913 = vsel %vm782, %v1912, 0
        %v1915 = vand.u32 %v1860, %v1913
        %1917 = vmatprep.subr.bf16.mxu0 0
        %1918 = vmatpush1.bf16.msra.mxu0 %v1859
        %1919 = vmatprep.subr.bf16.mxu0 0
        %1920 = vmatpush1.bf16.msra.mxu0 %v1915
        %1921 = vmatprep.subr.bf16.mxu0 0
        %1922 = vmatpush1.bf16.msra.mxu0 0
        %1923 = vmatprep.subr.bf16.mxu0 0
        %1924 = vmatpush1.bf16.msra.mxu0 0
        %1925 = vmatprep.subr.bf16.mxu0 0
        %1926 = vmatpush1.bf16.msra.mxu0 0
        %1927 = vmatprep.subr.bf16.mxu0 0
        %1928 = vmatpush1.bf16.msra.mxu0 0
        %1929 = vmatprep.subr.bf16.mxu0 0
        %1930 = vmatpush1.bf16.msra.mxu0 0
        %1931 = vmatprep.subr.bf16.mxu0 0
        %1932 = vmatpush1.bf16.msra.mxu0 0
        %1933 = vmatprep.subr.bf16.mxu0 0
        %1934 = vmatpush1.bf16.msra.mxu0 0
        %1935 = vmatprep.subr.bf16.mxu0 0
        %1936 = vmatpush1.bf16.msra.mxu0 0
        %1937 = vmatprep.subr.bf16.mxu0 0
        %1938 = vmatpush1.bf16.msra.mxu0 0
        %1939 = vmatprep.subr.bf16.mxu0 0
        %1940 = vmatpush1.bf16.msra.mxu0 0
        %1941 = vmatprep.subr.bf16.mxu0 0
        %1942 = vmatpush1.bf16.msra.mxu0 0
        %1943 = vmatprep.subr.bf16.mxu0 0
        %1944 = vmatpush1.bf16.msra.mxu0 0
        %1945 = vmatprep.subr.bf16.mxu0 0
        %1946 = vmatpush1.bf16.msra.mxu0 0
        %1947 = vmatprep.subr.bf16.mxu0 0
        %1948 = vmatpush1.bf16.msra.mxu0 0
        %1949 = vmatprep.mubr.bf16.mxu0 0
        %1950 = vmatmul.mubr.bf16.gmra.mrb[0].mxu0 %v1864
        %v1951 = vpop.f32.mrb[0].mxu0
        %v1952 = vadd.f32 %v1849, %v1951
        %v1953 = vpop.f32.mrb[0].mxu0
        %v1954 = vpop.f32.mrb[0].mxu0
        %v1955 = vadd.f32 %v1849, %v1954
        %v1956 = vpop.f32.mrb[0].mxu0
        %1957 = vmatprep.mubr.bf16.mxu0 0
        %1958 = vmatmul.mubr.bf16.gmra.mrb[0].mxu0 %v1867
        %v1959 = vpop.f32.mrb[0].mxu0
        %v1960 = vadd.f32 %v1849, %v1959
        %v1961 = vpop.f32.mrb[0].mxu0
        %v1962 = vpop.f32.mrb[0].mxu0
        %v1963 = vadd.f32 %v1849, %v1962
        %v1964 = vpop.f32.mrb[0].mxu0
        %1965 = vmatprep.mubr.bf16.mxu0 0
        %1966 = vmatmul.mubr.bf16.gmra.mrb[0].mxu0 %v1870
        %v1967 = vpop.f32.mrb[0].mxu0
        %v1968 = vadd.f32 %v1849, %v1967
        %v1969 = vpop.f32.mrb[0].mxu0
        %v1970 = vpop.f32.mrb[0].mxu0
        %v1971 = vadd.f32 %v1849, %v1970
        %v1972 = vpop.f32.mrb[0].mxu0
        %1973 = vmatprep.mubr.bf16.mxu0 0
        %1974 = vmatmul.mubr.bf16.gmra.mrb[0].mxu0 %v1873
        %v1975 = vpop.f32.mrb[0].mxu0
        %v1976 = vadd.f32 %v1849, %v1975
        %v1977 = vpop.f32.mrb[0].mxu0
        %v1978 = vpop.f32.mrb[0].mxu0
        %v1979 = vadd.f32 %v1849, %v1978
        %v1980 = vpop.f32.mrb[0].mxu0
        %1981 = vmatprep.mubr.bf16.mxu0 0
        %1982 = vmatmul.mubr.bf16.gmra.mrb[0].mxu0 %v1876
        %v1983 = vpop.f32.mrb[0].mxu0
        %v1984 = vadd.f32 %v1849, %v1983
        %v1985 = vpop.f32.mrb[0].mxu0
        %v1986 = vpop.f32.mrb[0].mxu0
        %v1987 = vadd.f32 %v1849, %v1986
        %v1988 = vpop.f32.mrb[0].mxu0
        %1989 = vmatprep.mubr.bf16.mxu0 0
        %1990 = vmatmul.mubr.bf16.gmra.mrb[0].mxu0 %v1879
        %v1991 = vpop.f32.mrb[0].mxu0
        %v1992 = vadd.f32 %v1849, %v1991
        %v1993 = vpop.f32.mrb[0].mxu0
        %v1994 = vpop.f32.mrb[0].mxu0
        %v1995 = vadd.f32 %v1849, %v1994
        %v1996 = vpop.f32.mrb[0].mxu0
        %1997 = vmatprep.mubr.bf16.mxu0 0
        %1998 = vmatmul.mubr.bf16.gmra.mrb[0].mxu0 %v1882
        %v1999 = vpop.f32.mrb[0].mxu0
        %v2000 = vadd.f32 %v1849, %v1999
        %v2001 = vpop.f32.mrb[0].mxu0
        %v2002 = vpop.f32.mrb[0].mxu0
        %v2003 = vadd.f32 %v1849, %v2002
        %v2004 = vpop.f32.mrb[0].mxu0
        %2005 = vmatprep.mubr.bf16.mxu0 0
        %2006 = vmatmul.mubr.bf16.gmra.mrb[0].mxu0 %v1885
        %v2007 = vpop.f32.mrb[0].mxu0
        %v2008 = vadd.f32 %v1849, %v2007
        %v2009 = vpop.f32.mrb[0].mxu0
        %v2010 = vpop.f32.mrb[0].mxu0
        %v2011 = vadd.f32 %v1849, %v2010
        %v2012 = vpop.f32.mrb[0].mxu0
        %2013 = vmatprep.mubr.bf16.mxu0 0
        %2014 = vmatmul.mubr.bf16.gmra.mrb[0].mxu0 %v1888
        %v2015 = vpop.f32.mrb[0].mxu0
        %v2016 = vadd.f32 %v1849, %v2015
        %v2017 = vpop.f32.mrb[0].mxu0
        %v2018 = vpop.f32.mrb[0].mxu0
        %v2019 = vadd.f32 %v1849, %v2018
        %v2020 = vpop.f32.mrb[0].mxu0
        %2021 = vmatprep.mubr.bf16.mxu0 0
        %2022 = vmatmul.mubr.bf16.gmra.mrb[0].mxu0 %v1891
        %v2023 = vpop.f32.mrb[0].mxu0
        %v2024 = vadd.f32 %v1849, %v2023
        %v2025 = vpop.f32.mrb[0].mxu0
        %v2026 = vpop.f32.mrb[0].mxu0
        %v2027 = vadd.f32 %v1849, %v2026
        %v2028 = vpop.f32.mrb[0].mxu0
        %2029 = vmatprep.mubr.bf16.mxu0 0
        %2030 = vmatmul.mubr.bf16.gmra.mrb[0].mxu0 %v1894
        %v2031 = vpop.f32.mrb[0].mxu0
        %v2032 = vadd.f32 %v1849, %v2031
        %v2033 = vpop.f32.mrb[0].mxu0
        %v2034 = vpop.f32.mrb[0].mxu0
        %v2035 = vadd.f32 %v1849, %v2034
        %v2036 = vpop.f32.mrb[0].mxu0
        %2037 = vmatprep.mubr.bf16.mxu0 0
        %2038 = vmatmul.mubr.bf16.gmra.mrb[0].mxu0 %v1897
        %v2039 = vpop.f32.mrb[0].mxu0
        %v2040 = vadd.f32 %v1849, %v2039
        %v2041 = vpop.f32.mrb[0].mxu0
        %v2042 = vpop.f32.mrb[0].mxu0
        %v2043 = vadd.f32 %v1849, %v2042
        %v2044 = vpop.f32.mrb[0].mxu0
        %2045 = vmatprep.mubr.bf16.mxu0 0
        %2046 = vmatmul.mubr.bf16.gmra.mrb[0].mxu0 %v1900
        %v2047 = vpop.f32.mrb[0].mxu0
        %v2048 = vadd.f32 %v1849, %v2047
        %v2049 = vpop.f32.mrb[0].mxu0
        %v2050 = vpop.f32.mrb[0].mxu0
        %v2051 = vadd.f32 %v1849, %v2050
        %v2052 = vpop.f32.mrb[0].mxu0
        %2053 = vmatprep.mubr.bf16.mxu0 0
        %2054 = vmatmul.mubr.bf16.gmra.mrb[0].mxu0 %v1903
        %v2055 = vpop.f32.mrb[0].mxu0
        %v2056 = vadd.f32 %v1849, %v2055
        %v2057 = vpop.f32.mrb[0].mxu0
        %v2058 = vpop.f32.mrb[0].mxu0
        %v2059 = vadd.f32 %v1849, %v2058
        %v2060 = vpop.f32.mrb[0].mxu0
        %2061 = vmatprep.mubr.bf16.mxu0 0
        %2062 = vmatmul.mubr.bf16.gmra.mrb[0].mxu0 %v1906
        %v2063 = vpop.f32.mrb[0].mxu0
        %v2064 = vadd.f32 %v1849, %v2063
        %v2065 = vpop.f32.mrb[0].mxu0
        %v2066 = vpop.f32.mrb[0].mxu0
        %v2067 = vadd.f32 %v1849, %v2066
        %v2068 = vpop.f32.mrb[0].mxu0
        %2069 = vmatprep.mubr.bf16.mxu0 0
        %2070 = vmatmul.mubr.bf16.gmra.mrb[0].mxu0 %v1909
        %v2071 = vpop.f32.mrb[0].mxu0
        %v2072 = vadd.f32 %v1849, %v2071
        %v2073 = vpop.f32.mrb[0].mxu0
        %v2074 = vpop.f32.mrb[0].mxu0
        %v2075 = vadd.f32 %v1849, %v2074
        %v2076 = vpop.f32.mrb[0].mxu0
        %2077 = vdwg.mxu0
        %v2078 = vmax.f32 %v1952, 0.0
        %v2079 = vmax.f32 %v1955, 0.0
        %v2080 = vmax.f32 %v1960, 0.0
        %v2081 = vmax.f32 %v1963, 0.0
        %v2082 = vmax.f32 %v1968, 0.0
        %v2083 = vmax.f32 %v1971, 0.0
        %v2084 = vmax.f32 %v1976, 0.0
        %v2085 = vmax.f32 %v1979, 0.0
        %v2086 = vmax.f32 %v1984, 0.0
        %v2087 = vmax.f32 %v1987, 0.0
        %v2088 = vmax.f32 %v1992, 0.0
        %v2089 = vmax.f32 %v1995, 0.0
        %v2090 = vmax.f32 %v2000, 0.0
        %v2091 = vmax.f32 %v2003, 0.0
        %v2092 = vmax.f32 %v2008, 0.0
        %v2093 = vmax.f32 %v2011, 0.0
        %v2094 = vmax.f32 %v2016, 0.0
        %v2095 = vmax.f32 %v2019, 0.0
        %v2096 = vmax.f32 %v2024, 0.0
        %v2097 = vmax.f32 %v2027, 0.0
        %v2098 = vmax.f32 %v2032, 0.0
        %v2099 = vmax.f32 %v2035, 0.0
        %v2100 = vmax.f32 %v2040, 0.0
        %v2101 = vmax.f32 %v2043, 0.0
        %v2102 = vmax.f32 %v2048, 0.0
        %v2103 = vmax.f32 %v2051, 0.0
        %v2104 = vmax.f32 %v2056, 0.0
        %v2105 = vmax.f32 %v2059, 0.0
        %v2106 = vmax.f32 %v2064, 0.0
        %v2107 = vmax.f32 %v2067, 0.0
        %v2108 = vmax.f32 %v2072, 0.0
        %v2109 = vmax.f32 %v2075, 0.0
        %v2110 = vmax.f32 %v2078, %v2080
        %v2111 = vmax.f32 %v2079, %v2081
        %v2112 = vmax.f32 %v2082, %v2084
        %v2113 = vmax.f32 %v2083, %v2085
        %v2114 = vmax.f32 %v2086, %v2088
        %v2115 = vmax.f32 %v2087, %v2089
        %v2116 = vmax.f32 %v2090, %v2092
        %v2117 = vmax.f32 %v2091, %v2093
        %v2118 = vmax.f32 %v2094, %v2096
        %v2119 = vmax.f32 %v2095, %v2097
        %v2120 = vmax.f32 %v2098, %v2100
        %v2121 = vmax.f32 %v2099, %v2101
        %v2122 = vmax.f32 %v2102, %v2104
        %v2123 = vmax.f32 %v2103, %v2105
        %v2124 = vmax.f32 %v2106, %v2108
        %v2125 = vmax.f32 %v2107, %v2109
        %v2142 = vcombine.high %v2110, %v2110
        %v2144 = vunpack.c.l.s4 1983009808
        %v2145 = vunpack.c.0.s8 %v2144
        %v2146 = vlaneseq
        %v2147 = vshrl.u32 %v2146, 7
        %v2148 = vsub.s32 %v2145, %v2147
        %v2149 = vrot.slane %v2110, %v2148
        %v2151 = vunpack.c.l.s4 1983009808
        %v2152 = vunpack.c.0.s8 %v2151
        %v2153 = vlaneseq
        %v2154 = vshrl.u32 %v2153, 7
        %v2155 = vsub.s32 %v2152, %v2154
        %v2156 = vrot.slane %v2142, %v2155
        %v2157 = vcombine.high %v2149, %v2149
        %v2158 = vcombine.high %v2156, %v2156
        %v2159 = vcombine.high %v2111, %v2111
        %v2161 = vunpack.c.l.s4 1983009808
        %v2162 = vunpack.c.0.s8 %v2161
        %v2163 = vlaneseq
        %v2164 = vshrl.u32 %v2163, 7
        %v2165 = vsub.s32 %v2162, %v2164
        %v2166 = vrot.slane %v2111, %v2165
        %v2168 = vunpack.c.l.s4 1983009808
        %v2169 = vunpack.c.0.s8 %v2168
        %v2170 = vlaneseq
        %v2171 = vshrl.u32 %v2170, 7
        %v2172 = vsub.s32 %v2169, %v2171
        %v2173 = vrot.slane %v2159, %v2172
        %v2174 = vcombine.high %v2166, %v2166
        %v2175 = vcombine.high %v2173, %v2173
        %v2176 = vcombine.high %v2112, %v2112
        %v2178 = vunpack.c.l.s4 1983009808
        %v2179 = vunpack.c.0.s8 %v2178
        %v2180 = vlaneseq
        %v2181 = vshrl.u32 %v2180, 7
        %v2182 = vsub.s32 %v2179, %v2181
        %v2183 = vrot.slane %v2112, %v2182
        %v2185 = vunpack.c.l.s4 1983009808
        %v2186 = vunpack.c.0.s8 %v2185
        %v2187 = vlaneseq
        %v2188 = vshrl.u32 %v2187, 7
        %v2189 = vsub.s32 %v2186, %v2188
        %v2190 = vrot.slane %v2176, %v2189
        %v2191 = vcombine.high %v2183, %v2183
        %v2192 = vcombine.high %v2190, %v2190
        %v2193 = vcombine.high %v2113, %v2113
        %v2195 = vunpack.c.l.s4 1983009808
        %v2196 = vunpack.c.0.s8 %v2195
        %v2197 = vlaneseq
        %v2198 = vshrl.u32 %v2197, 7
        %v2199 = vsub.s32 %v2196, %v2198
        %v2200 = vrot.slane %v2113, %v2199
        %v2202 = vunpack.c.l.s4 1983009808
        %v2203 = vunpack.c.0.s8 %v2202
        %v2204 = vlaneseq
        %v2205 = vshrl.u32 %v2204, 7
        %v2206 = vsub.s32 %v2203, %v2205
        %v2207 = vrot.slane %v2193, %v2206
        %v2208 = vcombine.high %v2200, %v2200
        %v2209 = vcombine.high %v2207, %v2207
        %v2210 = vcombine.high %v2114, %v2114
        %v2212 = vunpack.c.l.s4 1983009808
        %v2213 = vunpack.c.0.s8 %v2212
        %v2214 = vlaneseq
        %v2215 = vshrl.u32 %v2214, 7
        %v2216 = vsub.s32 %v2213, %v2215
        %v2217 = vrot.slane %v2114, %v2216
        %v2219 = vunpack.c.l.s4 1983009808
        %v2220 = vunpack.c.0.s8 %v2219
        %v2221 = vlaneseq
        %v2222 = vshrl.u32 %v2221, 7
        %v2223 = vsub.s32 %v2220, %v2222
        %v2224 = vrot.slane %v2210, %v2223
        %v2225 = vcombine.high %v2217, %v2217
        %v2226 = vcombine.high %v2224, %v2224
        %v2227 = vcombine.high %v2115, %v2115
        %v2229 = vunpack.c.l.s4 1983009808
        %v2230 = vunpack.c.0.s8 %v2229
        %v2231 = vlaneseq
        %v2232 = vshrl.u32 %v2231, 7
        %v2233 = vsub.s32 %v2230, %v2232
        %v2234 = vrot.slane %v2115, %v2233
        %v2236 = vunpack.c.l.s4 1983009808
        %v2237 = vunpack.c.0.s8 %v2236
        %v2238 = vlaneseq
        %v2239 = vshrl.u32 %v2238, 7
        %v2240 = vsub.s32 %v2237, %v2239
        %v2241 = vrot.slane %v2227, %v2240
        %v2242 = vcombine.high %v2234, %v2234
        %v2243 = vcombine.high %v2241, %v2241
        %v2244 = vcombine.high %v2116, %v2116
        %v2246 = vunpack.c.l.s4 1983009808
        %v2247 = vunpack.c.0.s8 %v2246
        %v2248 = vlaneseq
        %v2249 = vshrl.u32 %v2248, 7
        %v2250 = vsub.s32 %v2247, %v2249
        %v2251 = vrot.slane %v2116, %v2250
        %v2253 = vunpack.c.l.s4 1983009808
        %v2254 = vunpack.c.0.s8 %v2253
        %v2255 = vlaneseq
        %v2256 = vshrl.u32 %v2255, 7
        %v2257 = vsub.s32 %v2254, %v2256
        %v2258 = vrot.slane %v2244, %v2257
        %v2259 = vcombine.high %v2251, %v2251
        %v2260 = vcombine.high %v2258, %v2258
        %v2261 = vcombine.high %v2117, %v2117
        %v2263 = vunpack.c.l.s4 1983009808
        %v2264 = vunpack.c.0.s8 %v2263
        %v2265 = vlaneseq
        %v2266 = vshrl.u32 %v2265, 7
        %v2267 = vsub.s32 %v2264, %v2266
        %v2268 = vrot.slane %v2117, %v2267
        %v2270 = vunpack.c.l.s4 1983009808
        %v2271 = vunpack.c.0.s8 %v2270
        %v2272 = vlaneseq
        %v2273 = vshrl.u32 %v2272, 7
        %v2274 = vsub.s32 %v2271, %v2273
        %v2275 = vrot.slane %v2261, %v2274
        %v2276 = vcombine.high %v2268, %v2268
        %v2277 = vcombine.high %v2275, %v2275
        %v2278 = vcombine.high %v2118, %v2118
        %v2280 = vunpack.c.l.s4 1983009808
        %v2281 = vunpack.c.0.s8 %v2280
        %v2282 = vlaneseq
        %v2283 = vshrl.u32 %v2282, 7
        %v2284 = vsub.s32 %v2281, %v2283
        %v2285 = vrot.slane %v2118, %v2284
        %v2287 = vunpack.c.l.s4 1983009808
        %v2288 = vunpack.c.0.s8 %v2287
        %v2289 = vlaneseq
        %v2290 = vshrl.u32 %v2289, 7
        %v2291 = vsub.s32 %v2288, %v2290
        %v2292 = vrot.slane %v2278, %v2291
        %v2293 = vcombine.high %v2285, %v2285
        %v2294 = vcombine.high %v2292, %v2292
        %v2295 = vcombine.high %v2119, %v2119
        %v2297 = vunpack.c.l.s4 1983009808
        %v2298 = vunpack.c.0.s8 %v2297
        %v2299 = vlaneseq
        %v2300 = vshrl.u32 %v2299, 7
        %v2301 = vsub.s32 %v2298, %v2300
        %v2302 = vrot.slane %v2119, %v2301
        %v2304 = vunpack.c.l.s4 1983009808
        %v2305 = vunpack.c.0.s8 %v2304
        %v2306 = vlaneseq
        %v2307 = vshrl.u32 %v2306, 7
        %v2308 = vsub.s32 %v2305, %v2307
        %v2309 = vrot.slane %v2295, %v2308
        %v2310 = vcombine.high %v2302, %v2302
        %v2311 = vcombine.high %v2309, %v2309
        %v2312 = vcombine.high %v2120, %v2120
        %v2314 = vunpack.c.l.s4 1983009808
        %v2315 = vunpack.c.0.s8 %v2314
        %v2316 = vlaneseq
        %v2317 = vshrl.u32 %v2316, 7
        %v2318 = vsub.s32 %v2315, %v2317
        %v2319 = vrot.slane %v2120, %v2318
        %v2321 = vunpack.c.l.s4 1983009808
        %v2322 = vunpack.c.0.s8 %v2321
        %v2323 = vlaneseq
        %v2324 = vshrl.u32 %v2323, 7
        %v2325 = vsub.s32 %v2322, %v2324
        %v2326 = vrot.slane %v2312, %v2325
        %v2327 = vcombine.high %v2319, %v2319
        %v2328 = vcombine.high %v2326, %v2326
        %v2329 = vcombine.high %v2121, %v2121
        %v2331 = vunpack.c.l.s4 1983009808
        %v2332 = vunpack.c.0.s8 %v2331
        %v2333 = vlaneseq
        %v2334 = vshrl.u32 %v2333, 7
        %v2335 = vsub.s32 %v2332, %v2334
        %v2336 = vrot.slane %v2121, %v2335
        %v2338 = vunpack.c.l.s4 1983009808
        %v2339 = vunpack.c.0.s8 %v2338
        %v2340 = vlaneseq
        %v2341 = vshrl.u32 %v2340, 7
        %v2342 = vsub.s32 %v2339, %v2341
        %v2343 = vrot.slane %v2329, %v2342
        %v2344 = vcombine.high %v2336, %v2336
        %v2345 = vcombine.high %v2343, %v2343
        %v2346 = vcombine.high %v2122, %v2122
        %v2348 = vunpack.c.l.s4 1983009808
        %v2349 = vunpack.c.0.s8 %v2348
        %v2350 = vlaneseq
        %v2351 = vshrl.u32 %v2350, 7
        %v2352 = vsub.s32 %v2349, %v2351
        %v2353 = vrot.slane %v2122, %v2352
        %v2355 = vunpack.c.l.s4 1983009808
        %v2356 = vunpack.c.0.s8 %v2355
        %v2357 = vlaneseq
        %v2358 = vshrl.u32 %v2357, 7
        %v2359 = vsub.s32 %v2356, %v2358
        %v2360 = vrot.slane %v2346, %v2359
        %v2361 = vcombine.high %v2353, %v2353
        %v2362 = vcombine.high %v2360, %v2360
        %v2363 = vcombine.high %v2123, %v2123
        %v2365 = vunpack.c.l.s4 1983009808
        %v2366 = vunpack.c.0.s8 %v2365
        %v2367 = vlaneseq
        %v2368 = vshrl.u32 %v2367, 7
        %v2369 = vsub.s32 %v2366, %v2368
        %v2370 = vrot.slane %v2123, %v2369
        %v2372 = vunpack.c.l.s4 1983009808
        %v2373 = vunpack.c.0.s8 %v2372
        %v2374 = vlaneseq
        %v2375 = vshrl.u32 %v2374, 7
        %v2376 = vsub.s32 %v2373, %v2375
        %v2377 = vrot.slane %v2363, %v2376
        %v2378 = vcombine.high %v2370, %v2370
        %v2379 = vcombine.high %v2377, %v2377
        %v2380 = vcombine.high %v2124, %v2124
        %v2382 = vunpack.c.l.s4 1983009808
        %v2383 = vunpack.c.0.s8 %v2382
        %v2384 = vlaneseq
        %v2385 = vshrl.u32 %v2384, 7
        %v2386 = vsub.s32 %v2383, %v2385
        %v2387 = vrot.slane %v2124, %v2386
        %v2389 = vunpack.c.l.s4 1983009808
        %v2390 = vunpack.c.0.s8 %v2389
        %v2391 = vlaneseq
        %v2392 = vshrl.u32 %v2391, 7
        %v2393 = vsub.s32 %v2390, %v2392
        %v2394 = vrot.slane %v2380, %v2393
        %v2395 = vcombine.high %v2387, %v2387
        %v2396 = vcombine.high %v2394, %v2394
        %v2397 = vcombine.high %v2125, %v2125
        %v2399 = vunpack.c.l.s4 1983009808
        %v2400 = vunpack.c.0.s8 %v2399
        %v2401 = vlaneseq
        %v2402 = vshrl.u32 %v2401, 7
        %v2403 = vsub.s32 %v2400, %v2402
        %v2404 = vrot.slane %v2125, %v2403
        %v2406 = vunpack.c.l.s4 1983009808
        %v2407 = vunpack.c.0.s8 %v2406
        %v2408 = vlaneseq
        %v2409 = vshrl.u32 %v2408, 7
        %v2410 = vsub.s32 %v2407, %v2409
        %v2411 = vrot.slane %v2397, %v2410
        %v2412 = vcombine.high %v2404, %v2404
        %v2413 = vcombine.high %v2411, %v2411
        %v2478 = vrot.slane %v2149, 7
        %v2479 = vrot.slane %v2478, 2
        %v2480 = vrot.slane %v2157, 7
        %v2481 = vrot.slane %v2480, 2
        %v2482 = vrot.slane %v2156, 7
        %v2483 = vrot.slane %v2482, 2
        %v2484 = vrot.slane %v2158, 7
        %v2485 = vrot.slane %v2484, 2
        %v2486 = vrot.slane %v2166, 7
        %v2487 = vrot.slane %v2486, 2
        %v2488 = vrot.slane %v2174, 7
        %v2489 = vrot.slane %v2488, 2
        %v2490 = vrot.slane %v2173, 7
        %v2491 = vrot.slane %v2490, 2
        %v2492 = vrot.slane %v2175, 7
        %v2493 = vrot.slane %v2492, 2
        %v2494 = vrot.slane %v2183, 7
        %v2495 = vrot.slane %v2494, 2
        %v2496 = vrot.slane %v2191, 7
        %v2497 = vrot.slane %v2496, 2
        %v2498 = vrot.slane %v2190, 7
        %v2499 = vrot.slane %v2498, 2
        %v2500 = vrot.slane %v2192, 7
        %v2501 = vrot.slane %v2500, 2
        %v2502 = vrot.slane %v2200, 7
        %v2503 = vrot.slane %v2502, 2
        %v2504 = vrot.slane %v2208, 7
        %v2505 = vrot.slane %v2504, 2
        %v2506 = vrot.slane %v2207, 7
        %v2507 = vrot.slane %v2506, 2
        %v2508 = vrot.slane %v2209, 7
        %v2509 = vrot.slane %v2508, 2
        %v2510 = vrot.slane %v2217, 7
        %v2511 = vrot.slane %v2510, 2
        %v2512 = vrot.slane %v2225, 7
        %v2513 = vrot.slane %v2512, 2
        %v2514 = vrot.slane %v2224, 7
        %v2515 = vrot.slane %v2514, 2
        %v2516 = vrot.slane %v2226, 7
        %v2517 = vrot.slane %v2516, 2
        %v2518 = vrot.slane %v2234, 7
        %v2519 = vrot.slane %v2518, 2
        %v2520 = vrot.slane %v2242, 7
        %v2521 = vrot.slane %v2520, 2
        %v2522 = vrot.slane %v2241, 7
        %v2523 = vrot.slane %v2522, 2
        %v2524 = vrot.slane %v2243, 7
        %v2525 = vrot.slane %v2524, 2
        %v2526 = vrot.slane %v2251, 7
        %v2527 = vrot.slane %v2526, 2
        %v2528 = vrot.slane %v2259, 7
        %v2529 = vrot.slane %v2528, 2
        %v2530 = vrot.slane %v2258, 7
        %v2531 = vrot.slane %v2530, 2
        %v2532 = vrot.slane %v2260, 7
        %v2533 = vrot.slane %v2532, 2
        %v2534 = vrot.slane %v2268, 7
        %v2535 = vrot.slane %v2534, 2
        %v2536 = vrot.slane %v2276, 7
        %v2537 = vrot.slane %v2536, 2
        %v2538 = vrot.slane %v2275, 7
        %v2539 = vrot.slane %v2538, 2
        %v2540 = vrot.slane %v2277, 7
        %v2541 = vrot.slane %v2540, 2
        %v2542 = vrot.slane %v2285, 7
        %v2543 = vrot.slane %v2542, 2
        %v2544 = vrot.slane %v2293, 7
        %v2545 = vrot.slane %v2544, 2
        %v2546 = vrot.slane %v2292, 7
        %v2547 = vrot.slane %v2546, 2
        %v2548 = vrot.slane %v2294, 7
        %v2549 = vrot.slane %v2548, 2
        %v2550 = vrot.slane %v2302, 7
        %v2551 = vrot.slane %v2550, 2
        %v2552 = vrot.slane %v2310, 7
        %v2553 = vrot.slane %v2552, 2
        %v2554 = vrot.slane %v2309, 7
        %v2555 = vrot.slane %v2554, 2
        %v2556 = vrot.slane %v2311, 7
        %v2557 = vrot.slane %v2556, 2
        %v2558 = vrot.slane %v2319, 7
        %v2559 = vrot.slane %v2558, 2
        %v2560 = vrot.slane %v2327, 7
        %v2561 = vrot.slane %v2560, 2
        %v2562 = vrot.slane %v2326, 7
        %v2563 = vrot.slane %v2562, 2
        %v2564 = vrot.slane %v2328, 7
        %v2565 = vrot.slane %v2564, 2
        %v2566 = vrot.slane %v2336, 7
        %v2567 = vrot.slane %v2566, 2
        %v2568 = vrot.slane %v2344, 7
        %v2569 = vrot.slane %v2568, 2
        %v2570 = vrot.slane %v2343, 7
        %v2571 = vrot.slane %v2570, 2
        %v2572 = vrot.slane %v2345, 7
        %v2573 = vrot.slane %v2572, 2
        %v2574 = vrot.slane %v2353, 7
        %v2575 = vrot.slane %v2574, 2
        %v2576 = vrot.slane %v2361, 7
        %v2577 = vrot.slane %v2576, 2
        %v2578 = vrot.slane %v2360, 7
        %v2579 = vrot.slane %v2578, 2
        %v2580 = vrot.slane %v2362, 7
        %v2581 = vrot.slane %v2580, 2
        %v2582 = vrot.slane %v2370, 7
        %v2583 = vrot.slane %v2582, 2
        %v2584 = vrot.slane %v2378, 7
        %v2585 = vrot.slane %v2584, 2
        %v2586 = vrot.slane %v2377, 7
        %v2587 = vrot.slane %v2586, 2
        %v2588 = vrot.slane %v2379, 7
        %v2589 = vrot.slane %v2588, 2
        %v2590 = vrot.slane %v2387, 7
        %v2591 = vrot.slane %v2590, 2
        %v2592 = vrot.slane %v2395, 7
        %v2593 = vrot.slane %v2592, 2
        %v2594 = vrot.slane %v2394, 7
        %v2595 = vrot.slane %v2594, 2
        %v2596 = vrot.slane %v2396, 7
        %v2597 = vrot.slane %v2596, 2
        %v2598 = vrot.slane %v2404, 7
        %v2599 = vrot.slane %v2598, 2
        %v2600 = vrot.slane %v2412, 7
        %v2601 = vrot.slane %v2600, 2
        %v2602 = vrot.slane %v2411, 7
        %v2603 = vrot.slane %v2602, 2
        %v2604 = vrot.slane %v2413, 7
        %v2605 = vrot.slane %v2604, 2
        %v2670 = vmax.f32 %v2149, %v2479
        %v2671 = vmax.f32 %v2157, %v2481
        %v2672 = vmax.f32 %v2156, %v2483
        %v2673 = vmax.f32 %v2158, %v2485
        %v2674 = vmax.f32 %v2166, %v2487
        %v2675 = vmax.f32 %v2174, %v2489
        %v2676 = vmax.f32 %v2173, %v2491
        %v2677 = vmax.f32 %v2175, %v2493
        %v2678 = vmax.f32 %v2183, %v2495
        %v2679 = vmax.f32 %v2191, %v2497
        %v2680 = vmax.f32 %v2190, %v2499
        %v2681 = vmax.f32 %v2192, %v2501
        %v2682 = vmax.f32 %v2200, %v2503
        %v2683 = vmax.f32 %v2208, %v2505
        %v2684 = vmax.f32 %v2207, %v2507
        %v2685 = vmax.f32 %v2209, %v2509
        %v2686 = vmax.f32 %v2217, %v2511
        %v2687 = vmax.f32 %v2225, %v2513
        %v2688 = vmax.f32 %v2224, %v2515
        %v2689 = vmax.f32 %v2226, %v2517
        %v2690 = vmax.f32 %v2234, %v2519
        %v2691 = vmax.f32 %v2242, %v2521
        %v2692 = vmax.f32 %v2241, %v2523
        %v2693 = vmax.f32 %v2243, %v2525
        %v2694 = vmax.f32 %v2251, %v2527
        %v2695 = vmax.f32 %v2259, %v2529
        %v2696 = vmax.f32 %v2258, %v2531
        %v2697 = vmax.f32 %v2260, %v2533
        %v2698 = vmax.f32 %v2268, %v2535
        %v2699 = vmax.f32 %v2276, %v2537
        %v2700 = vmax.f32 %v2275, %v2539
        %v2701 = vmax.f32 %v2277, %v2541
        %v2702 = vmax.f32 %v2285, %v2543
        %v2703 = vmax.f32 %v2293, %v2545
        %v2704 = vmax.f32 %v2292, %v2547
        %v2705 = vmax.f32 %v2294, %v2549
        %v2706 = vmax.f32 %v2302, %v2551
        %v2707 = vmax.f32 %v2310, %v2553
        %v2708 = vmax.f32 %v2309, %v2555
        %v2709 = vmax.f32 %v2311, %v2557
        %v2710 = vmax.f32 %v2319, %v2559
        %v2711 = vmax.f32 %v2327, %v2561
        %v2712 = vmax.f32 %v2326, %v2563
        %v2713 = vmax.f32 %v2328, %v2565
        %v2714 = vmax.f32 %v2336, %v2567
        %v2715 = vmax.f32 %v2344, %v2569
        %v2716 = vmax.f32 %v2343, %v2571
        %v2717 = vmax.f32 %v2345, %v2573
        %v2718 = vmax.f32 %v2353, %v2575
        %v2719 = vmax.f32 %v2361, %v2577
        %v2720 = vmax.f32 %v2360, %v2579
        %v2721 = vmax.f32 %v2362, %v2581
        %v2722 = vmax.f32 %v2370, %v2583
        %v2723 = vmax.f32 %v2378, %v2585
        %v2724 = vmax.f32 %v2377, %v2587
        %v2725 = vmax.f32 %v2379, %v2589
        %v2726 = vmax.f32 %v2387, %v2591
        %v2727 = vmax.f32 %v2395, %v2593
        %v2728 = vmax.f32 %v2394, %v2595
        %v2729 = vmax.f32 %v2396, %v2597
        %v2730 = vmax.f32 %v2404, %v2599
        %v2731 = vmax.f32 %v2412, %v2601
        %v2732 = vmax.f32 %v2411, %v2603
        %v2733 = vmax.f32 %v2413, %v2605
        %vm2734 = vcmask 64512
        %2735 = vst.msk [vmem:[#allocation2] sm:$0xff] %vm2734, 0.0
        %vm2736 = vcmask 58368
        %2737 = vst.msk [vmem:[#allocation2 + $0x8] sm:$0x3] %vm2736, 0.0
        %s2738 = scalar_lea.vmem [#allocation2], 216
        %2739 = vst.msk [vmem:[%s2738] sm:$0xff] %vm2734, 0.0
        %2740 = vst.msk [vmem:[%s2738 + $0x8] sm:$0x3] %vm2736, 0.0
        %vm2741 = vcmask 57344
        %2742 = vst.msk [vmem:[%s372] sm:$0x1] %vm2741, 0.0
        %2743 = vst.msk [vmem:[%s372 + $0x18] sm:$0x1] %vm2741, 0.0
        %2744 = vst.msk [vmem:[%s372 + $0x30] sm:$0x1] %vm2741, 0.0
        %2745 = vst.msk [vmem:[%s372 + $0x48] sm:$0x1] %vm2741, 0.0
        %2746 = vst.msk [vmem:[%s372 + $0x60] sm:$0x1] %vm2741, 0.0
        %2747 = vst.msk [vmem:[%s372 + $0x78] sm:$0x1] %vm2741, 0.0
        %2748 = vst.msk [vmem:[%s372 + $0x90] sm:$0x1] %vm2741, 0.0
        %2749 = vst.msk [vmem:[%s372 + $0xa8] sm:$0x1] %vm2741, 0.0
        %2750 = vst.msk [vmem:[%s372 + $0x9] sm:$0x1] %vm2741, 0.0
        %2751 = vst.msk [vmem:[%s372 + $0x21] sm:$0x1] %vm2741, 0.0
        %2752 = vst.msk [vmem:[%s372 + $0x39] sm:$0x1] %vm2741, 0.0
        %2753 = vst.msk [vmem:[%s372 + $0x51] sm:$0x1] %vm2741, 0.0
        %2754 = vst.msk [vmem:[%s372 + $0x69] sm:$0x1] %vm2741, 0.0
        %2755 = vst.msk [vmem:[%s372 + $0x81] sm:$0x1] %vm2741, 0.0
        %2756 = vst.msk [vmem:[%s372 + $0x99] sm:$0x1] %vm2741, 0.0
        %2757 = vst.msk [vmem:[%s372 + $0xb1] sm:$0x1] %vm2741, 0.0
        %v2822 = vlaneseq
        %v2823 = vshrl.u32 %v2822, 7
        %v2824 = vsub.s32 0, %v2823
        %v2825 = vrot.slane %v2670, %v2824
        %v2826 = vlaneseq
        %v2827 = vshrl.u32 %v2826, 7
        %v2828 = vsub.s32 0, %v2827
        %v2829 = vrot.slane %v2671, %v2828
        %v2830 = vlaneseq
        %v2831 = vshrl.u32 %v2830, 7
        %v2832 = vsub.s32 0, %v2831
        %v2833 = vrot.slane %v2672, %v2832
        %v2834 = vlaneseq
        %v2835 = vshrl.u32 %v2834, 7
        %v2836 = vsub.s32 0, %v2835
        %v2837 = vrot.slane %v2673, %v2836
        %v2838 = vlaneseq
        %v2839 = vshrl.u32 %v2838, 7
        %v2840 = vsub.s32 0, %v2839
        %v2841 = vrot.slane %v2674, %v2840
        %v2842 = vlaneseq
        %v2843 = vshrl.u32 %v2842, 7
        %v2844 = vsub.s32 0, %v2843
        %v2845 = vrot.slane %v2675, %v2844
        %v2846 = vlaneseq
        %v2847 = vshrl.u32 %v2846, 7
        %v2848 = vsub.s32 0, %v2847
        %v2849 = vrot.slane %v2676, %v2848
        %v2850 = vlaneseq
        %v2851 = vshrl.u32 %v2850, 7
        %v2852 = vsub.s32 0, %v2851
        %v2853 = vrot.slane %v2677, %v2852
        %v2854 = vlaneseq
        %v2855 = vshrl.u32 %v2854, 7
        %v2856 = vsub.s32 0, %v2855
        %v2857 = vrot.slane %v2678, %v2856
        %v2858 = vlaneseq
        %v2859 = vshrl.u32 %v2858, 7
        %v2860 = vsub.s32 0, %v2859
        %v2861 = vrot.slane %v2679, %v2860
        %v2862 = vlaneseq
        %v2863 = vshrl.u32 %v2862, 7
        %v2864 = vsub.s32 0, %v2863
        %v2865 = vrot.slane %v2680, %v2864
        %v2866 = vlaneseq
        %v2867 = vshrl.u32 %v2866, 7
        %v2868 = vsub.s32 0, %v2867
        %v2869 = vrot.slane %v2681, %v2868
        %v2870 = vlaneseq
        %v2871 = vshrl.u32 %v2870, 7
        %v2872 = vsub.s32 0, %v2871
        %v2873 = vrot.slane %v2682, %v2872
        %v2874 = vlaneseq
        %v2875 = vshrl.u32 %v2874, 7
        %v2876 = vsub.s32 0, %v2875
        %v2877 = vrot.slane %v2683, %v2876
        %v2878 = vlaneseq
        %v2879 = vshrl.u32 %v2878, 7
        %v2880 = vsub.s32 0, %v2879
        %v2881 = vrot.slane %v2684, %v2880
        %v2882 = vlaneseq
        %v2883 = vshrl.u32 %v2882, 7
        %v2884 = vsub.s32 0, %v2883
        %v2885 = vrot.slane %v2685, %v2884
        %v2886 = vlaneseq
        %v2887 = vshrl.u32 %v2886, 7
        %v2888 = vsub.s32 0, %v2887
        %v2889 = vrot.slane %v2686, %v2888
        %v2890 = vlaneseq
        %v2891 = vshrl.u32 %v2890, 7
        %v2892 = vsub.s32 0, %v2891
        %v2893 = vrot.slane %v2687, %v2892
        %v2894 = vlaneseq
        %v2895 = vshrl.u32 %v2894, 7
        %v2896 = vsub.s32 0, %v2895
        %v2897 = vrot.slane %v2688, %v2896
        %v2898 = vlaneseq
        %v2899 = vshrl.u32 %v2898, 7
        %v2900 = vsub.s32 0, %v2899
        %v2901 = vrot.slane %v2689, %v2900
        %v2902 = vlaneseq
        %v2903 = vshrl.u32 %v2902, 7
        %v2904 = vsub.s32 0, %v2903
        %v2905 = vrot.slane %v2690, %v2904
        %v2906 = vlaneseq
        %v2907 = vshrl.u32 %v2906, 7
        %v2908 = vsub.s32 0, %v2907
        %v2909 = vrot.slane %v2691, %v2908
        %v2910 = vlaneseq
        %v2911 = vshrl.u32 %v2910, 7
        %v2912 = vsub.s32 0, %v2911
        %v2913 = vrot.slane %v2692, %v2912
        %v2914 = vlaneseq
        %v2915 = vshrl.u32 %v2914, 7
        %v2916 = vsub.s32 0, %v2915
        %v2917 = vrot.slane %v2693, %v2916
        %v2918 = vlaneseq
        %v2919 = vshrl.u32 %v2918, 7
        %v2920 = vsub.s32 0, %v2919
        %v2921 = vrot.slane %v2694, %v2920
        %v2922 = vlaneseq
        %v2923 = vshrl.u32 %v2922, 7
        %v2924 = vsub.s32 0, %v2923
        %v2925 = vrot.slane %v2695, %v2924
        %v2926 = vlaneseq
        %v2927 = vshrl.u32 %v2926, 7
        %v2928 = vsub.s32 0, %v2927
        %v2929 = vrot.slane %v2696, %v2928
        %v2930 = vlaneseq
        %v2931 = vshrl.u32 %v2930, 7
        %v2932 = vsub.s32 0, %v2931
        %v2933 = vrot.slane %v2697, %v2932
        %v2934 = vlaneseq
        %v2935 = vshrl.u32 %v2934, 7
        %v2936 = vsub.s32 0, %v2935
        %v2937 = vrot.slane %v2698, %v2936
        %v2938 = vlaneseq
        %v2939 = vshrl.u32 %v2938, 7
        %v2940 = vsub.s32 0, %v2939
        %v2941 = vrot.slane %v2699, %v2940
        %v2942 = vlaneseq
        %v2943 = vshrl.u32 %v2942, 7
        %v2944 = vsub.s32 0, %v2943
        %v2945 = vrot.slane %v2700, %v2944
        %v2946 = vlaneseq
        %v2947 = vshrl.u32 %v2946, 7
        %v2948 = vsub.s32 0, %v2947
        %v2949 = vrot.slane %v2701, %v2948
        %v2950 = vlaneseq
        %v2951 = vshrl.u32 %v2950, 7
        %v2952 = vsub.s32 0, %v2951
        %v2953 = vrot.slane %v2702, %v2952
        %v2954 = vlaneseq
        %v2955 = vshrl.u32 %v2954, 7
        %v2956 = vsub.s32 0, %v2955
        %v2957 = vrot.slane %v2703, %v2956
        %v2958 = vlaneseq
        %v2959 = vshrl.u32 %v2958, 7
        %v2960 = vsub.s32 0, %v2959
        %v2961 = vrot.slane %v2704, %v2960
        %v2962 = vlaneseq
        %v2963 = vshrl.u32 %v2962, 7
        %v2964 = vsub.s32 0, %v2963
        %v2965 = vrot.slane %v2705, %v2964
        %v2966 = vlaneseq
        %v2967 = vshrl.u32 %v2966, 7
        %v2968 = vsub.s32 0, %v2967
        %v2969 = vrot.slane %v2706, %v2968
        %v2970 = vlaneseq
        %v2971 = vshrl.u32 %v2970, 7
        %v2972 = vsub.s32 0, %v2971
        %v2973 = vrot.slane %v2707, %v2972
        %v2974 = vlaneseq
        %v2975 = vshrl.u32 %v2974, 7
        %v2976 = vsub.s32 0, %v2975
        %v2977 = vrot.slane %v2708, %v2976
        %v2978 = vlaneseq
        %v2979 = vshrl.u32 %v2978, 7
        %v2980 = vsub.s32 0, %v2979
        %v2981 = vrot.slane %v2709, %v2980
        %v2982 = vlaneseq
        %v2983 = vshrl.u32 %v2982, 7
        %v2984 = vsub.s32 0, %v2983
        %v2985 = vrot.slane %v2710, %v2984
        %v2986 = vlaneseq
        %v2987 = vshrl.u32 %v2986, 7
        %v2988 = vsub.s32 0, %v2987
        %v2989 = vrot.slane %v2711, %v2988
        %v2990 = vlaneseq
        %v2991 = vshrl.u32 %v2990, 7
        %v2992 = vsub.s32 0, %v2991
        %v2993 = vrot.slane %v2712, %v2992
        %v2994 = vlaneseq
        %v2995 = vshrl.u32 %v2994, 7
        %v2996 = vsub.s32 0, %v2995
        %v2997 = vrot.slane %v2713, %v2996
        %v2998 = vlaneseq
        %v2999 = vshrl.u32 %v2998, 7
        %v3000 = vsub.s32 0, %v2999
        %v3001 = vrot.slane %v2714, %v3000
        %v3002 = vlaneseq
        %v3003 = vshrl.u32 %v3002, 7
        %v3004 = vsub.s32 0, %v3003
        %v3005 = vrot.slane %v2715, %v3004
        %v3006 = vlaneseq
        %v3007 = vshrl.u32 %v3006, 7
        %v3008 = vsub.s32 0, %v3007
        %v3009 = vrot.slane %v2716, %v3008
        %v3010 = vlaneseq
        %v3011 = vshrl.u32 %v3010, 7
        %v3012 = vsub.s32 0, %v3011
        %v3013 = vrot.slane %v2717, %v3012
        %v3014 = vlaneseq
        %v3015 = vshrl.u32 %v3014, 7
        %v3016 = vsub.s32 0, %v3015
        %v3017 = vrot.slane %v2718, %v3016
        %v3018 = vlaneseq
        %v3019 = vshrl.u32 %v3018, 7
        %v3020 = vsub.s32 0, %v3019
        %v3021 = vrot.slane %v2719, %v3020
        %v3022 = vlaneseq
        %v3023 = vshrl.u32 %v3022, 7
        %v3024 = vsub.s32 0, %v3023
        %v3025 = vrot.slane %v2720, %v3024
        %v3026 = vlaneseq
        %v3027 = vshrl.u32 %v3026, 7
        %v3028 = vsub.s32 0, %v3027
        %v3029 = vrot.slane %v2721, %v3028
        %v3030 = vlaneseq
        %v3031 = vshrl.u32 %v3030, 7
        %v3032 = vsub.s32 0, %v3031
        %v3033 = vrot.slane %v2722, %v3032
        %v3034 = vlaneseq
        %v3035 = vshrl.u32 %v3034, 7
        %v3036 = vsub.s32 0, %v3035
        %v3037 = vrot.slane %v2723, %v3036
        %v3038 = vlaneseq
        %v3039 = vshrl.u32 %v3038, 7
        %v3040 = vsub.s32 0, %v3039
        %v3041 = vrot.slane %v2724, %v3040
        %v3042 = vlaneseq
        %v3043 = vshrl.u32 %v3042, 7
        %v3044 = vsub.s32 0, %v3043
        %v3045 = vrot.slane %v2725, %v3044
        %v3046 = vlaneseq
        %v3047 = vshrl.u32 %v3046, 7
        %v3048 = vsub.s32 0, %v3047
        %v3049 = vrot.slane %v2726, %v3048
        %v3050 = vlaneseq
        %v3051 = vshrl.u32 %v3050, 7
        %v3052 = vsub.s32 0, %v3051
        %v3053 = vrot.slane %v2727, %v3052
        %v3054 = vlaneseq
        %v3055 = vshrl.u32 %v3054, 7
        %v3056 = vsub.s32 0, %v3055
        %v3057 = vrot.slane %v2728, %v3056
        %v3058 = vlaneseq
        %v3059 = vshrl.u32 %v3058, 7
        %v3060 = vsub.s32 0, %v3059
        %v3061 = vrot.slane %v2729, %v3060
        %v3062 = vlaneseq
        %v3063 = vshrl.u32 %v3062, 7
        %v3064 = vsub.s32 0, %v3063
        %v3065 = vrot.slane %v2730, %v3064
        %v3066 = vlaneseq
        %v3067 = vshrl.u32 %v3066, 7
        %v3068 = vsub.s32 0, %v3067
        %v3069 = vrot.slane %v2731, %v3068
        %v3070 = vlaneseq
        %v3071 = vshrl.u32 %v3070, 7
        %v3072 = vsub.s32 0, %v3071
        %v3073 = vrot.slane %v2732, %v3072
        %v3074 = vlaneseq
        %v3075 = vshrl.u32 %v3074, 7
        %v3076 = vsub.s32 0, %v3075
        %v3077 = vrot.slane %v2733, %v3076
        %vm3078 = vcmask 1041409
        %v3079 = vsel %vm3078, %v2829, %v2825
        %vm3080 = vcmask 1042434
        %v3081 = vsel %vm3080, %v2833, %v3079
        %vm3082 = vcmask 1043459
        %v3083 = vsel %vm3082, %v2837, %v3081
        %vm3084 = vcmask 1044484
        %v3085 = vsel %vm3084, %v2841, %v3083
        %vm3086 = vcmask 1045509
        %v3087 = vsel %vm3086, %v2845, %v3085
        %vm3088 = vcmask 1046534
        %v3089 = vsel %vm3088, %v2849, %v3087
        %vm3090 = vcmask 1047559
        %v3091 = vsel %vm3090, %v2853, %v3089
        %v3092 = vsel %vm3078, %v2861, %v2857
        %v3093 = vsel %vm3080, %v2865, %v3092
        %v3094 = vsel %vm3082, %v2869, %v3093
        %v3095 = vsel %vm3084, %v2873, %v3094
        %v3096 = vsel %vm3086, %v2877, %v3095
        %v3097 = vsel %vm3088, %v2881, %v3096
        %v3098 = vsel %vm3090, %v2885, %v3097
        %v3099 = vsel %vm3078, %v2893, %v2889
        %v3100 = vsel %vm3080, %v2897, %v3099
        %v3101 = vsel %vm3082, %v2901, %v3100
        %v3102 = vsel %vm3084, %v2905, %v3101
        %v3103 = vsel %vm3086, %v2909, %v3102
        %v3104 = vsel %vm3088, %v2913, %v3103
        %v3105 = vsel %vm3090, %v2917, %v3104
        %v3106 = vsel %vm3078, %v2925, %v2921
        %v3107 = vsel %vm3080, %v2929, %v3106
        %v3108 = vsel %vm3082, %v2933, %v3107
        %v3109 = vsel %vm3084, %v2937, %v3108
        %v3110 = vsel %vm3086, %v2941, %v3109
        %v3111 = vsel %vm3088, %v2945, %v3110
        %v3112 = vsel %vm3090, %v2949, %v3111
        %v3113 = vsel %vm3078, %v2957, %v2953
        %v3114 = vsel %vm3080, %v2961, %v3113
        %v3115 = vsel %vm3082, %v2965, %v3114
        %v3116 = vsel %vm3084, %v2969, %v3115
        %v3117 = vsel %vm3086, %v2973, %v3116
        %v3118 = vsel %vm3088, %v2977, %v3117
        %v3119 = vsel %vm3090, %v2981, %v3118
        %v3120 = vsel %vm3078, %v2989, %v2985
        %v3121 = vsel %vm3080, %v2993, %v3120
        %v3122 = vsel %vm3082, %v2997, %v3121
        %v3123 = vsel %vm3084, %v3001, %v3122
        %v3124 = vsel %vm3086, %v3005, %v3123
        %v3125 = vsel %vm3088, %v3009, %v3124
        %v3126 = vsel %vm3090, %v3013, %v3125
        %v3127 = vsel %vm3078, %v3021, %v3017
        %v3128 = vsel %vm3080, %v3025, %v3127
        %v3129 = vsel %vm3082, %v3029, %v3128
        %v3130 = vsel %vm3084, %v3033, %v3129
        %v3131 = vsel %vm3086, %v3037, %v3130
        %v3132 = vsel %vm3088, %v3041, %v3131
        %v3133 = vsel %vm3090, %v3045, %v3132
        %v3134 = vsel %vm3078, %v3053, %v3049
        %v3135 = vsel %vm3080, %v3057, %v3134
        %v3136 = vsel %vm3082, %v3061, %v3135
        %v3137 = vsel %vm3084, %v3065, %v3136
        %v3138 = vsel %vm3086, %v3069, %v3137
        %v3139 = vsel %vm3088, %v3073, %v3138
        %v3140 = vsel %vm3090, %v3077, %v3139
        %3149 = vst.msk [vmem:[%s372 + $0x1] sm:$0xff] %vm2734, %v3091
        %3150 = vst.msk [vmem:[%s372 + $0x19] sm:$0xff] %vm2734, %v3098
        %3151 = vst.msk [vmem:[%s372 + $0x31] sm:$0xff] %vm2734, %v3105
        %3152 = vst.msk [vmem:[%s372 + $0x49] sm:$0xff] %vm2734, %v3112
        %3153 = vst.msk [vmem:[%s372 + $0x61] sm:$0xff] %vm2734, %v3119
        %3154 = vst.msk [vmem:[%s372 + $0x79] sm:$0xff] %vm2734, %v3126
        %3155 = vst.msk [vmem:[%s372 + $0x91] sm:$0xff] %vm2734, %v3133
        %3156 = vst.msk [vmem:[%s372 + $0xa9] sm:$0xff] %vm2734, %v3140
        %v3157 = vld [vmem:[#allocation2] sm:$0xff]
        %v3158 = vld [vmem:[#allocation2 + $0x8] sm:$0x3]
        %v3159 = vld [vmem:[#allocation2 + $0x18] sm:$0xff]
        %v3160 = vld [vmem:[#allocation2 + $0x20] sm:$0x3]
        %v3161 = vld [vmem:[#allocation2 + $0x30] sm:$0xff]
        %v3162 = vld [vmem:[#allocation2 + $0x38] sm:$0x3]
        %v3163 = vld [vmem:[#allocation2 + $0x48] sm:$0xff]
        %v3164 = vld [vmem:[#allocation2 + $0x50] sm:$0x3]
        %v3165 = vld [vmem:[#allocation2 + $0x60] sm:$0xff]
        %v3166 = vld [vmem:[#allocation2 + $0x68] sm:$0x3]
        %v3167 = vld [vmem:[#allocation2 + $0x78] sm:$0xff]
        %v3168 = vld [vmem:[#allocation2 + $0x80] sm:$0x3]
        %v3169 = vld [vmem:[#allocation2 + $0x90] sm:$0xff]
        %v3170 = vld [vmem:[#allocation2 + $0x98] sm:$0x3]
        %v3171 = vld [vmem:[#allocation2 + $0xa8] sm:$0xff]
        %v3172 = vld [vmem:[#allocation2 + $0xb0] sm:$0x3]
        %v3173 = vld [vmem:[#allocation2 + $0xc0] sm:$0xff]
        %v3174 = vld [vmem:[#allocation2 + $0xc8] sm:$0x3]
        %v3175 = vld [vmem:[#allocation2 + $0xd8] sm:$0xff]
        %v3176 = vld [vmem:[#allocation2 + $0xe0] sm:$0x3]
        %3177 = vst.msk [vmem:[#allocation3] sm:$0xff] %vm2734, %v3157
        %3178 = vst.msk [vmem:[#allocation3 + $0x10] sm:$0xff] %vm2734, %v3159
        %3179 = vst.msk [vmem:[#allocation3 + $0x20] sm:$0xff] %vm2734, %v3161
        %3180 = vst.msk [vmem:[#allocation3 + $0x30] sm:$0xff] %vm2734, %v3163
        %3181 = vst.msk [vmem:[#allocation3 + $0x40] sm:$0xff] %vm2734, %v3165
        %3182 = vst.msk [vmem:[#allocation3 + $0x50] sm:$0xff] %vm2734, %v3167
        %3183 = vst.msk [vmem:[#allocation3 + $0x60] sm:$0xff] %vm2734, %v3169
        %3184 = vst.msk [vmem:[#allocation3 + $0x70] sm:$0xff] %vm2734, %v3171
        %v3201 = vrot.slane %v3157, 1
        %v3202 = vrot.slane %v3158, 1
        %v3203 = vsel %vm572, %v3201, %v3202
        %v3204 = vrot.slane %v3159, 1
        %v3205 = vrot.slane %v3160, 1
        %v3206 = vsel %vm572, %v3204, %v3205
        %v3207 = vrot.slane %v3161, 1
        %v3208 = vrot.slane %v3162, 1
        %v3209 = vsel %vm572, %v3207, %v3208
        %v3210 = vrot.slane %v3163, 1
        %v3211 = vrot.slane %v3164, 1
        %v3212 = vsel %vm572, %v3210, %v3211
        %v3213 = vrot.slane %v3165, 1
        %v3214 = vrot.slane %v3166, 1
        %v3215 = vsel %vm572, %v3213, %v3214
        %v3216 = vrot.slane %v3167, 1
        %v3217 = vrot.slane %v3168, 1
        %v3218 = vsel %vm572, %v3216, %v3217
        %v3219 = vrot.slane %v3169, 1
        %v3220 = vrot.slane %v3170, 1
        %v3221 = vsel %vm572, %v3219, %v3220
        %v3222 = vrot.slane %v3171, 1
        %v3223 = vrot.slane %v3172, 1
        %v3224 = vsel %vm572, %v3222, %v3223
        %3225 = vrot.lane.b32.xlu0 %v3203, 8
        %v3226 = vpop.permute.xlu0 %3225
        %3227 = vrot.lane.b32.xlu0 %v3206, 8
        %v3228 = vpop.permute.xlu0 %3227
        %3229 = vrot.lane.b32.xlu0 %v3209, 8
        %v3230 = vpop.permute.xlu0 %3229
        %3231 = vrot.lane.b32.xlu0 %v3212, 8
        %v3232 = vpop.permute.xlu0 %3231
        %3233 = vrot.lane.b32.xlu0 %v3215, 8
        %v3234 = vpop.permute.xlu0 %3233
        %3235 = vrot.lane.b32.xlu0 %v3218, 8
        %v3236 = vpop.permute.xlu0 %3235
        %3237 = vrot.lane.b32.xlu0 %v3221, 8
        %v3238 = vpop.permute.xlu0 %3237
        %3239 = vrot.lane.b32.xlu0 %v3224, 8
        %v3240 = vpop.permute.xlu0 %3239
        %vm3249 = vcmask 130112
        %3250 = vst.msk [vmem:[#allocation3] sm:$0xff] %vm3249, %v3226
        %3251 = vst.msk [vmem:[#allocation3 + $0x10] sm:$0xff] %vm3249, %v3228
        %3252 = vst.msk [vmem:[#allocation3 + $0x20] sm:$0xff] %vm3249, %v3230
        %3253 = vst.msk [vmem:[#allocation3 + $0x30] sm:$0xff] %vm3249, %v3232
        %3254 = vst.msk [vmem:[#allocation3 + $0x40] sm:$0xff] %vm3249, %v3234
        %3255 = vst.msk [vmem:[#allocation3 + $0x50] sm:$0xff] %vm3249, %v3236
        %3256 = vst.msk [vmem:[#allocation3 + $0x60] sm:$0xff] %vm3249, %v3238
        %3257 = vst.msk [vmem:[#allocation3 + $0x70] sm:$0xff] %vm3249, %v3240
        %v3258 = vrot.slane %v3157, 2
        %v3259 = vrot.slane %v3158, 2
        %v3260 = vsel %vm782, %v3258, %v3259
        %v3261 = vrot.slane %v3159, 2
        %v3262 = vrot.slane %v3160, 2
        %v3263 = vsel %vm782, %v3261, %v3262
        %v3264 = vrot.slane %v3161, 2
        %v3265 = vrot.slane %v3162, 2
        %v3266 = vsel %vm782, %v3264, %v3265
        %v3267 = vrot.slane %v3163, 2
        %v3268 = vrot.slane %v3164, 2
        %v3269 = vsel %vm782, %v3267, %v3268
        %v3270 = vrot.slane %v3165, 2
        %v3271 = vrot.slane %v3166, 2
        %v3272 = vsel %vm782, %v3270, %v3271
        %v3273 = vrot.slane %v3167, 2
        %v3274 = vrot.slane %v3168, 2
        %v3275 = vsel %vm782, %v3273, %v3274
        %v3276 = vrot.slane %v3169, 2
        %v3277 = vrot.slane %v3170, 2
        %v3278 = vsel %vm782, %v3276, %v3277
        %v3279 = vrot.slane %v3171, 2
        %v3280 = vrot.slane %v3172, 2
        %v3281 = vsel %vm782, %v3279, %v3280
        %3282 = vrot.lane.b32.xlu0 %v3260, 16
        %v3283 = vpop.permute.xlu0 %3282
        %3284 = vrot.lane.b32.xlu0 %v3263, 16
        %v3285 = vpop.permute.xlu0 %3284
        %3286 = vrot.lane.b32.xlu0 %v3266, 16
        %v3287 = vpop.permute.xlu0 %3286
        %3288 = vrot.lane.b32.xlu0 %v3269, 16
        %v3289 = vpop.permute.xlu0 %3288
        %3290 = vrot.lane.b32.xlu0 %v3272, 16
        %v3291 = vpop.permute.xlu0 %3290
        %3292 = vrot.lane.b32.xlu0 %v3275, 16
        %v3293 = vpop.permute.xlu0 %3292
        %3294 = vrot.lane.b32.xlu0 %v3278, 16
        %v3295 = vpop.permute.xlu0 %3294
        %3296 = vrot.lane.b32.xlu0 %v3281, 16
        %v3297 = vpop.permute.xlu0 %3296
        %vm3306 = vcmask 195712
        %3307 = vst.msk [vmem:[#allocation3] sm:$0xff] %vm3306, %v3283
        %3308 = vst.msk [vmem:[#allocation3 + $0x10] sm:$0xff] %vm3306, %v3285
        %3309 = vst.msk [vmem:[#allocation3 + $0x20] sm:$0xff] %vm3306, %v3287
        %3310 = vst.msk [vmem:[#allocation3 + $0x30] sm:$0xff] %vm3306, %v3289
        %3311 = vst.msk [vmem:[#allocation3 + $0x40] sm:$0xff] %vm3306, %v3291
        %3312 = vst.msk [vmem:[#allocation3 + $0x50] sm:$0xff] %vm3306, %v3293
        %3313 = vst.msk [vmem:[#allocation3 + $0x60] sm:$0xff] %vm3306, %v3295
        %3314 = vst.msk [vmem:[#allocation3 + $0x70] sm:$0xff] %vm3306, %v3297
        %3316 = vrot.lane.b32.xlu0 %v3159, 24
        %v3317 = vpop.permute.xlu0 %3316
        %3318 = vrot.lane.b32.xlu0 %v3161, 24
        %v3319 = vpop.permute.xlu0 %3318
        %3320 = vrot.lane.b32.xlu0 %v3163, 24
        %v3321 = vpop.permute.xlu0 %3320
        %3322 = vrot.lane.b32.xlu0 %v3165, 24
        %v3323 = vpop.permute.xlu0 %3322
        %3324 = vrot.lane.b32.xlu0 %v3167, 24
        %v3325 = vpop.permute.xlu0 %3324
        %3326 = vrot.lane.b32.xlu0 %v3169, 24
        %v3327 = vpop.permute.xlu0 %3326
        %3328 = vrot.lane.b32.xlu0 %v3171, 24
        %v3329 = vpop.permute.xlu0 %3328
        %3330 = vrot.lane.b32.xlu0 %v3173, 24
        %v3331 = vpop.permute.xlu0 %3330
        %vm3340 = vcmask 261312
        %3341 = vst.msk [vmem:[#allocation3] sm:$0xff] %vm3340, %v3317
        %3342 = vst.msk [vmem:[#allocation3 + $0x10] sm:$0xff] %vm3340, %v3319
        %3343 = vst.msk [vmem:[#allocation3 + $0x20] sm:$0xff] %vm3340, %v3321
        %3344 = vst.msk [vmem:[#allocation3 + $0x30] sm:$0xff] %vm3340, %v3323
        %3345 = vst.msk [vmem:[#allocation3 + $0x40] sm:$0xff] %vm3340, %v3325
        %3346 = vst.msk [vmem:[#allocation3 + $0x50] sm:$0xff] %vm3340, %v3327
        %3347 = vst.msk [vmem:[#allocation3 + $0x60] sm:$0xff] %vm3340, %v3329
        %3348 = vst.msk [vmem:[#allocation3 + $0x70] sm:$0xff] %vm3340, %v3331
        %v3350 = vrot.slane %v3173, 1
        %v3351 = vrot.slane %v3174, 1
        %v3352 = vsel %vm572, %v3350, %v3351
        %3353 = vrot.lane.b32.xlu0 %v3206, 32
        %v3354 = vpop.permute.xlu0 %3353
        %3355 = vrot.lane.b32.xlu0 %v3209, 32
        %v3356 = vpop.permute.xlu0 %3355
        %3357 = vrot.lane.b32.xlu0 %v3212, 32
        %v3358 = vpop.permute.xlu0 %3357
        %3359 = vrot.lane.b32.xlu0 %v3215, 32
        %v3360 = vpop.permute.xlu0 %3359
        %3361 = vrot.lane.b32.xlu0 %v3218, 32
        %v3362 = vpop.permute.xlu0 %3361
        %3363 = vrot.lane.b32.xlu0 %v3221, 32
        %v3364 = vpop.permute.xlu0 %3363
        %3365 = vrot.lane.b32.xlu0 %v3224, 32
        %v3366 = vpop.permute.xlu0 %3365
        %3367 = vrot.lane.b32.xlu0 %v3352, 32
        %v3368 = vpop.permute.xlu0 %3367
        %vm3377 = vcmask 326912
        %3378 = vst.msk [vmem:[#allocation3] sm:$0xff] %vm3377, %v3354
        %3379 = vst.msk [vmem:[#allocation3 + $0x10] sm:$0xff] %vm3377, %v3356
        %3380 = vst.msk [vmem:[#allocation3 + $0x20] sm:$0xff] %vm3377, %v3358
        %3381 = vst.msk [vmem:[#allocation3 + $0x30] sm:$0xff] %vm3377, %v3360
        %3382 = vst.msk [vmem:[#allocation3 + $0x40] sm:$0xff] %vm3377, %v3362
        %3383 = vst.msk [vmem:[#allocation3 + $0x50] sm:$0xff] %vm3377, %v3364
        %3384 = vst.msk [vmem:[#allocation3 + $0x60] sm:$0xff] %vm3377, %v3366
        %3385 = vst.msk [vmem:[#allocation3 + $0x70] sm:$0xff] %vm3377, %v3368
        %v3386 = vrot.slane %v3173, 2
        %v3387 = vrot.slane %v3174, 2
        %v3388 = vsel %vm782, %v3386, %v3387
        %3389 = vrot.lane.b32.xlu0 %v3263, 40
        %v3390 = vpop.permute.xlu0 %3389
        %3391 = vrot.lane.b32.xlu0 %v3266, 40
        %v3392 = vpop.permute.xlu0 %3391
        %3393 = vrot.lane.b32.xlu0 %v3269, 40
        %v3394 = vpop.permute.xlu0 %3393
        %3395 = vrot.lane.b32.xlu0 %v3272, 40
        %v3396 = vpop.permute.xlu0 %3395
        %3397 = vrot.lane.b32.xlu0 %v3275, 40
        %v3398 = vpop.permute.xlu0 %3397
        %3399 = vrot.lane.b32.xlu0 %v3278, 40
        %v3400 = vpop.permute.xlu0 %3399
        %3401 = vrot.lane.b32.xlu0 %v3281, 40
        %v3402 = vpop.permute.xlu0 %3401
        %3403 = vrot.lane.b32.xlu0 %v3388, 40
        %v3404 = vpop.permute.xlu0 %3403
        %vm3413 = vcmask 392512
        %3414 = vst.msk [vmem:[#allocation3] sm:$0xff] %vm3413, %v3390
        %3415 = vst.msk [vmem:[#allocation3 + $0x10] sm:$0xff] %vm3413, %v3392
        %3416 = vst.msk [vmem:[#allocation3 + $0x20] sm:$0xff] %vm3413, %v3394
        %3417 = vst.msk [vmem:[#allocation3 + $0x30] sm:$0xff] %vm3413, %v3396
        %3418 = vst.msk [vmem:[#allocation3 + $0x40] sm:$0xff] %vm3413, %v3398
        %3419 = vst.msk [vmem:[#allocation3 + $0x50] sm:$0xff] %vm3413, %v3400
        %3420 = vst.msk [vmem:[#allocation3 + $0x60] sm:$0xff] %vm3413, %v3402
        %3421 = vst.msk [vmem:[#allocation3 + $0x70] sm:$0xff] %vm3413, %v3404
        %3423 = vrot.lane.b32.xlu0 %v3161, 48
        %v3424 = vpop.permute.xlu0 %3423
        %3425 = vrot.lane.b32.xlu0 %v3163, 48
        %v3426 = vpop.permute.xlu0 %3425
        %3427 = vrot.lane.b32.xlu0 %v3165, 48
        %v3428 = vpop.permute.xlu0 %3427
        %3429 = vrot.lane.b32.xlu0 %v3167, 48
        %v3430 = vpop.permute.xlu0 %3429
        %3431 = vrot.lane.b32.xlu0 %v3169, 48
        %v3432 = vpop.permute.xlu0 %3431
        %3433 = vrot.lane.b32.xlu0 %v3171, 48
        %v3434 = vpop.permute.xlu0 %3433
        %3435 = vrot.lane.b32.xlu0 %v3173, 48
        %v3436 = vpop.permute.xlu0 %3435
        %3437 = vrot.lane.b32.xlu0 %v3175, 48
        %v3438 = vpop.permute.xlu0 %3437
        %vm3447 = vcmask 458112
        %3448 = vst.msk [vmem:[#allocation3] sm:$0xff] %vm3447, %v3424
        %3449 = vst.msk [vmem:[#allocation3 + $0x10] sm:$0xff] %vm3447, %v3426
        %3450 = vst.msk [vmem:[#allocation3 + $0x20] sm:$0xff] %vm3447, %v3428
        %3451 = vst.msk [vmem:[#allocation3 + $0x30] sm:$0xff] %vm3447, %v3430
        %3452 = vst.msk [vmem:[#allocation3 + $0x40] sm:$0xff] %vm3447, %v3432
        %3453 = vst.msk [vmem:[#allocation3 + $0x50] sm:$0xff] %vm3447, %v3434
        %3454 = vst.msk [vmem:[#allocation3 + $0x60] sm:$0xff] %vm3447, %v3436
        %3455 = vst.msk [vmem:[#allocation3 + $0x70] sm:$0xff] %vm3447, %v3438
        %v3457 = vrot.slane %v3175, 1
        %v3458 = vrot.slane %v3176, 1
        %v3459 = vsel %vm572, %v3457, %v3458
        %3460 = vrot.lane.b32.xlu0 %v3209, 56
        %v3461 = vpop.permute.xlu0 %3460
        %3462 = vrot.lane.b32.xlu0 %v3212, 56
        %v3463 = vpop.permute.xlu0 %3462
        %3464 = vrot.lane.b32.xlu0 %v3215, 56
        %v3465 = vpop.permute.xlu0 %3464
        %3466 = vrot.lane.b32.xlu0 %v3218, 56
        %v3467 = vpop.permute.xlu0 %3466
        %3468 = vrot.lane.b32.xlu0 %v3221, 56
        %v3469 = vpop.permute.xlu0 %3468
        %3470 = vrot.lane.b32.xlu0 %v3224, 56
        %v3471 = vpop.permute.xlu0 %3470
        %3472 = vrot.lane.b32.xlu0 %v3352, 56
        %v3473 = vpop.permute.xlu0 %3472
        %3474 = vrot.lane.b32.xlu0 %v3459, 56
        %v3475 = vpop.permute.xlu0 %3474
        %vm3484 = vcmask 523712
        %3485 = vst.msk [vmem:[#allocation3] sm:$0xff] %vm3484, %v3461
        %3486 = vst.msk [vmem:[#allocation3 + $0x10] sm:$0xff] %vm3484, %v3463
        %3487 = vst.msk [vmem:[#allocation3 + $0x20] sm:$0xff] %vm3484, %v3465
        %3488 = vst.msk [vmem:[#allocation3 + $0x30] sm:$0xff] %vm3484, %v3467
        %3489 = vst.msk [vmem:[#allocation3 + $0x40] sm:$0xff] %vm3484, %v3469
        %3490 = vst.msk [vmem:[#allocation3 + $0x50] sm:$0xff] %vm3484, %v3471
        %3491 = vst.msk [vmem:[#allocation3 + $0x60] sm:$0xff] %vm3484, %v3473
        %3492 = vst.msk [vmem:[#allocation3 + $0x70] sm:$0xff] %vm3484, %v3475
        %v3493 = vrot.slane %v3175, 2
        %v3494 = vrot.slane %v3176, 2
        %v3495 = vsel %vm782, %v3493, %v3494
        %3496 = vrot.lane.b32.xlu0 %v3266, 64
        %v3497 = vpop.permute.xlu0 %3496
        %3498 = vrot.lane.b32.xlu0 %v3269, 64
        %v3499 = vpop.permute.xlu0 %3498
        %3500 = vrot.lane.b32.xlu0 %v3272, 64
        %v3501 = vpop.permute.xlu0 %3500
        %3502 = vrot.lane.b32.xlu0 %v3275, 64
        %v3503 = vpop.permute.xlu0 %3502
        %3504 = vrot.lane.b32.xlu0 %v3278, 64
        %v3505 = vpop.permute.xlu0 %3504
        %3506 = vrot.lane.b32.xlu0 %v3281, 64
        %v3507 = vpop.permute.xlu0 %3506
        %3508 = vrot.lane.b32.xlu0 %v3388, 64
        %v3509 = vpop.permute.xlu0 %3508
        %3510 = vrot.lane.b32.xlu0 %v3495, 64
        %v3511 = vpop.permute.xlu0 %3510
        %vm3520 = vcmask 589312
        %3521 = vst.msk [vmem:[#allocation3] sm:$0xff] %vm3520, %v3497
        %3522 = vst.msk [vmem:[#allocation3 + $0x10] sm:$0xff] %vm3520, %v3499
        %3523 = vst.msk [vmem:[#allocation3 + $0x20] sm:$0xff] %vm3520, %v3501
        %3524 = vst.msk [vmem:[#allocation3 + $0x30] sm:$0xff] %vm3520, %v3503
        %3525 = vst.msk [vmem:[#allocation3 + $0x40] sm:$0xff] %vm3520, %v3505
        %3526 = vst.msk [vmem:[#allocation3 + $0x50] sm:$0xff] %vm3520, %v3507
        %3527 = vst.msk [vmem:[#allocation3 + $0x60] sm:$0xff] %vm3520, %v3509
        %3528 = vst.msk [vmem:[#allocation3 + $0x70] sm:$0xff] %vm3520, %v3511
        %v3529 = vld [vmem:[#allocation3] sm:$0xff]
        %v3530 = vld [vmem:[#allocation3 + $0x10] sm:$0xff]
        %v3531 = vld [vmem:[#allocation3 + $0x20] sm:$0xff]
        %v3532 = vld [vmem:[#allocation3 + $0x30] sm:$0xff]
        %v3533 = vld [vmem:[#allocation3 + $0x40] sm:$0xff]
        %v3534 = vld [vmem:[#allocation3 + $0x50] sm:$0xff]
        %v3535 = vld [vmem:[#allocation3 + $0x60] sm:$0xff]
        %v3536 = vld [vmem:[#allocation3 + $0x70] sm:$0xff]
        %v3537 = vpack.c.bf16 %v3530, %v3529
        %v3538 = vpack.c.bf16 %v3532, %v3531
        %v3539 = vpack.c.bf16 %v3534, %v3533
        %v3540 = vpack.c.bf16 %v3536, %v3535
        %v3541 = vld [vmem:[%s3] sm:$0xf]
        %v3542 = vld [vmem:[%s3 + $0x4] sm:$0xf]
        %v3543 = vld [vmem:[%s3 + $0x8] sm:$0xf]
        %v3544 = vld [vmem:[%s3 + $0xc] sm:$0xf]
        %v3545 = vld [vmem:[%s3 + $0x10] sm:$0xf]
        %v3546 = vld [vmem:[%s3 + $0x14] sm:$0xf]
        %v3547 = vld [vmem:[%s3 + $0x18] sm:$0xf]
        %v3548 = vld [vmem:[%s3 + $0x1c] sm:$0xf]
        %v3549 = vld [vmem:[%s3 + $0x20] sm:$0xf]
        %v3550 = vld [vmem:[%s4] sm:$0x1]
        %v3552 = vlaneseq
        %v3553 = vshrl.u32 %v3552, 7
        %v3554 = vsub.s32 0, %v3553
        %v3555 = vrot.slane %v3550, %v3554
        %v3566 = vunpack.c.l.b16 %v3541
        %v3567 = vunpack.c.l.b16 %v3542
        %v3568 = vunpack.c.l.b16 %v3543
        %v3569 = vunpack.c.l.b16 %v3544
        %v3570 = vunpack.c.l.b16 %v3545
        %v3571 = vunpack.c.l.b16 %v3546
        %v3572 = vunpack.c.l.b16 %v3547
        %v3573 = vunpack.c.l.b16 %v3548
        %v3574 = vunpack.c.l.b16 %v3549
        %v3575 = vpack.c.b16 %v3567, %v3566
        %v3576 = vpack.c.b16 %v3569, %v3568
        %v3577 = vpack.c.b16 %v3571, %v3570
        %v3578 = vpack.c.b16 %v3573, %v3572
        %v3579 = vpack.c.b16 %v3574, %v3574
        %vm3584 = vcmask 588800
        %v3586 = vsel %vm3584, %v3537, 0
        %v3589 = vsel %vm3584, %v3538, 0
        %v3592 = vsel %vm3584, %v3539, 0
        %v3595 = vsel %vm3584, %v3540, 0
        %vm3597 = vcmask 1043456
        %v3599 = vsel %vm3597, %v3579, 0
        %3601 = vmatprep.subr.bf16.mxu0 0
        %3602 = vmatpush1.bf16.msra.mxu0 %v3575
        %3603 = vmatprep.subr.bf16.mxu0 0
        %3604 = vmatpush1.bf16.msra.mxu0 %v3576
        %3605 = vmatprep.subr.bf16.mxu0 0
        %3606 = vmatpush1.bf16.msra.mxu0 %v3577
        %3607 = vmatprep.subr.bf16.mxu0 0
        %3608 = vmatpush1.bf16.msra.mxu0 %v3578
        %3609 = vmatprep.subr.bf16.mxu0 0
        %3610 = vmatpush1.bf16.msra.mxu0 %v3599
        %3611 = vmatprep.subr.bf16.mxu0 0
        %3612 = vmatpush1.bf16.msra.mxu0 0
        %3613 = vmatprep.subr.bf16.mxu0 0
        %3614 = vmatpush1.bf16.msra.mxu0 0
        %3615 = vmatprep.subr.bf16.mxu0 0
        %3616 = vmatpush1.bf16.msra.mxu0 0
        %3617 = vmatprep.subr.bf16.mxu0 0
        %3618 = vmatpush1.bf16.msra.mxu0 0
        %3619 = vmatprep.subr.bf16.mxu0 0
        %3620 = vmatpush1.bf16.msra.mxu0 0
        %3621 = vmatprep.subr.bf16.mxu0 0
        %3622 = vmatpush1.bf16.msra.mxu0 0
        %3623 = vmatprep.subr.bf16.mxu0 0
        %3624 = vmatpush1.bf16.msra.mxu0 0
        %3625 = vmatprep.subr.bf16.mxu0 0
        %3626 = vmatpush1.bf16.msra.mxu0 0
        %3627 = vmatprep.subr.bf16.mxu0 0
        %3628 = vmatpush1.bf16.msra.mxu0 0
        %3629 = vmatprep.subr.bf16.mxu0 0
        %3630 = vmatpush1.bf16.msra.mxu0 0
        %3631 = vmatprep.subr.bf16.mxu0 0
        %3632 = vmatpush1.bf16.msra.mxu0 0
        %3633 = vmatprep.mubr.bf16.mxu0 0
        %3634 = vmatmul.mubr.bf16.gmra.mrb[0].mxu0 %v3586
        %v3635 = vpop.f32.mrb[0].mxu0
        %v3636 = vadd.f32 %v3555, %v3635
        %v3637 = vpop.f32.mrb[0].mxu0
        %v3638 = vpop.f32.mrb[0].mxu0
        %v3639 = vadd.f32 %v3555, %v3638
        %v3640 = vpop.f32.mrb[0].mxu0
        %3641 = vmatprep.mubr.bf16.mxu0 0
        %3642 = vmatmul.mubr.bf16.gmra.mrb[0].mxu0 %v3589
        %v3643 = vpop.f32.mrb[0].mxu0
        %v3644 = vadd.f32 %v3555, %v3643
        %v3645 = vpop.f32.mrb[0].mxu0
        %v3646 = vpop.f32.mrb[0].mxu0
        %v3647 = vadd.f32 %v3555, %v3646
        %v3648 = vpop.f32.mrb[0].mxu0
        %3649 = vmatprep.mubr.bf16.mxu0 0
        %3650 = vmatmul.mubr.bf16.gmra.mrb[0].mxu0 %v3592
        %v3651 = vpop.f32.mrb[0].mxu0
        %v3652 = vadd.f32 %v3555, %v3651
        %v3653 = vpop.f32.mrb[0].mxu0
        %v3654 = vpop.f32.mrb[0].mxu0
        %v3655 = vadd.f32 %v3555, %v3654
        %v3656 = vpop.f32.mrb[0].mxu0
        %3657 = vmatprep.mubr.bf16.mxu0 0
        %3658 = vmatmul.mubr.bf16.gmra.mrb[0].mxu0 %v3595
        %v3659 = vpop.f32.mrb[0].mxu0
        %v3660 = vadd.f32 %v3555, %v3659
        %v3661 = vpop.f32.mrb[0].mxu0
        %v3662 = vpop.f32.mrb[0].mxu0
        %v3663 = vadd.f32 %v3555, %v3662
        %v3664 = vpop.f32.mrb[0].mxu0
        %3665 = vdwg.mxu0
        %v3666 = vmax.f32 %v3636, 0.0
        %v3667 = vmax.f32 %v3639, 0.0
        %v3668 = vmax.f32 %v3644, 0.0
        %v3669 = vmax.f32 %v3647, 0.0
        %v3670 = vmax.f32 %v3652, 0.0
        %v3671 = vmax.f32 %v3655, 0.0
        %v3672 = vmax.f32 %v3660, 0.0
        %v3673 = vmax.f32 %v3663, 0.0
        %vm3674 = vcmask 130048
        %3675 = vst.msk [vmem:[#allocation2] sm:$0xff] %vm3674, 0.0
        %vm3676 = vcmask 123904
        %3677 = vst.msk [vmem:[#allocation2 + $0x8] sm:$0x3] %vm3676, 0.0
        %3678 = vst.msk [vmem:[%s2738] sm:$0xff] %vm3674, 0.0
        %3679 = vst.msk [vmem:[%s2738 + $0x8] sm:$0x3] %vm3676, 0.0
        %vm3680 = vcmask 122880
        %3681 = vst.msk [vmem:[%s372] sm:$0x1] %vm3680, 0.0
        %3682 = vst.msk [vmem:[%s372 + $0x18] sm:$0x1] %vm3680, 0.0
        %3683 = vst.msk [vmem:[%s372 + $0x30] sm:$0x1] %vm3680, 0.0
        %3684 = vst.msk [vmem:[%s372 + $0x48] sm:$0x1] %vm3680, 0.0
        %3685 = vst.msk [vmem:[%s372 + $0x60] sm:$0x1] %vm3680, 0.0
        %3686 = vst.msk [vmem:[%s372 + $0x78] sm:$0x1] %vm3680, 0.0
        %3687 = vst.msk [vmem:[%s372 + $0x90] sm:$0x1] %vm3680, 0.0
        %3688 = vst.msk [vmem:[%s372 + $0xa8] sm:$0x1] %vm3680, 0.0
        %3689 = vst.msk [vmem:[%s372 + $0x9] sm:$0x1] %vm3680, 0.0
        %3690 = vst.msk [vmem:[%s372 + $0x21] sm:$0x1] %vm3680, 0.0
        %3691 = vst.msk [vmem:[%s372 + $0x39] sm:$0x1] %vm3680, 0.0
        %3692 = vst.msk [vmem:[%s372 + $0x51] sm:$0x1] %vm3680, 0.0
        %3693 = vst.msk [vmem:[%s372 + $0x69] sm:$0x1] %vm3680, 0.0
        %3694 = vst.msk [vmem:[%s372 + $0x81] sm:$0x1] %vm3680, 0.0
        %3695 = vst.msk [vmem:[%s372 + $0x99] sm:$0x1] %vm3680, 0.0
        %3696 = vst.msk [vmem:[%s372 + $0xb1] sm:$0x1] %vm3680, 0.0
        %3697 = vst.msk [vmem:[%s372 + $0x1] sm:$0xff] %vm3674, %v3666
        %3698 = vst.msk [vmem:[%s372 + $0x19] sm:$0xff] %vm3674, %v3667
        %3699 = vst.msk [vmem:[%s372 + $0x31] sm:$0xff] %vm3674, %v3668
        %3700 = vst.msk [vmem:[%s372 + $0x49] sm:$0xff] %vm3674, %v3669
        %3701 = vst.msk [vmem:[%s372 + $0x61] sm:$0xff] %vm3674, %v3670
        %3702 = vst.msk [vmem:[%s372 + $0x79] sm:$0xff] %vm3674, %v3671
        %3703 = vst.msk [vmem:[%s372 + $0x91] sm:$0xff] %vm3674, %v3672
        %3704 = vst.msk [vmem:[%s372 + $0xa9] sm:$0xff] %vm3674, %v3673
        %v3705 = vld [vmem:[#allocation2] sm:$0xff]
        %v3706 = vld [vmem:[#allocation2 + $0x8] sm:$0x3]
        %v3707 = vld [vmem:[#allocation2 + $0x18] sm:$0xff]
        %v3708 = vld [vmem:[#allocation2 + $0x20] sm:$0x3]
        %v3709 = vld [vmem:[#allocation2 + $0x30] sm:$0xff]
        %v3710 = vld [vmem:[#allocation2 + $0x38] sm:$0x3]
        %v3711 = vld [vmem:[#allocation2 + $0x48] sm:$0xff]
        %v3712 = vld [vmem:[#allocation2 + $0x50] sm:$0x3]
        %v3713 = vld [vmem:[#allocation2 + $0x60] sm:$0xff]
        %v3714 = vld [vmem:[#allocation2 + $0x68] sm:$0x3]
        %v3715 = vld [vmem:[#allocation2 + $0x78] sm:$0xff]
        %v3716 = vld [vmem:[#allocation2 + $0x80] sm:$0x3]
        %v3717 = vld [vmem:[#allocation2 + $0x90] sm:$0xff]
        %v3718 = vld [vmem:[#allocation2 + $0x98] sm:$0x3]
        %v3719 = vld [vmem:[#allocation2 + $0xa8] sm:$0xff]
        %v3720 = vld [vmem:[#allocation2 + $0xb0] sm:$0x3]
        %v3721 = vld [vmem:[#allocation2 + $0xc0] sm:$0xff]
        %v3722 = vld [vmem:[#allocation2 + $0xc8] sm:$0x3]
        %v3723 = vld [vmem:[#allocation2 + $0xd8] sm:$0xff]
        %v3724 = vld [vmem:[#allocation2 + $0xe0] sm:$0x3]
        %3725 = vst.msk [vmem:[#allocation3] sm:$0xff] %vm3674, %v3705
        %3726 = vst.msk [vmem:[#allocation3 + $0x10] sm:$0xff] %vm3674, %v3707
        %3727 = vst.msk [vmem:[#allocation3 + $0x20] sm:$0xff] %vm3674, %v3709
        %3728 = vst.msk [vmem:[#allocation3 + $0x30] sm:$0xff] %vm3674, %v3711
        %3729 = vst.msk [vmem:[#allocation3 + $0x40] sm:$0xff] %vm3674, %v3713
        %3730 = vst.msk [vmem:[#allocation3 + $0x50] sm:$0xff] %vm3674, %v3715
        %3731 = vst.msk [vmem:[#allocation3 + $0x60] sm:$0xff] %vm3674, %v3717
        %3732 = vst.msk [vmem:[#allocation3 + $0x70] sm:$0xff] %vm3674, %v3719
        %v3749 = vrot.slane %v3705, 1
        %v3750 = vrot.slane %v3706, 1
        %v3751 = vsel %vm572, %v3749, %v3750
        %v3752 = vrot.slane %v3707, 1
        %v3753 = vrot.slane %v3708, 1
        %v3754 = vsel %vm572, %v3752, %v3753
        %v3755 = vrot.slane %v3709, 1
        %v3756 = vrot.slane %v3710, 1
        %v3757 = vsel %vm572, %v3755, %v3756
        %v3758 = vrot.slane %v3711, 1
        %v3759 = vrot.slane %v3712, 1
        %v3760 = vsel %vm572, %v3758, %v3759
        %v3761 = vrot.slane %v3713, 1
        %v3762 = vrot.slane %v3714, 1
        %v3763 = vsel %vm572, %v3761, %v3762
        %v3764 = vrot.slane %v3715, 1
        %v3765 = vrot.slane %v3716, 1
        %v3766 = vsel %vm572, %v3764, %v3765
        %v3767 = vrot.slane %v3717, 1
        %v3768 = vrot.slane %v3718, 1
        %v3769 = vsel %vm572, %v3767, %v3768
        %v3770 = vrot.slane %v3719, 1
        %v3771 = vrot.slane %v3720, 1
        %v3772 = vsel %vm572, %v3770, %v3771
        %3773 = vrot.lane.b32.xlu0 %v3751, 16
        %v3774 = vpop.permute.xlu0 %3773
        %3775 = vrot.lane.b32.xlu0 %v3754, 16
        %v3776 = vpop.permute.xlu0 %3775
        %3777 = vrot.lane.b32.xlu0 %v3757, 16
        %v3778 = vpop.permute.xlu0 %3777
        %3779 = vrot.lane.b32.xlu0 %v3760, 16
        %v3780 = vpop.permute.xlu0 %3779
        %3781 = vrot.lane.b32.xlu0 %v3763, 16
        %v3782 = vpop.permute.xlu0 %3781
        %3783 = vrot.lane.b32.xlu0 %v3766, 16
        %v3784 = vpop.permute.xlu0 %3783
        %3785 = vrot.lane.b32.xlu0 %v3769, 16
        %v3786 = vpop.permute.xlu0 %3785
        %3787 = vrot.lane.b32.xlu0 %v3772, 16
        %v3788 = vpop.permute.xlu0 %3787
        %vm3797 = vcmask 261248
        %3798 = vst.msk [vmem:[#allocation3] sm:$0xff] %vm3797, %v3774
        %3799 = vst.msk [vmem:[#allocation3 + $0x10] sm:$0xff] %vm3797, %v3776
        %3800 = vst.msk [vmem:[#allocation3 + $0x20] sm:$0xff] %vm3797, %v3778
        %3801 = vst.msk [vmem:[#allocation3 + $0x30] sm:$0xff] %vm3797, %v3780
        %3802 = vst.msk [vmem:[#allocation3 + $0x40] sm:$0xff] %vm3797, %v3782
        %3803 = vst.msk [vmem:[#allocation3 + $0x50] sm:$0xff] %vm3797, %v3784
        %3804 = vst.msk [vmem:[#allocation3 + $0x60] sm:$0xff] %vm3797, %v3786
        %3805 = vst.msk [vmem:[#allocation3 + $0x70] sm:$0xff] %vm3797, %v3788
        %v3806 = vrot.slane %v3705, 2
        %v3807 = vrot.slane %v3706, 2
        %v3808 = vsel %vm782, %v3806, %v3807
        %v3809 = vrot.slane %v3707, 2
        %v3810 = vrot.slane %v3708, 2
        %v3811 = vsel %vm782, %v3809, %v3810
        %v3812 = vrot.slane %v3709, 2
        %v3813 = vrot.slane %v3710, 2
        %v3814 = vsel %vm782, %v3812, %v3813
        %v3815 = vrot.slane %v3711, 2
        %v3816 = vrot.slane %v3712, 2
        %v3817 = vsel %vm782, %v3815, %v3816
        %v3818 = vrot.slane %v3713, 2
        %v3819 = vrot.slane %v3714, 2
        %v3820 = vsel %vm782, %v3818, %v3819
        %v3821 = vrot.slane %v3715, 2
        %v3822 = vrot.slane %v3716, 2
        %v3823 = vsel %vm782, %v3821, %v3822
        %v3824 = vrot.slane %v3717, 2
        %v3825 = vrot.slane %v3718, 2
        %v3826 = vsel %vm782, %v3824, %v3825
        %v3827 = vrot.slane %v3719, 2
        %v3828 = vrot.slane %v3720, 2
        %v3829 = vsel %vm782, %v3827, %v3828
        %3830 = vrot.lane.b32.xlu0 %v3808, 32
        %v3831 = vpop.permute.xlu0 %3830
        %3832 = vrot.lane.b32.xlu0 %v3811, 32
        %v3833 = vpop.permute.xlu0 %3832
        %3834 = vrot.lane.b32.xlu0 %v3814, 32
        %v3835 = vpop.permute.xlu0 %3834
        %3836 = vrot.lane.b32.xlu0 %v3817, 32
        %v3837 = vpop.permute.xlu0 %3836
        %3838 = vrot.lane.b32.xlu0 %v3820, 32
        %v3839 = vpop.permute.xlu0 %3838
        %3840 = vrot.lane.b32.xlu0 %v3823, 32
        %v3841 = vpop.permute.xlu0 %3840
        %3842 = vrot.lane.b32.xlu0 %v3826, 32
        %v3843 = vpop.permute.xlu0 %3842
        %3844 = vrot.lane.b32.xlu0 %v3829, 32
        %v3845 = vpop.permute.xlu0 %3844
        %vm3854 = vcmask 392448
        %3855 = vst.msk [vmem:[#allocation3] sm:$0xff] %vm3854, %v3831
        %3856 = vst.msk [vmem:[#allocation3 + $0x10] sm:$0xff] %vm3854, %v3833
        %3857 = vst.msk [vmem:[#allocation3 + $0x20] sm:$0xff] %vm3854, %v3835
        %3858 = vst.msk [vmem:[#allocation3 + $0x30] sm:$0xff] %vm3854, %v3837
        %3859 = vst.msk [vmem:[#allocation3 + $0x40] sm:$0xff] %vm3854, %v3839
        %3860 = vst.msk [vmem:[#allocation3 + $0x50] sm:$0xff] %vm3854, %v3841
        %3861 = vst.msk [vmem:[#allocation3 + $0x60] sm:$0xff] %vm3854, %v3843
        %3862 = vst.msk [vmem:[#allocation3 + $0x70] sm:$0xff] %vm3854, %v3845
        %3864 = vrot.lane.b32.xlu0 %v3707, 48
        %v3865 = vpop.permute.xlu0 %3864
        %3866 = vrot.lane.b32.xlu0 %v3709, 48
        %v3867 = vpop.permute.xlu0 %3866
        %3868 = vrot.lane.b32.xlu0 %v3711, 48
        %v3869 = vpop.permute.xlu0 %3868
        %3870 = vrot.lane.b32.xlu0 %v3713, 48
        %v3871 = vpop.permute.xlu0 %3870
        %3872 = vrot.lane.b32.xlu0 %v3715, 48
        %v3873 = vpop.permute.xlu0 %3872
        %3874 = vrot.lane.b32.xlu0 %v3717, 48
        %v3875 = vpop.permute.xlu0 %3874
        %3876 = vrot.lane.b32.xlu0 %v3719, 48
        %v3877 = vpop.permute.xlu0 %3876
        %3878 = vrot.lane.b32.xlu0 %v3721, 48
        %v3879 = vpop.permute.xlu0 %3878
        %vm3888 = vcmask 523648
        %3889 = vst.msk [vmem:[#allocation3] sm:$0xff] %vm3888, %v3865
        %3890 = vst.msk [vmem:[#allocation3 + $0x10] sm:$0xff] %vm3888, %v3867
        %3891 = vst.msk [vmem:[#allocation3 + $0x20] sm:$0xff] %vm3888, %v3869
        %3892 = vst.msk [vmem:[#allocation3 + $0x30] sm:$0xff] %vm3888, %v3871
        %3893 = vst.msk [vmem:[#allocation3 + $0x40] sm:$0xff] %vm3888, %v3873
        %3894 = vst.msk [vmem:[#allocation3 + $0x50] sm:$0xff] %vm3888, %v3875
        %3895 = vst.msk [vmem:[#allocation3 + $0x60] sm:$0xff] %vm3888, %v3877
        %3896 = vst.msk [vmem:[#allocation3 + $0x70] sm:$0xff] %vm3888, %v3879
        %v3898 = vrot.slane %v3721, 1
        %v3899 = vrot.slane %v3722, 1
        %v3900 = vsel %vm572, %v3898, %v3899
        %3901 = vrot.lane.b32.xlu0 %v3754, 64
        %v3902 = vpop.permute.xlu0 %3901
        %3903 = vrot.lane.b32.xlu0 %v3757, 64
        %v3904 = vpop.permute.xlu0 %3903
        %3905 = vrot.lane.b32.xlu0 %v3760, 64
        %v3906 = vpop.permute.xlu0 %3905
        %3907 = vrot.lane.b32.xlu0 %v3763, 64
        %v3908 = vpop.permute.xlu0 %3907
        %3909 = vrot.lane.b32.xlu0 %v3766, 64
        %v3910 = vpop.permute.xlu0 %3909
        %3911 = vrot.lane.b32.xlu0 %v3769, 64
        %v3912 = vpop.permute.xlu0 %3911
        %3913 = vrot.lane.b32.xlu0 %v3772, 64
        %v3914 = vpop.permute.xlu0 %3913
        %3915 = vrot.lane.b32.xlu0 %v3900, 64
        %v3916 = vpop.permute.xlu0 %3915
        %vm3925 = vcmask 654848
        %3926 = vst.msk [vmem:[#allocation3] sm:$0xff] %vm3925, %v3902
        %3927 = vst.msk [vmem:[#allocation3 + $0x10] sm:$0xff] %vm3925, %v3904
        %3928 = vst.msk [vmem:[#allocation3 + $0x20] sm:$0xff] %vm3925, %v3906
        %3929 = vst.msk [vmem:[#allocation3 + $0x30] sm:$0xff] %vm3925, %v3908
        %3930 = vst.msk [vmem:[#allocation3 + $0x40] sm:$0xff] %vm3925, %v3910
        %3931 = vst.msk [vmem:[#allocation3 + $0x50] sm:$0xff] %vm3925, %v3912
        %3932 = vst.msk [vmem:[#allocation3 + $0x60] sm:$0xff] %vm3925, %v3914
        %3933 = vst.msk [vmem:[#allocation3 + $0x70] sm:$0xff] %vm3925, %v3916
        %v3934 = vrot.slane %v3721, 2
        %v3935 = vrot.slane %v3722, 2
        %v3936 = vsel %vm782, %v3934, %v3935
        %3937 = vrot.lane.b32.xlu0 %v3811, 80
        %v3938 = vpop.permute.xlu0 %3937
        %3939 = vrot.lane.b32.xlu0 %v3814, 80
        %v3940 = vpop.permute.xlu0 %3939
        %3941 = vrot.lane.b32.xlu0 %v3817, 80
        %v3942 = vpop.permute.xlu0 %3941
        %3943 = vrot.lane.b32.xlu0 %v3820, 80
        %v3944 = vpop.permute.xlu0 %3943
        %3945 = vrot.lane.b32.xlu0 %v3823, 80
        %v3946 = vpop.permute.xlu0 %3945
        %3947 = vrot.lane.b32.xlu0 %v3826, 80
        %v3948 = vpop.permute.xlu0 %3947
        %3949 = vrot.lane.b32.xlu0 %v3829, 80
        %v3950 = vpop.permute.xlu0 %3949
        %3951 = vrot.lane.b32.xlu0 %v3936, 80
        %v3952 = vpop.permute.xlu0 %3951
        %vm3961 = vcmask 786048
        %3962 = vst.msk [vmem:[#allocation3] sm:$0xff] %vm3961, %v3938
        %3963 = vst.msk [vmem:[#allocation3 + $0x10] sm:$0xff] %vm3961, %v3940
        %3964 = vst.msk [vmem:[#allocation3 + $0x20] sm:$0xff] %vm3961, %v3942
        %3965 = vst.msk [vmem:[#allocation3 + $0x30] sm:$0xff] %vm3961, %v3944
        %3966 = vst.msk [vmem:[#allocation3 + $0x40] sm:$0xff] %vm3961, %v3946
        %3967 = vst.msk [vmem:[#allocation3 + $0x50] sm:$0xff] %vm3961, %v3948
        %3968 = vst.msk [vmem:[#allocation3 + $0x60] sm:$0xff] %vm3961, %v3950
        %3969 = vst.msk [vmem:[#allocation3 + $0x70] sm:$0xff] %vm3961, %v3952
        %3971 = vrot.lane.b32.xlu0 %v3709, 96
        %v3972 = vpop.permute.xlu0 %3971
        %3973 = vrot.lane.b32.xlu0 %v3711, 96
        %v3974 = vpop.permute.xlu0 %3973
        %3975 = vrot.lane.b32.xlu0 %v3713, 96
        %v3976 = vpop.permute.xlu0 %3975
        %3977 = vrot.lane.b32.xlu0 %v3715, 96
        %v3978 = vpop.permute.xlu0 %3977
        %3979 = vrot.lane.b32.xlu0 %v3717, 96
        %v3980 = vpop.permute.xlu0 %3979
        %3981 = vrot.lane.b32.xlu0 %v3719, 96
        %v3982 = vpop.permute.xlu0 %3981
        %3983 = vrot.lane.b32.xlu0 %v3721, 96
        %v3984 = vpop.permute.xlu0 %3983
        %3985 = vrot.lane.b32.xlu0 %v3723, 96
        %v3986 = vpop.permute.xlu0 %3985
        %vm3995 = vcmask 917248
        %3996 = vst.msk [vmem:[#allocation3] sm:$0xff] %vm3995, %v3972
        %3997 = vst.msk [vmem:[#allocation3 + $0x10] sm:$0xff] %vm3995, %v3974
        %3998 = vst.msk [vmem:[#allocation3 + $0x20] sm:$0xff] %vm3995, %v3976
        %3999 = vst.msk [vmem:[#allocation3 + $0x30] sm:$0xff] %vm3995, %v3978
        %4000 = vst.msk [vmem:[#allocation3 + $0x40] sm:$0xff] %vm3995, %v3980
        %4001 = vst.msk [vmem:[#allocation3 + $0x50] sm:$0xff] %vm3995, %v3982
        %4002 = vst.msk [vmem:[#allocation3 + $0x60] sm:$0xff] %vm3995, %v3984
        %4003 = vst.msk [vmem:[#allocation3 + $0x70] sm:$0xff] %vm3995, %v3986
        %v4005 = vrot.slane %v3723, 1
        %v4006 = vrot.slane %v3724, 1
        %v4007 = vsel %vm572, %v4005, %v4006
        %4008 = vrot.lane.b32.xlu0 %v3757, 112
        %v4009 = vpop.permute.xlu0 %4008
        %4010 = vrot.lane.b32.xlu0 %v3760, 112
        %v4011 = vpop.permute.xlu0 %4010
        %4012 = vrot.lane.b32.xlu0 %v3763, 112
        %v4013 = vpop.permute.xlu0 %4012
        %4014 = vrot.lane.b32.xlu0 %v3766, 112
        %v4015 = vpop.permute.xlu0 %4014
        %4016 = vrot.lane.b32.xlu0 %v3769, 112
        %v4017 = vpop.permute.xlu0 %4016
        %4018 = vrot.lane.b32.xlu0 %v3772, 112
        %v4019 = vpop.permute.xlu0 %4018
        %4020 = vrot.lane.b32.xlu0 %v3900, 112
        %v4021 = vpop.permute.xlu0 %4020
        %4022 = vrot.lane.b32.xlu0 %v4007, 112
        %v4023 = vpop.permute.xlu0 %4022
        %vm4032 = vcmask 1048448
        %4033 = vst.msk [vmem:[#allocation3] sm:$0xff] %vm4032, %v4009
        %4034 = vst.msk [vmem:[#allocation3 + $0x10] sm:$0xff] %vm4032, %v4011
        %4035 = vst.msk [vmem:[#allocation3 + $0x20] sm:$0xff] %vm4032, %v4013
        %4036 = vst.msk [vmem:[#allocation3 + $0x30] sm:$0xff] %vm4032, %v4015
        %4037 = vst.msk [vmem:[#allocation3 + $0x40] sm:$0xff] %vm4032, %v4017
        %4038 = vst.msk [vmem:[#allocation3 + $0x50] sm:$0xff] %vm4032, %v4019
        %4039 = vst.msk [vmem:[#allocation3 + $0x60] sm:$0xff] %vm4032, %v4021
        %4040 = vst.msk [vmem:[#allocation3 + $0x70] sm:$0xff] %vm4032, %v4023
        %v4041 = vrot.slane %v3723, 2
        %v4042 = vrot.slane %v3724, 2
        %v4043 = vsel %vm782, %v4041, %v4042
        %4052 = vst.msk [vmem:[#allocation3 + $0x8] sm:$0xff] %vm3674, %v3814
        %4053 = vst.msk [vmem:[#allocation3 + $0x18] sm:$0xff] %vm3674, %v3817
        %4054 = vst.msk [vmem:[#allocation3 + $0x28] sm:$0xff] %vm3674, %v3820
        %4055 = vst.msk [vmem:[#allocation3 + $0x38] sm:$0xff] %vm3674, %v3823
        %4056 = vst.msk [vmem:[#allocation3 + $0x48] sm:$0xff] %vm3674, %v3826
        %4057 = vst.msk [vmem:[#allocation3 + $0x58] sm:$0xff] %vm3674, %v3829
        %4058 = vst.msk [vmem:[#allocation3 + $0x68] sm:$0xff] %vm3674, %v3936
        %4059 = vst.msk [vmem:[#allocation3 + $0x78] sm:$0xff] %vm3674, %v4043
        %v4060 = vld [vmem:[#allocation3] sm:$0xff]
        %v4061 = vld [vmem:[#allocation3 + $0x8] sm:$0xff]
        %v4062 = vld [vmem:[#allocation3 + $0x10] sm:$0xff]
        %v4063 = vld [vmem:[#allocation3 + $0x18] sm:$0xff]
        %v4064 = vld [vmem:[#allocation3 + $0x20] sm:$0xff]
        %v4065 = vld [vmem:[#allocation3 + $0x28] sm:$0xff]
        %v4066 = vld [vmem:[#allocation3 + $0x30] sm:$0xff]
        %v4067 = vld [vmem:[#allocation3 + $0x38] sm:$0xff]
        %v4068 = vld [vmem:[#allocation3 + $0x40] sm:$0xff]
        %v4069 = vld [vmem:[#allocation3 + $0x48] sm:$0xff]
        %v4070 = vld [vmem:[#allocation3 + $0x50] sm:$0xff]
        %v4071 = vld [vmem:[#allocation3 + $0x58] sm:$0xff]
        %v4072 = vld [vmem:[#allocation3 + $0x60] sm:$0xff]
        %v4073 = vld [vmem:[#allocation3 + $0x68] sm:$0xff]
        %v4074 = vld [vmem:[#allocation3 + $0x70] sm:$0xff]
        %v4075 = vld [vmem:[#allocation3 + $0x78] sm:$0xff]
        %v4076 = vpack.c.bf16 %v4062, %v4060
        %v4077 = vpack.c.bf16 %v4063, %v4061
        %v4078 = vpack.c.bf16 %v4066, %v4064
        %v4079 = vpack.c.bf16 %v4067, %v4065
        %v4080 = vpack.c.bf16 %v4070, %v4068
        %v4081 = vpack.c.bf16 %v4071, %v4069
        %v4082 = vpack.c.bf16 %v4074, %v4072
        %v4083 = vpack.c.bf16 %v4075, %v4073
        %v4084 = vld [vmem:[%s5] sm:$0xf]
        %v4085 = vld [vmem:[%s5 + $0x4] sm:$0xf]
        %v4086 = vld [vmem:[%s5 + $0x8] sm:$0xf]
        %v4087 = vld [vmem:[%s5 + $0xc] sm:$0xf]
        %v4088 = vld [vmem:[%s5 + $0x10] sm:$0xf]
        %v4089 = vld [vmem:[%s5 + $0x14] sm:$0xf]
        %v4090 = vld [vmem:[%s5 + $0x18] sm:$0xf]
        %v4091 = vld [vmem:[%s5 + $0x1c] sm:$0xf]
        %v4092 = vld [vmem:[%s5 + $0x20] sm:$0xf]
        %v4093 = vld [vmem:[%s5 + $0x24] sm:$0xf]
        %v4094 = vld [vmem:[%s5 + $0x28] sm:$0xf]
        %v4095 = vld [vmem:[%s5 + $0x2c] sm:$0xf]
        %v4096 = vld [vmem:[%s5 + $0x30] sm:$0xf]
        %v4097 = vld [vmem:[%s5 + $0x34] sm:$0xf]
        %v4098 = vld [vmem:[%s5 + $0x38] sm:$0xf]
        %v4099 = vld [vmem:[%s5 + $0x3c] sm:$0xf]
        %v4100 = vld [vmem:[%s5 + $0x40] sm:$0xf]
        %v4101 = vld [vmem:[%s5 + $0x44] sm:$0xf]
        %v4102 = vld [vmem:[%s6] sm:$0x1]
        %v4104 = vlaneseq
        %v4105 = vshrl.u32 %v4104, 7
        %v4106 = vsub.s32 0, %v4105
        %v4107 = vrot.slane %v4102, %v4106
        %v4127 = vunpack.c.l.b16 %v4084
        %v4128 = vunpack.c.l.b16 %v4085
        %v4129 = vunpack.c.l.b16 %v4086
        %v4130 = vunpack.c.l.b16 %v4087
        %v4131 = vunpack.c.l.b16 %v4088
        %v4132 = vunpack.c.l.b16 %v4089
        %v4133 = vunpack.c.l.b16 %v4090
        %v4134 = vunpack.c.l.b16 %v4091
        %v4135 = vunpack.c.l.b16 %v4092
        %v4136 = vunpack.c.l.b16 %v4093
        %v4137 = vunpack.c.l.b16 %v4094
        %v4138 = vunpack.c.l.b16 %v4095
        %v4139 = vunpack.c.l.b16 %v4096
        %v4140 = vunpack.c.l.b16 %v4097
        %v4141 = vunpack.c.l.b16 %v4098
        %v4142 = vunpack.c.l.b16 %v4099
        %v4143 = vunpack.c.l.b16 %v4100
        %v4144 = vunpack.c.l.b16 %v4101
        %v4145 = vpack.c.b16 %v4128, %v4127
        %v4146 = vpack.c.b16 %v4130, %v4129
        %v4147 = vpack.c.b16 %v4132, %v4131
        %v4148 = vpack.c.b16 %v4134, %v4133
        %v4149 = vpack.c.b16 %v4136, %v4135
        %v4150 = vpack.c.b16 %v4138, %v4137
        %v4151 = vpack.c.b16 %v4140, %v4139
        %v4152 = vpack.c.b16 %v4142, %v4141
        %v4153 = vpack.c.b16 %v4144, %v4143
        %v4164 = vsel %vm3674, %v4077, 0
        %v4167 = vsel %vm3674, %v4079, 0
        %v4170 = vsel %vm3674, %v4081, 0
        %v4173 = vsel %vm3674, %v4083, 0
        %4175 = vmatprep.subr.bf16.mxu0 0
        %4176 = vmatpush1.bf16.msra.mxu0 %v4145
        %4177 = vmatprep.subr.bf16.mxu0 0
        %4178 = vmatpush1.bf16.msra.mxu0 %v4146
        %4179 = vmatprep.subr.bf16.mxu0 0
        %4180 = vmatpush1.bf16.msra.mxu0 %v4147
        %4181 = vmatprep.subr.bf16.mxu0 0
        %4182 = vmatpush1.bf16.msra.mxu0 %v4148
        %4183 = vmatprep.subr.bf16.mxu0 0
        %4184 = vmatpush1.bf16.msra.mxu0 %v4149
        %4185 = vmatprep.subr.bf16.mxu0 0
        %4186 = vmatpush1.bf16.msra.mxu0 %v4150
        %4187 = vmatprep.subr.bf16.mxu0 0
        %4188 = vmatpush1.bf16.msra.mxu0 %v4151
        %4189 = vmatprep.subr.bf16.mxu0 0
        %4190 = vmatpush1.bf16.msra.mxu0 %v4152
        %4191 = vmatprep.subr.bf16.mxu0 0
        %4192 = vmatpush1.bf16.msra.mxu0 %v4153
        %4193 = vmatprep.subr.bf16.mxu0 0
        %4194 = vmatpush1.bf16.msra.mxu0 0
        %4195 = vmatprep.subr.bf16.mxu0 0
        %4196 = vmatpush1.bf16.msra.mxu0 0
        %4197 = vmatprep.subr.bf16.mxu0 0
        %4198 = vmatpush1.bf16.msra.mxu0 0
        %4199 = vmatprep.subr.bf16.mxu0 0
        %4200 = vmatpush1.bf16.msra.mxu0 0
        %4201 = vmatprep.subr.bf16.mxu0 0
        %4202 = vmatpush1.bf16.msra.mxu0 0
        %4203 = vmatprep.subr.bf16.mxu0 0
        %4204 = vmatpush1.bf16.msra.mxu0 0
        %4205 = vmatprep.subr.bf16.mxu0 0
        %4206 = vmatpush1.bf16.msra.mxu0 0
        %4207 = vmatprep.mubr.bf16.mxu0 %v4164
        %4208 = vmatmul.mubr.bf16.gmra.mrb[0].mxu0 %v4076
        %v4209 = vpop.f32.mrb[0].mxu0
        %v4210 = vadd.f32 %v4107, %v4209
        %v4211 = vpop.f32.mrb[0].mxu0
        %v4212 = vpop.f32.mrb[0].mxu0
        %v4213 = vadd.f32 %v4107, %v4212
        %v4214 = vpop.f32.mrb[0].mxu0
        %4215 = vmatprep.mubr.bf16.mxu0 %v4167
        %4216 = vmatmul.mubr.bf16.gmra.mrb[0].mxu0 %v4078
        %v4217 = vpop.f32.mrb[0].mxu0
        %v4218 = vadd.f32 %v4107, %v4217
        %v4219 = vpop.f32.mrb[0].mxu0
        %v4220 = vpop.f32.mrb[0].mxu0
        %v4221 = vadd.f32 %v4107, %v4220
        %v4222 = vpop.f32.mrb[0].mxu0
        %4223 = vmatprep.mubr.bf16.mxu0 %v4170
        %4224 = vmatmul.mubr.bf16.gmra.mrb[0].mxu0 %v4080
        %v4225 = vpop.f32.mrb[0].mxu0
        %v4226 = vadd.f32 %v4107, %v4225
        %v4227 = vpop.f32.mrb[0].mxu0
        %v4228 = vpop.f32.mrb[0].mxu0
        %v4229 = vadd.f32 %v4107, %v4228
        %v4230 = vpop.f32.mrb[0].mxu0
        %4231 = vmatprep.mubr.bf16.mxu0 %v4173
        %4232 = vmatmul.mubr.bf16.gmra.mrb[0].mxu0 %v4082
        %v4233 = vpop.f32.mrb[0].mxu0
        %v4234 = vadd.f32 %v4107, %v4233
        %v4235 = vpop.f32.mrb[0].mxu0
        %v4236 = vpop.f32.mrb[0].mxu0
        %v4237 = vadd.f32 %v4107, %v4236
        %v4238 = vpop.f32.mrb[0].mxu0
        %4239 = vdwg.mxu0
        %v4240 = vmax.f32 %v4210, 0.0
        %v4241 = vmax.f32 %v4213, 0.0
        %v4242 = vmax.f32 %v4218, 0.0
        %v4243 = vmax.f32 %v4221, 0.0
        %v4244 = vmax.f32 %v4226, 0.0
        %v4245 = vmax.f32 %v4229, 0.0
        %v4246 = vmax.f32 %v4234, 0.0
        %v4247 = vmax.f32 %v4237, 0.0
        %v4248 = vmax.f32 %v4240, %v4241
        %v4249 = vmax.f32 %v4242, %v4243
        %v4250 = vmax.f32 %v4244, %v4245
        %v4251 = vmax.f32 %v4246, %v4247
        %v4256 = vcombine.high %v4248, %v4248
        %v4258 = vunpack.c.l.s4 1983009808
        %v4259 = vunpack.c.0.s8 %v4258
        %v4260 = vlaneseq
        %v4261 = vshrl.u32 %v4260, 7
        %v4262 = vsub.s32 %v4259, %v4261
        %v4263 = vrot.slane %v4248, %v4262
        %v4265 = vunpack.c.l.s4 1983009808
        %v4266 = vunpack.c.0.s8 %v4265
        %v4267 = vlaneseq
        %v4268 = vshrl.u32 %v4267, 7
        %v4269 = vsub.s32 %v4266, %v4268
        %v4270 = vrot.slane %v4256, %v4269
        %v4271 = vcombine.high %v4263, %v4263
        %v4272 = vcombine.high %v4270, %v4270
        %v4273 = vcombine.high %v4249, %v4249
        %v4275 = vunpack.c.l.s4 1983009808
        %v4276 = vunpack.c.0.s8 %v4275
        %v4277 = vlaneseq
        %v4278 = vshrl.u32 %v4277, 7
        %v4279 = vsub.s32 %v4276, %v4278
        %v4280 = vrot.slane %v4249, %v4279
        %v4282 = vunpack.c.l.s4 1983009808
        %v4283 = vunpack.c.0.s8 %v4282
        %v4284 = vlaneseq
        %v4285 = vshrl.u32 %v4284, 7
        %v4286 = vsub.s32 %v4283, %v4285
        %v4287 = vrot.slane %v4273, %v4286
        %v4288 = vcombine.high %v4280, %v4280
        %v4289 = vcombine.high %v4287, %v4287
        %v4290 = vcombine.high %v4250, %v4250
        %v4292 = vunpack.c.l.s4 1983009808
        %v4293 = vunpack.c.0.s8 %v4292
        %v4294 = vlaneseq
        %v4295 = vshrl.u32 %v4294, 7
        %v4296 = vsub.s32 %v4293, %v4295
        %v4297 = vrot.slane %v4250, %v4296
        %v4299 = vunpack.c.l.s4 1983009808
        %v4300 = vunpack.c.0.s8 %v4299
        %v4301 = vlaneseq
        %v4302 = vshrl.u32 %v4301, 7
        %v4303 = vsub.s32 %v4300, %v4302
        %v4304 = vrot.slane %v4290, %v4303
        %v4305 = vcombine.high %v4297, %v4297
        %v4306 = vcombine.high %v4304, %v4304
        %v4307 = vcombine.high %v4251, %v4251
        %v4309 = vunpack.c.l.s4 1983009808
        %v4310 = vunpack.c.0.s8 %v4309
        %v4311 = vlaneseq
        %v4312 = vshrl.u32 %v4311, 7
        %v4313 = vsub.s32 %v4310, %v4312
        %v4314 = vrot.slane %v4251, %v4313
        %v4316 = vunpack.c.l.s4 1983009808
        %v4317 = vunpack.c.0.s8 %v4316
        %v4318 = vlaneseq
        %v4319 = vshrl.u32 %v4318, 7
        %v4320 = vsub.s32 %v4317, %v4319
        %v4321 = vrot.slane %v4307, %v4320
        %v4322 = vcombine.high %v4314, %v4314
        %v4323 = vcombine.high %v4321, %v4321
        %v4340 = vrot.slane %v4263, 7
        %v4341 = vrot.slane %v4340, 2
        %v4342 = vrot.slane %v4271, 7
        %v4343 = vrot.slane %v4342, 2
        %v4344 = vrot.slane %v4270, 7
        %v4345 = vrot.slane %v4344, 2
        %v4346 = vrot.slane %v4272, 7
        %v4347 = vrot.slane %v4346, 2
        %v4348 = vrot.slane %v4280, 7
        %v4349 = vrot.slane %v4348, 2
        %v4350 = vrot.slane %v4288, 7
        %v4351 = vrot.slane %v4350, 2
        %v4352 = vrot.slane %v4287, 7
        %v4353 = vrot.slane %v4352, 2
        %v4354 = vrot.slane %v4289, 7
        %v4355 = vrot.slane %v4354, 2
        %v4356 = vrot.slane %v4297, 7
        %v4357 = vrot.slane %v4356, 2
        %v4358 = vrot.slane %v4305, 7
        %v4359 = vrot.slane %v4358, 2
        %v4360 = vrot.slane %v4304, 7
        %v4361 = vrot.slane %v4360, 2
        %v4362 = vrot.slane %v4306, 7
        %v4363 = vrot.slane %v4362, 2
        %v4364 = vrot.slane %v4314, 7
        %v4365 = vrot.slane %v4364, 2
        %v4366 = vrot.slane %v4322, 7
        %v4367 = vrot.slane %v4366, 2
        %v4368 = vrot.slane %v4321, 7
        %v4369 = vrot.slane %v4368, 2
        %v4370 = vrot.slane %v4323, 7
        %v4371 = vrot.slane %v4370, 2
        %v4388 = vmax.f32 %v4263, %v4341
        %v4389 = vmax.f32 %v4271, %v4343
        %v4390 = vmax.f32 %v4270, %v4345
        %v4391 = vmax.f32 %v4272, %v4347
        %v4392 = vmax.f32 %v4280, %v4349
        %v4393 = vmax.f32 %v4288, %v4351
        %v4394 = vmax.f32 %v4287, %v4353
        %v4395 = vmax.f32 %v4289, %v4355
        %v4396 = vmax.f32 %v4297, %v4357
        %v4397 = vmax.f32 %v4305, %v4359
        %v4398 = vmax.f32 %v4304, %v4361
        %v4399 = vmax.f32 %v4306, %v4363
        %v4400 = vmax.f32 %v4314, %v4365
        %v4401 = vmax.f32 %v4322, %v4367
        %v4402 = vmax.f32 %v4321, %v4369
        %v4403 = vmax.f32 %v4323, %v4371
        %vm4404 = vcmask 128000
        %4405 = vst.msk [vmem:[#allocation2] sm:$0x3f] %vm4404, 0.0
        %s4406 = scalar_lea.vmem [#allocation2], 120
        %4407 = vst.msk [vmem:[%s4406] sm:$0x3f] %vm4404, 0.0
        %4408 = vst.msk [vmem:[%s372] sm:$0x1] %vm3680, 0.0
        %4409 = vst.msk [vmem:[%s372 + $0x18] sm:$0x1] %vm3680, 0.0
        %4410 = vst.msk [vmem:[%s372 + $0x30] sm:$0x1] %vm3680, 0.0
        %4411 = vst.msk [vmem:[%s372 + $0x48] sm:$0x1] %vm3680, 0.0
        %4412 = vst.msk [vmem:[%s372 + $0x5] sm:$0x1] %vm3680, 0.0
        %4413 = vst.msk [vmem:[%s372 + $0x1d] sm:$0x1] %vm3680, 0.0
        %4414 = vst.msk [vmem:[%s372 + $0x35] sm:$0x1] %vm3680, 0.0
        %4415 = vst.msk [vmem:[%s372 + $0x4d] sm:$0x1] %vm3680, 0.0
        %v4432 = vlaneseq
        %v4433 = vshrl.u32 %v4432, 7
        %v4434 = vsub.s32 0, %v4433
        %v4435 = vrot.slane %v4388, %v4434
        %v4436 = vlaneseq
        %v4437 = vshrl.u32 %v4436, 7
        %v4438 = vsub.s32 0, %v4437
        %v4439 = vrot.slane %v4389, %v4438
        %v4440 = vlaneseq
        %v4441 = vshrl.u32 %v4440, 7
        %v4442 = vsub.s32 0, %v4441
        %v4443 = vrot.slane %v4390, %v4442
        %v4444 = vlaneseq
        %v4445 = vshrl.u32 %v4444, 7
        %v4446 = vsub.s32 0, %v4445
        %v4447 = vrot.slane %v4391, %v4446
        %v4448 = vlaneseq
        %v4449 = vshrl.u32 %v4448, 7
        %v4450 = vsub.s32 0, %v4449
        %v4451 = vrot.slane %v4392, %v4450
        %v4452 = vlaneseq
        %v4453 = vshrl.u32 %v4452, 7
        %v4454 = vsub.s32 0, %v4453
        %v4455 = vrot.slane %v4393, %v4454
        %v4456 = vlaneseq
        %v4457 = vshrl.u32 %v4456, 7
        %v4458 = vsub.s32 0, %v4457
        %v4459 = vrot.slane %v4394, %v4458
        %v4460 = vlaneseq
        %v4461 = vshrl.u32 %v4460, 7
        %v4462 = vsub.s32 0, %v4461
        %v4463 = vrot.slane %v4395, %v4462
        %v4464 = vlaneseq
        %v4465 = vshrl.u32 %v4464, 7
        %v4466 = vsub.s32 0, %v4465
        %v4467 = vrot.slane %v4396, %v4466
        %v4468 = vlaneseq
        %v4469 = vshrl.u32 %v4468, 7
        %v4470 = vsub.s32 0, %v4469
        %v4471 = vrot.slane %v4397, %v4470
        %v4472 = vlaneseq
        %v4473 = vshrl.u32 %v4472, 7
        %v4474 = vsub.s32 0, %v4473
        %v4475 = vrot.slane %v4398, %v4474
        %v4476 = vlaneseq
        %v4477 = vshrl.u32 %v4476, 7
        %v4478 = vsub.s32 0, %v4477
        %v4479 = vrot.slane %v4399, %v4478
        %v4480 = vlaneseq
        %v4481 = vshrl.u32 %v4480, 7
        %v4482 = vsub.s32 0, %v4481
        %v4483 = vrot.slane %v4400, %v4482
        %v4484 = vlaneseq
        %v4485 = vshrl.u32 %v4484, 7
        %v4486 = vsub.s32 0, %v4485
        %v4487 = vrot.slane %v4401, %v4486
        %v4488 = vlaneseq
        %v4489 = vshrl.u32 %v4488, 7
        %v4490 = vsub.s32 0, %v4489
        %v4491 = vrot.slane %v4402, %v4490
        %v4492 = vlaneseq
        %v4493 = vshrl.u32 %v4492, 7
        %v4494 = vsub.s32 0, %v4493
        %v4495 = vrot.slane %v4403, %v4494
        %v4496 = vsel %vm3078, %v4439, %v4435
        %v4497 = vsel %vm3080, %v4443, %v4496
        %v4498 = vsel %vm3082, %v4447, %v4497
        %v4499 = vsel %vm3078, %v4455, %v4451
        %v4500 = vsel %vm3080, %v4459, %v4499
        %v4501 = vsel %vm3082, %v4463, %v4500
        %v4502 = vsel %vm3078, %v4471, %v4467
        %v4503 = vsel %vm3080, %v4475, %v4502
        %v4504 = vsel %vm3082, %v4479, %v4503
        %v4505 = vsel %vm3078, %v4487, %v4483
        %v4506 = vsel %vm3080, %v4491, %v4505
        %v4507 = vsel %vm3082, %v4495, %v4506
        %vm4512 = vcmask 125952
        %4513 = vst.msk [vmem:[%s372 + $0x1] sm:$0xf] %vm4512, %v4498
        %4514 = vst.msk [vmem:[%s372 + $0x19] sm:$0xf] %vm4512, %v4501
        %4515 = vst.msk [vmem:[%s372 + $0x31] sm:$0xf] %vm4512, %v4504
        %4516 = vst.msk [vmem:[%s372 + $0x49] sm:$0xf] %vm4512, %v4507
        %v4517 = vld [vmem:[#allocation2] sm:$0x3f]
        %v4518 = vld [vmem:[#allocation2 + $0x18] sm:$0x3f]
        %v4519 = vld [vmem:[#allocation2 + $0x30] sm:$0x3f]
        %v4520 = vld [vmem:[#allocation2 + $0x48] sm:$0x3f]
        %v4521 = vld [vmem:[#allocation2 + $0x60] sm:$0x3f]
        %v4522 = vld [vmem:[#allocation2 + $0x78] sm:$0x3f]
        %v4527 = vcombine.low %v4517, %v4518
        %v4528 = vcombine.low %v4519, %v4520
        %4531 = vst.msk [vmem:[#allocation3] sm:$0xff] %vm3674, %v4527
        %4532 = vst.msk [vmem:[#allocation3 + $0x10] sm:$0xff] %vm3674, %v4528
        %v4533 = vcombine.high %v4517, %v4517
        %v4534 = vcombine.high %v4518, %v4518
        %v4535 = vcombine.high %v4519, %v4519
        %v4536 = vcombine.high %v4520, %v4520
        %vm4537 = vcmask 1042432
        %vm4538 = vcmask 1046532
        %vm4539 = vmor %vm4537, %vm4538
        %v4540 = vrot.slane %v4517, 5
        %v4541 = vrot.slane %v4540, 4
        %v4542 = vrot.slane %v4533, 5
        %v4543 = vsel %vm4539, %v4541, %v4542
        %v4544 = vrot.slane %v4518, 5
        %v4545 = vrot.slane %v4544, 4
        %v4546 = vrot.slane %v4534, 5
        %v4547 = vsel %vm4539, %v4545, %v4546
        %v4548 = vrot.slane %v4519, 5
        %v4549 = vrot.slane %v4548, 4
        %v4550 = vrot.slane %v4535, 5
        %v4551 = vsel %vm4539, %v4549, %v4550
        %v4552 = vrot.slane %v4520, 5
        %v4553 = vrot.slane %v4552, 4
        %v4554 = vrot.slane %v4536, 5
        %v4555 = vsel %vm4539, %v4553, %v4554
        %v4556 = vcombine.low %v4543, %v4547
        %v4557 = vcombine.low %v4551, %v4555
        %4558 = vrot.lane.b32.xlu0 %v4556, 16
        %v4559 = vpop.permute.xlu0 %4558
        %4560 = vrot.lane.b32.xlu0 %v4557, 16
        %v4561 = vpop.permute.xlu0 %4560
        %4564 = vst.msk [vmem:[#allocation3] sm:$0xff] %vm3797, %v4559
        %4565 = vst.msk [vmem:[#allocation3 + $0x10] sm:$0xff] %vm3797, %v4561
        %vm4566 = vcmask 1041408
        %vm4567 = vcmask 1045508
        %vm4568 = vmor %vm4566, %vm4567
        %v4569 = vrot.slane %v4517, 6
        %v4570 = vrot.slane %v4569, 4
        %v4571 = vrot.slane %v4533, 6
        %v4572 = vsel %vm4568, %v4570, %v4571
        %v4573 = vrot.slane %v4518, 6
        %v4574 = vrot.slane %v4573, 4
        %v4575 = vrot.slane %v4534, 6
        %v4576 = vsel %vm4568, %v4574, %v4575
        %v4577 = vrot.slane %v4519, 6
        %v4578 = vrot.slane %v4577, 4
        %v4579 = vrot.slane %v4535, 6
        %v4580 = vsel %vm4568, %v4578, %v4579
        %v4581 = vrot.slane %v4520, 6
        %v4582 = vrot.slane %v4581, 4
        %v4583 = vrot.slane %v4536, 6
        %v4584 = vsel %vm4568, %v4582, %v4583
        %v4585 = vcombine.low %v4572, %v4576
        %v4586 = vcombine.low %v4580, %v4584
        %4587 = vrot.lane.b32.xlu0 %v4585, 32
        %v4588 = vpop.permute.xlu0 %4587
        %4589 = vrot.lane.b32.xlu0 %v4586, 32
        %v4590 = vpop.permute.xlu0 %4589
        %4593 = vst.msk [vmem:[#allocation3] sm:$0xff] %vm3854, %v4588
        %4594 = vst.msk [vmem:[#allocation3 + $0x10] sm:$0xff] %vm3854, %v4590
        %v4596 = vcombine.low %v4518, %v4519
        %v4597 = vcombine.low %v4520, %v4521
        %4598 = vrot.lane.b32.xlu0 %v4596, 48
        %v4599 = vpop.permute.xlu0 %4598
        %4600 = vrot.lane.b32.xlu0 %v4597, 48
        %v4601 = vpop.permute.xlu0 %4600
        %4604 = vst.msk [vmem:[#allocation3] sm:$0xff] %vm3888, %v4599
        %4605 = vst.msk [vmem:[#allocation3 + $0x10] sm:$0xff] %vm3888, %v4601
        %v4606 = vcombine.high %v4521, %v4521
        %v4607 = vrot.slane %v4521, 5
        %v4608 = vrot.slane %v4607, 4
        %v4609 = vrot.slane %v4606, 5
        %v4610 = vsel %vm4539, %v4608, %v4609
        %v4611 = vcombine.low %v4547, %v4551
        %v4612 = vcombine.low %v4555, %v4610
        %4613 = vrot.lane.b32.xlu0 %v4611, 64
        %v4614 = vpop.permute.xlu0 %4613
        %4615 = vrot.lane.b32.xlu0 %v4612, 64
        %v4616 = vpop.permute.xlu0 %4615
        %4619 = vst.msk [vmem:[#allocation3] sm:$0xff] %vm3925, %v4614
        %4620 = vst.msk [vmem:[#allocation3 + $0x10] sm:$0xff] %vm3925, %v4616
        %v4621 = vrot.slane %v4521, 6
        %v4622 = vrot.slane %v4621, 4
        %v4623 = vrot.slane %v4606, 6
        %v4624 = vsel %vm4568, %v4622, %v4623
        %v4625 = vcombine.low %v4576, %v4580
        %v4626 = vcombine.low %v4584, %v4624
        %4627 = vrot.lane.b32.xlu0 %v4625, 80
        %v4628 = vpop.permute.xlu0 %4627
        %4629 = vrot.lane.b32.xlu0 %v4626, 80
        %v4630 = vpop.permute.xlu0 %4629
        %4633 = vst.msk [vmem:[#allocation3] sm:$0xff] %vm3961, %v4628
        %4634 = vst.msk [vmem:[#allocation3 + $0x10] sm:$0xff] %vm3961, %v4630
        %v4636 = vcombine.low %v4521, %v4522
        %4637 = vrot.lane.b32.xlu0 %v4528, 96
        %v4638 = vpop.permute.xlu0 %4637
        %4639 = vrot.lane.b32.xlu0 %v4636, 96
        %v4640 = vpop.permute.xlu0 %4639
        %4643 = vst.msk [vmem:[#allocation3] sm:$0xff] %vm3995, %v4638
        %4644 = vst.msk [vmem:[#allocation3 + $0x10] sm:$0xff] %vm3995, %v4640
        %v4645 = vcombine.high %v4522, %v4522
        %v4646 = vrot.slane %v4522, 5
        %v4647 = vrot.slane %v4646, 4
        %v4648 = vrot.slane %v4645, 5
        %v4649 = vsel %vm4539, %v4647, %v4648
        %v4650 = vcombine.low %v4610, %v4649
        %4651 = vrot.lane.b32.xlu0 %v4557, 112
        %v4652 = vpop.permute.xlu0 %4651
        %4653 = vrot.lane.b32.xlu0 %v4650, 112
        %v4654 = vpop.permute.xlu0 %4653
        %4657 = vst.msk [vmem:[#allocation3] sm:$0xff] %vm4032, %v4652
        %4658 = vst.msk [vmem:[#allocation3 + $0x10] sm:$0xff] %vm4032, %v4654
        %v4659 = vrot.slane %v4522, 6
        %v4660 = vrot.slane %v4659, 4
        %v4661 = vrot.slane %v4645, 6
        %v4662 = vsel %vm4568, %v4660, %v4661
        %v4663 = vcombine.low %v4624, %v4662
        %4666 = vst.msk [vmem:[#allocation3 + $0x8] sm:$0xff] %vm3674, %v4586
        %4667 = vst.msk [vmem:[#allocation3 + $0x18] sm:$0xff] %vm3674, %v4663
        %v4668 = vld [vmem:[#allocation3] sm:$0xff]
        %v4669 = vld [vmem:[#allocation3 + $0x8] sm:$0xff]
        %v4670 = vld [vmem:[#allocation3 + $0x10] sm:$0xff]
        %v4671 = vld [vmem:[#allocation3 + $0x18] sm:$0xff]
        %v4672 = vpack.c.bf16 %v4670, %v4668
        %v4673 = vpack.c.bf16 %v4671, %v4669
        %v4674 = vld [vmem:[%s7] sm:$0xf]
        %v4675 = vld [vmem:[%s7 + $0x4] sm:$0xf]
        %v4676 = vld [vmem:[%s7 + $0x8] sm:$0xf]
        %v4677 = vld [vmem:[%s7 + $0xc] sm:$0xf]
        %v4678 = vld [vmem:[%s7 + $0x10] sm:$0xf]
        %v4679 = vld [vmem:[%s7 + $0x14] sm:$0xf]
        %v4680 = vld [vmem:[%s7 + $0x18] sm:$0xf]
        %v4681 = vld [vmem:[%s7 + $0x1c] sm:$0xf]
        %v4682 = vld [vmem:[%s7 + $0x20] sm:$0xf]
        %v4683 = vld [vmem:[%s7 + $0x24] sm:$0xf]
        %v4684 = vld [vmem:[%s7 + $0x28] sm:$0xf]
        %v4685 = vld [vmem:[%s7 + $0x2c] sm:$0xf]
        %v4686 = vld [vmem:[%s7 + $0x30] sm:$0xf]
        %v4687 = vld [vmem:[%s7 + $0x34] sm:$0xf]
        %v4688 = vld [vmem:[%s7 + $0x38] sm:$0xf]
        %v4689 = vld [vmem:[%s7 + $0x3c] sm:$0xf]
        %v4690 = vld [vmem:[%s7 + $0x40] sm:$0xf]
        %v4691 = vld [vmem:[%s7 + $0x44] sm:$0xf]
        %v4692 = vld [vmem:[%s8] sm:$0x1]
        %v4694 = vlaneseq
        %v4695 = vshrl.u32 %v4694, 7
        %v4696 = vsub.s32 0, %v4695
        %v4697 = vrot.slane %v4692, %v4696
        %v4717 = vunpack.c.l.b16 %v4674
        %v4718 = vunpack.c.l.b16 %v4675
        %v4719 = vunpack.c.l.b16 %v4676
        %v4720 = vunpack.c.l.b16 %v4677
        %v4721 = vunpack.c.l.b16 %v4678
        %v4722 = vunpack.c.l.b16 %v4679
        %v4723 = vunpack.c.l.b16 %v4680
        %v4724 = vunpack.c.l.b16 %v4681
        %v4725 = vunpack.c.l.b16 %v4682
        %v4726 = vunpack.c.l.b16 %v4683
        %v4727 = vunpack.c.l.b16 %v4684
        %v4728 = vunpack.c.l.b16 %v4685
        %v4729 = vunpack.c.l.b16 %v4686
        %v4730 = vunpack.c.l.b16 %v4687
        %v4731 = vunpack.c.l.b16 %v4688
        %v4732 = vunpack.c.l.b16 %v4689
        %v4733 = vunpack.c.l.b16 %v4690
        %v4734 = vunpack.c.l.b16 %v4691
        %v4735 = vpack.c.b16 %v4718, %v4717
        %v4736 = vpack.c.b16 %v4720, %v4719
        %v4737 = vpack.c.b16 %v4722, %v4721
        %v4738 = vpack.c.b16 %v4724, %v4723
        %v4739 = vpack.c.b16 %v4726, %v4725
        %v4740 = vpack.c.b16 %v4728, %v4727
        %v4741 = vpack.c.b16 %v4730, %v4729
        %v4742 = vpack.c.b16 %v4732, %v4731
        %v4743 = vpack.c.b16 %v4734, %v4733
        %v4754 = vsel %vm3674, %v4673, 0
        %4756 = vmatprep.subr.bf16.mxu0 0
        %4757 = vmatpush1.bf16.msra.mxu0 %v4735
        %4758 = vmatprep.subr.bf16.mxu0 0
        %4759 = vmatpush1.bf16.msra.mxu0 %v4736
        %4760 = vmatprep.subr.bf16.mxu0 0
        %4761 = vmatpush1.bf16.msra.mxu0 %v4737
        %4762 = vmatprep.subr.bf16.mxu0 0
        %4763 = vmatpush1.bf16.msra.mxu0 %v4738
        %4764 = vmatprep.subr.bf16.mxu0 0
        %4765 = vmatpush1.bf16.msra.mxu0 %v4739
        %4766 = vmatprep.subr.bf16.mxu0 0
        %4767 = vmatpush1.bf16.msra.mxu0 %v4740
        %4768 = vmatprep.subr.bf16.mxu0 0
        %4769 = vmatpush1.bf16.msra.mxu0 %v4741
        %4770 = vmatprep.subr.bf16.mxu0 0
        %4771 = vmatpush1.bf16.msra.mxu0 %v4742
        %4772 = vmatprep.subr.bf16.mxu0 0
        %4773 = vmatpush1.bf16.msra.mxu0 %v4743
        %4774 = vmatprep.subr.bf16.mxu0 0
        %4775 = vmatpush1.bf16.msra.mxu0 0
        %4776 = vmatprep.subr.bf16.mxu0 0
        %4777 = vmatpush1.bf16.msra.mxu0 0
        %4778 = vmatprep.subr.bf16.mxu0 0
        %4779 = vmatpush1.bf16.msra.mxu0 0
        %4780 = vmatprep.subr.bf16.mxu0 0
        %4781 = vmatpush1.bf16.msra.mxu0 0
        %4782 = vmatprep.subr.bf16.mxu0 0
        %4783 = vmatpush1.bf16.msra.mxu0 0
        %4784 = vmatprep.subr.bf16.mxu0 0
        %4785 = vmatpush1.bf16.msra.mxu0 0
        %4786 = vmatprep.subr.bf16.mxu0 0
        %4787 = vmatpush1.bf16.msra.mxu0 0
        %4788 = vmatprep.mubr.bf16.mxu0 %v4754
        %4789 = vmatmul.mubr.bf16.gmra.mrb[0].mxu0 %v4672
        %v4790 = vpop.f32.mrb[0].mxu0
        %v4791 = vadd.f32 %v4697, %v4790
        %v4792 = vpop.f32.mrb[0].mxu0
        %v4793 = vpop.f32.mrb[0].mxu0
        %v4794 = vadd.f32 %v4697, %v4793
        %v4795 = vpop.f32.mrb[0].mxu0
        %4796 = vdwg.mxu0
        %v4797 = vmax.f32 %v4791, 0.0
        %v4798 = vmax.f32 %v4794, 0.0
        %v4801 = vcombine.high %v4797, %v4797
        %v4802 = vcombine.high %v4798, %v4798
        %v4805 = vmax.f32 %v4797, %v4801
        %v4806 = vmax.f32 %v4798, %v4802
        %v4810 = vunpack.c.l.s4 1983009808
        %v4811 = vunpack.c.0.s8 %v4810
        %v4812 = vlaneseq
        %v4813 = vshrl.u32 %v4812, 7
        %v4814 = vsub.s32 %v4811, %v4813
        %v4815 = vrot.slane %v4805, %v4814
        %v4816 = vcombine.high %v4815, %v4815
        %v4818 = vunpack.c.l.s4 1983009808
        %v4819 = vunpack.c.0.s8 %v4818
        %v4820 = vlaneseq
        %v4821 = vshrl.u32 %v4820, 7
        %v4822 = vsub.s32 %v4819, %v4821
        %v4823 = vrot.slane %v4806, %v4822
        %v4824 = vcombine.high %v4823, %v4823
        %v4829 = vrot.slane %v4815, 7
        %v4830 = vrot.slane %v4829, 2
        %v4831 = vrot.slane %v4816, 7
        %v4832 = vrot.slane %v4831, 2
        %v4833 = vrot.slane %v4823, 7
        %v4834 = vrot.slane %v4833, 2
        %v4835 = vrot.slane %v4824, 7
        %v4836 = vrot.slane %v4835, 2
        %v4841 = vmax.f32 %v4815, %v4830
        %v4842 = vmax.f32 %v4816, %v4832
        %v4843 = vmax.f32 %v4823, %v4834
        %v4844 = vmax.f32 %v4824, %v4836
        %vm4845 = vcmask 253952
        %4846 = vst.msk [vmem:[%s324] sm:$0x1] %vm4845, %v4841
        %v4848 = vlaneseq
        %v4849 = vshrl.u32 %v4848, 7
        %v4850 = vsub.s32 0, %v4849
        %v4851 = vrot.slane %v4842, %v4850
        %4852 = vrot.lane.b32.xlu0 %v4851, 32
        %v4853 = vpop.permute.xlu0 %4852
        %vm4855 = vcmask 516352
        %4856 = vst.msk [vmem:[%s324] sm:$0x1] %vm4855, %v4853
        %v4858 = vlaneseq
        %v4859 = vshrl.u32 %v4858, 7
        %v4860 = vsub.s32 0, %v4859
        %v4861 = vrot.slane %v4843, %v4860
        %4862 = vrot.lane.b32.xlu0 %v4861, 64
        %v4863 = vpop.permute.xlu0 %4862
        %vm4865 = vcmask 778752
        %4866 = vst.msk [vmem:[%s324] sm:$0x1] %vm4865, %v4863
        %v4868 = vlaneseq
        %v4869 = vshrl.u32 %v4868, 7
        %v4870 = vsub.s32 0, %v4869
        %v4871 = vrot.slane %v4844, %v4870
        %4872 = vrot.lane.b32.xlu0 %v4871, 96
        %v4873 = vpop.permute.xlu0 %4872
        %vm4875 = vcmask 1041152
        %4876 = vst.msk [vmem:[%s324] sm:$0x1] %vm4875, %v4873
        %s4877 = sand.u32 %s225, 1
        %s4878 = scalar_lea.sflag [#allocation5], %s4877
        %s4879 = sand.u32 %s225, 1
        %s4880 = scalar_lea.vmem [#allocation4], %s4879
        // Predicated region
        $region57: #{tpu_custom_call.1} parent=55 // pred_check
          %p4881 = pneg %p235
        $region58: #{tpu_custom_call.1} parent=55 // pred_check_branch
          %4883 = sbr.rel (%p4881) target = $region60
        $region59: #{tpu_custom_call.1} parent=55 // pred_region
          %s4885 = ssub.s32 16, 16
          %4886 = vsyncadd %s4878, %s4885
          %s4887 = smul.addr %s23, 16
          %s4888 = scalar_lea.hbm %s9, %s4887
          %s4890 = sshll.u32 %s4880, 4
          %s4891 = int_to_ptr.vmem [resolvable:$true] %s4890
          %4893 = dma.vmem_to_hbm [thread:$0]  %s4891, 16, %s4888, %s4878
        $region60: #{tpu_custom_call.1} parent=55 // pred_fallthru
          _
      $region56: #{tpu_custom_call.1} parent=5 // pred_fallthru
        _
      %p4894 = scmp.le.s32.totalorder 2, %s18
      // Predicated region
      $region61: #{tpu_custom_call.1} parent=5 // pred_check
        %p4895 = pneg %p4894
      $region62: #{tpu_custom_call.1} parent=5 // pred_check_branch
        %4897 = sbr.rel (%p4895) target = $region64
      $region63: #{tpu_custom_call.1} parent=5 // pred_region
        %s4898 = ssub.s32 %s18, 2
        // Predicated region
        $region65: #{tpu_custom_call.1} parent=63 // pred_check
          %p4899 = pneg %p241
        $region66: #{tpu_custom_call.1} parent=63 // pred_check_branch
          %4901 = sbr.rel (%p4899) target = $region68
        $region67: #{tpu_custom_call.1} parent=63 // pred_region
          %s4902 = sand.u32 %s226, 1
          %s4903 = scalar_lea.sflag [#allocation5], %s4902
          %s4904 = sand.u32 %s226, 1
          %s4905 = scalar_lea.vmem [#allocation4], %s4904
          %4906 = dma.done %s4903, 16
        $region68: #{tpu_custom_call.1} parent=63 // pred_fallthru
          _
      $region64: #{tpu_custom_call.1} parent=5 // pred_fallthru
        _
    $region6: #{tpu_custom_call.1} parent=1 // loop_footer
      %s22 = sadd.s32 1, %s18
    $region7: #{tpu_custom_call.1} parent=1 // loop_footer_branch
      %17 = sbr.rel target = $region3
    $region8: #{tpu_custom_call.1} parent=1 // loop_exit
      _
    %4907 = vsyncpa [#allocation5], 1
    %s4908 = scalar_lea.sflag [#allocation5], 1
    %4909 = vsyncpa %s4908, 1

</llo_original>
